<compile_context>
chip_gen: v6e
topology: v6e:2x2x1
jax: 0.10.0
libtpu: 0.0.40
codegen_flags: <defaults>
</compile_context>

<pallas_src>
import numpy as np

import jax
import jax.numpy as jnp
from jax.experimental import pallas as pl
from jax.experimental.pallas import tpu as pltpu


def _make_lstm_kernel(T: int, BT: int, D: int, n_chains: int, mxu_dtype, xg_dtype):
    inv_T = 1.0 / float(T)
    BH = BT // n_chains
    assert BH * n_chains == BT and BH % 8 == 0

    def kernel(x_ref, wih_ref, whh_ref, b_ref, out_ref, xg_ref):
        # x_ref:  (BT, T*D) f32  batch-major, time folded into lanes (per-step
        #         slices are aligned lane slices -> no transpose, no strided loads).
        # wih/whh:(D, 4D) mxu_dtype, resident in VMEM across the whole grid.
        # b_ref:  (1, 4D) f32 (b_ih + b_hh).
        # out_ref:(BT, D) f32 lane-/sublane-dense output slab.
        # xg_ref: (T*BT, 4D) VMEM scratch, time-major rows (row = t*BT + b).
        w_ih = wih_ref[...]
        w_hh = whh_ref[...]
        bias = b_ref[...]

        # ---- Phase 1: hoisted input-gate projections (independent of recurrence) ----
        # One (BT, D) @ (D, 4D) MXU op per time step; each result streams straight
        # into the VMEM scratch so nothing large stays live across the serial loop.
        x_sum = jnp.zeros((BT, D), jnp.float32)
        for t in range(T):                                      # static offsets
            x_t = x_ref[:, pl.ds(t * D, D)]                     # (BT, D) lane slice
            x_sum = x_sum + x_t
            xg = jnp.dot(x_t.astype(mxu_dtype), w_ih,
                         preferred_element_type=jnp.float32) + bias
            xg_ref[pl.ds(t * BT, BT), :] = xg.astype(xg_dtype)

        # Residual part of mean_t(h_t + x_t); h contribution is added in phase 3.
        out_ref[...] = (x_sum * inv_T).astype(out_ref.dtype)

        # ---- Phase 2: sequential recurrence, n_chains independent batch sub-tiles ----
        # Independent chains let the scheduler overlap chain A's sigmoid/tanh
        # (EUP/VPU) with chain B's h @ w_hh (MXU), and vice versa.
        def step(t, carry):
            hs, cs, accs = carry
            hs_n, cs_n, accs_n = [], [], []
            for k in range(n_chains):
                start = pl.multiple_of(t * BT + k * BH, BH)
                g = xg_ref[pl.ds(start, BH), :].astype(jnp.float32) + jnp.dot(
                    hs[k].astype(mxu_dtype), w_hh,
                    preferred_element_type=jnp.float32)         # (BH, 4D) f32
                # PyTorch LSTM gate order: i, f, g, o.
                i_g = jax.nn.sigmoid(g[:, 0:D])
                f_g = jax.nn.sigmoid(g[:, D:2 * D])
                g_g = jnp.tanh(g[:, 2 * D:3 * D])
                o_g = jax.nn.sigmoid(g[:, 3 * D:4 * D])
                c = f_g * cs[k] + i_g * g_g
                h = o_g * jnp.tanh(c)
                hs_n.append(h)
                cs_n.append(c)
                accs_n.append(accs[k] + h)
            return tuple(hs_n), tuple(cs_n), tuple(accs_n)

        zeros = lambda: tuple(jnp.zeros((BH, D), jnp.float32) for _ in range(n_chains))
        _, _, accs = jax.lax.fori_loop(0, T, step, (zeros(), zeros(), zeros()),
                                       unroll=True)

        # ---- Phase 3: add the h_t contribution of the temporal mean ----
        for k in range(n_chains):
            sl = pl.ds(k * BH, BH)
            out_ref[sl, :] = out_ref[sl, :] + accs[k] * inv_T

    return kernel


def _pick_bt(B_pad: int, cap: int = 256) -> int:
    """Largest multiple-of-8 divisor of B_pad up to `cap`; prefer >= 2 grid steps
    so dimension_semantics=("parallel",) can shard batch tiles across both v7x TCs."""
    cands = [bt for bt in range(8, min(cap, B_pad) + 1, 8) if B_pad % bt == 0]
    multi = [bt for bt in cands if B_pad // bt >= 2]
    return max(multi) if multi else max(cands)


def lstm_forward(x, params, *, bt: int | None = None, use_bf16_matmul: bool = True):
    """x: (B, T, D) float32 -> (B, D) float32 (mean_t(LSTM(x)_t + x_t))."""
    B, T, D = x.shape
    assert D % 128 == 0, "hidden dim must be a multiple of 128 (lane-aligned)"

    x = x.astype(jnp.float32)
    B_pad = ((B + 7) // 8) * 8
    if B_pad != B:
        x = jnp.concatenate([x, jnp.zeros((B_pad - B, T, D), x.dtype)], axis=0)

    if bt is None:
        bt = _pick_bt(B_pad)
    assert B_pad % bt == 0 and bt % 8 == 0
    n_chains = 2 if bt % 16 == 0 else 1

    mxu_dtype = jnp.bfloat16 if use_bf16_matmul else jnp.float32
    xg_dtype = mxu_dtype
    wbytes = 2 if use_bf16_matmul else 4

    # Fold time into lanes: (B, T, D) -> (B, T*D) collapses minor dims only, which
    # is a free (bitcast) reshape under jit -- no extra HBM pass, no transpose op.
    x2d = x.reshape(B_pad, T * D)

    w_ih = params["w_ih"].astype(mxu_dtype)
    w_hh = params["w_hh"].astype(mxu_dtype)
    b = params["b"].astype(jnp.float32)

    kernel = _make_lstm_kernel(T, bt, D, n_chains, mxu_dtype, xg_dtype)

    flops = 16 * B_pad * T * D * D                 # input-proj + recurrent matmuls
    transcendentals = 5 * B_pad * T * D            # 3 sigmoid + 2 tanh per element
    bytes_accessed = (4 * B_pad * T * D            # x
                      + 2 * D * 4 * D * wbytes     # w_ih, w_hh
                      + 4 * 4 * D                  # bias
                      + 4 * B_pad * D)             # output

    # VMEM budget: xg scratch + double-buffered x blocks + resident weights + out.
    vmem_need = (T * bt * 4 * D * wbytes
                 + 2 * bt * T * D * 4
                 + 2 * 2 * D * 4 * D * wbytes
                 + 2 * bt * D * 4
                 + (4 << 20))
    vmem_limit = int(min(max(vmem_need * 3 // 2, 32 << 20), 64 << 20))

    out = pl.pallas_call(
        kernel,
        grid=(B_pad // bt,),
        in_specs=[
            pl.BlockSpec((bt, T * D), lambda i: (i, 0)),       # x (time folded into lanes)
            pl.BlockSpec((D, 4 * D), lambda i: (0, 0)),        # W_ih^T (resident)
            pl.BlockSpec((D, 4 * D), lambda i: (0, 0)),        # W_hh^T (resident)
            pl.BlockSpec((1, 4 * D), lambda i: (0, 0)),        # b_ih + b_hh
        ],
        out_specs=pl.BlockSpec((bt, D), lambda i: (i, 0)),     # dense (bt, D) slab
        out_shape=jax.ShapeDtypeStruct((B_pad, D), jnp.float32),
        scratch_shapes=[pltpu.VMEM((T * bt, 4 * D), xg_dtype)],
        compiler_params=pltpu.CompilerParams(
            dimension_semantics=("parallel",),
            vmem_limit_bytes=vmem_limit),
        cost_estimate=pl.CostEstimate(
            flops=flops, transcendentals=transcendentals,
            bytes_accessed=bytes_accessed),
    )(x2d, w_ih, w_hh, b)

    return out[:B]


def init_params(key, D: int):
    """PyTorch-style LSTM init: uniform(-1/sqrt(H), 1/sqrt(H)); weights stored
    transposed, (D, 4D), so the kernel computes row-major `v @ W`. Gate order i,f,g,o."""
    k = 1.0 / float(np.sqrt(D))
    ks = jax.random.split(key, 4)
    u = lambda kk, shape: jax.random.uniform(kk, shape, jnp.float32, -k, k)
    w_ih = u(ks[0], (D, 4 * D))     # == weight_ih_l0.T
    w_hh = u(ks[1], (D, 4 * D))     # == weight_hh_l0.T
    b_ih = u(ks[2], (1, 4 * D))
    b_hh = u(ks[3], (1, 4 * D))
    return {"w_ih": w_ih, "w_hh": w_hh, "b": b_ih + b_hh}


def reference_forward(x, params):
    """Pure-JAX f32 reference replicating the PyTorch forward exactly."""
    B, T, D = x.shape
    w_ih, w_hh, b = params["w_ih"], params["w_hh"], params["b"]

    def step(carry, xt):
        h, c = carry
        g = xt @ w_ih + h @ w_hh + b[0]
        i_g = jax.nn.sigmoid(g[:, 0:D])
        f_g = jax.nn.sigmoid(g[:, D:2 * D])
        g_g = jnp.tanh(g[:, 2 * D:3 * D])
        o_g = jax.nn.sigmoid(g[:, 3 * D:4 * D])
        c = f_g * c + i_g * g_g
        h = o_g * jnp.tanh(c)
        return (h, c), h

    xs = jnp.transpose(x, (1, 0, 2))                       # (T, B, D)
    h0 = jnp.zeros((B, D), jnp.float32)
    c0 = jnp.zeros((B, D), jnp.float32)
    _, hs = jax.lax.scan(step, (h0, c0), xs)               # (T, B, D)
    y = jnp.transpose(hs, (1, 0, 2))                       # (B, T, D)
    # torch.cat with an empty slice is a no-op; residual + temporal mean:
    return (y + x).mean(axis=1)


if __name__ == "__main__":
    T, D = 8, 128
    key = jax.random.PRNGKey(0)
    kx1, kx2, kp = jax.random.split(key, 3)
    params = init_params(kp, D)

    fwd = jax.jit(lstm_forward)

    # Case 1: exercises BT=16, two interleaved recurrence chains, 2 grid steps.
    x1 = jax.random.normal(kx1, (32, T, D), dtype=jnp.float32)
    out1 = jax.block_until_ready(fwd(x1, params))
    ref1 = jax.block_until_ready(reference_forward(x1, params))
    assert out1.shape == (32, D), out1.shape
    # bf16 MXU operands (f32 accumulation) => relaxed tolerance vs the f32 reference.
    np.testing.assert_allclose(np.asarray(out1), np.asarray(ref1), atol=3e-2, rtol=3e-2)

    # Case 2: exercises the batch-padding path (B not a multiple of 8), single chain.
    x2 = jax.random.normal(kx2, (13, T, D), dtype=jnp.float32)
    out2 = jax.block_until_ready(fwd(x2, params))
    ref2 = jax.block_until_ready(reference_forward(x2, params))
    assert out2.shape == (13, D), out2.shape
    np.testing.assert_allclose(np.asarray(out2), np.asarray(ref2), atol=3e-2, rtol=3e-2)

    print("KERNEL_OK")
</pallas_src>

<mosaic_0001>
module attributes {stable_mosaic.version = 11 : i64} {
  func.func @kernel(%arg0: i32, %arg1: memref<16x1024xf32, #tpu.memory_space<vmem>>, %arg2: memref<128x512xbf16, #tpu.memory_space<vmem>>, %arg3: memref<128x512xbf16, #tpu.memory_space<vmem>>, %arg4: memref<1x512xf32, #tpu.memory_space<vmem>>, %arg5: memref<16x128xf32, #tpu.memory_space<vmem>>, %arg6: memref<128x512xbf16, #tpu.memory_space<vmem>>) attributes {dimension_semantics = [#tpu.dimension_semantics<parallel>], iteration_bounds = array<i64: 2>, scalar_prefetch = 0 : i64, scratch_operands = 1 : i64, tpu.core_type = #tpu.core_type<tc>, window_params = [{transform_indices = @transform_0, window_bounds = array<i64: 16, 1024>}, {pipeline_mode = #tpu.pipeline_mode<synchronous>, transform_indices = @transform_1, window_bounds = array<i64: 128, 512>}, {pipeline_mode = #tpu.pipeline_mode<synchronous>, transform_indices = @transform_2, window_bounds = array<i64: 128, 512>}, {pipeline_mode = #tpu.pipeline_mode<synchronous>, transform_indices = @transform_3, window_bounds = array<i64: 1, 512>}, {transform_indices = @transform_4, window_bounds = array<i64: 16, 128>}]} {
    %c0 = arith.constant 0 : index
    %c0_0 = arith.constant 0 : index
    %0 = vector.load %arg2[%c0, %c0_0] : memref<128x512xbf16, #tpu.memory_space<vmem>>, vector<128x512xbf16>
    %c0_1 = arith.constant 0 : index
    %c0_2 = arith.constant 0 : index
    %1 = vector.load %arg3[%c0_1, %c0_2] : memref<128x512xbf16, #tpu.memory_space<vmem>>, vector<128x512xbf16>
    %c0_3 = arith.constant 0 : index
    %c0_4 = arith.constant 0 : index
    %2 = vector.load %arg4[%c0_3, %c0_4] : memref<1x512xf32, #tpu.memory_space<vmem>>, vector<1x512xf32>
    %cst = arith.constant 0.000000e+00 : f32
    %3 = vector.broadcast %cst : f32 to vector<16x128xf32>
    %c0_5 = arith.constant 0 : index
    %c0_6 = arith.constant 0 : index
    %4 = vector.load %arg1[%c0_5, %c0_6] : memref<16x1024xf32, #tpu.memory_space<vmem>>, vector<16x128xf32>
    %5 = arith.addf %3, %4 : vector<16x128xf32>
    %6 = arith.truncf %4 : vector<16x128xf32> to vector<16x128xbf16>
    %cst_7 = arith.constant dense<0.000000e+00> : vector<16x512xf32>
    %7 = tpu.matmul %6, %0, %cst_7 {dimension_numbers = #tpu.dot_dimension_numbers<[1], [0], [0], [1], [0, 0, 1, 1], [], []>} : vector<16x128xbf16>, vector<128x512xbf16>, vector<16x512xf32> -> vector<16x512xf32>
    %8 = vector.broadcast %2 : vector<1x512xf32> to vector<16x512xf32>
    %9 = arith.addf %7, %8 : vector<16x512xf32>
    %10 = arith.truncf %9 : vector<16x512xf32> to vector<16x512xbf16>
    %c0_8 = arith.constant 0 : index
    %c0_9 = arith.constant 0 : index
    %11 = vector.load %arg6[%c0_8, %c0_9] : memref<128x512xbf16, #tpu.memory_space<vmem>>, vector<16x512xbf16>
    tpu.vector_store %arg6[%c0_8, %c0_9], %10 {strides = array<i32>} : memref<128x512xbf16, #tpu.memory_space<vmem>>, vector<16x512xbf16>,
    %c0_10 = arith.constant 0 : index
    %c128 = arith.constant 128 : index
    %12 = vector.load %arg1[%c0_10, %c128] : memref<16x1024xf32, #tpu.memory_space<vmem>>, vector<16x128xf32>
    %13 = arith.addf %5, %12 : vector<16x128xf32>
    %14 = arith.truncf %12 : vector<16x128xf32> to vector<16x128xbf16>
    %cst_11 = arith.constant dense<0.000000e+00> : vector<16x512xf32>
    %15 = tpu.matmul %14, %0, %cst_11 {dimension_numbers = #tpu.dot_dimension_numbers<[1], [0], [0], [1], [0, 0, 1, 1], [], []>} : vector<16x128xbf16>, vector<128x512xbf16>, vector<16x512xf32> -> vector<16x512xf32>
    %16 = vector.broadcast %2 : vector<1x512xf32> to vector<16x512xf32>
    %17 = arith.addf %15, %16 : vector<16x512xf32>
    %18 = arith.truncf %17 : vector<16x512xf32> to vector<16x512xbf16>
    %c16 = arith.constant 16 : index
    %c0_12 = arith.constant 0 : index
    %19 = vector.load %arg6[%c16, %c0_12] : memref<128x512xbf16, #tpu.memory_space<vmem>>, vector<16x512xbf16>
    tpu.vector_store %arg6[%c16, %c0_12], %18 {strides = array<i32>} : memref<128x512xbf16, #tpu.memory_space<vmem>>, vector<16x512xbf16>,
    %c0_13 = arith.constant 0 : index
    %c256 = arith.constant 256 : index
    %20 = vector.load %arg1[%c0_13, %c256] : memref<16x1024xf32, #tpu.memory_space<vmem>>, vector<16x128xf32>
    %21 = arith.addf %13, %20 : vector<16x128xf32>
    %22 = arith.truncf %20 : vector<16x128xf32> to vector<16x128xbf16>
    %cst_14 = arith.constant dense<0.000000e+00> : vector<16x512xf32>
    %23 = tpu.matmul %22, %0, %cst_14 {dimension_numbers = #tpu.dot_dimension_numbers<[1], [0], [0], [1], [0, 0, 1, 1], [], []>} : vector<16x128xbf16>, vector<128x512xbf16>, vector<16x512xf32> -> vector<16x512xf32>
    %24 = vector.broadcast %2 : vector<1x512xf32> to vector<16x512xf32>
    %25 = arith.addf %23, %24 : vector<16x512xf32>
    %26 = arith.truncf %25 : vector<16x512xf32> to vector<16x512xbf16>
    %c32 = arith.constant 32 : index
    %c0_15 = arith.constant 0 : index
    %27 = vector.load %arg6[%c32, %c0_15] : memref<128x512xbf16, #tpu.memory_space<vmem>>, vector<16x512xbf16>
    tpu.vector_store %arg6[%c32, %c0_15], %26 {strides = array<i32>} : memref<128x512xbf16, #tpu.memory_space<vmem>>, vector<16x512xbf16>,
    %c0_16 = arith.constant 0 : index
    %c384 = arith.constant 384 : index
    %28 = vector.load %arg1[%c0_16, %c384] : memref<16x1024xf32, #tpu.memory_space<vmem>>, vector<16x128xf32>
    %29 = arith.addf %21, %28 : vector<16x128xf32>
    %30 = arith.truncf %28 : vector<16x128xf32> to vector<16x128xbf16>
    %cst_17 = arith.constant dense<0.000000e+00> : vector<16x512xf32>
    %31 = tpu.matmul %30, %0, %cst_17 {dimension_numbers = #tpu.dot_dimension_numbers<[1], [0], [0], [1], [0, 0, 1, 1], [], []>} : vector<16x128xbf16>, vector<128x512xbf16>, vector<16x512xf32> -> vector<16x512xf32>
    %32 = vector.broadcast %2 : vector<1x512xf32> to vector<16x512xf32>
    %33 = arith.addf %31, %32 : vector<16x512xf32>
    %34 = arith.truncf %33 : vector<16x512xf32> to vector<16x512xbf16>
    %c48 = arith.constant 48 : index
    %c0_18 = arith.constant 0 : index
    %35 = vector.load %arg6[%c48, %c0_18] : memref<128x512xbf16, #tpu.memory_space<vmem>>, vector<16x512xbf16>
    tpu.vector_store %arg6[%c48, %c0_18], %34 {strides = array<i32>} : memref<128x512xbf16, #tpu.memory_space<vmem>>, vector<16x512xbf16>,
    %c0_19 = arith.constant 0 : index
    %c512 = arith.constant 512 : index
    %36 = vector.load %arg1[%c0_19, %c512] : memref<16x1024xf32, #tpu.memory_space<vmem>>, vector<16x128xf32>
    %37 = arith.addf %29, %36 : vector<16x128xf32>
    %38 = arith.truncf %36 : vector<16x128xf32> to vector<16x128xbf16>
    %cst_20 = arith.constant dense<0.000000e+00> : vector<16x512xf32>
    %39 = tpu.matmul %38, %0, %cst_20 {dimension_numbers = #tpu.dot_dimension_numbers<[1], [0], [0], [1], [0, 0, 1, 1], [], []>} : vector<16x128xbf16>, vector<128x512xbf16>, vector<16x512xf32> -> vector<16x512xf32>
    %40 = vector.broadcast %2 : vector<1x512xf32> to vector<16x512xf32>
    %41 = arith.addf %39, %40 : vector<16x512xf32>
    %42 = arith.truncf %41 : vector<16x512xf32> to vector<16x512xbf16>
    %c64 = arith.constant 64 : index
    %c0_21 = arith.constant 0 : index
    %43 = vector.load %arg6[%c64, %c0_21] : memref<128x512xbf16, #tpu.memory_space<vmem>>, vector<16x512xbf16>
    tpu.vector_store %arg6[%c64, %c0_21], %42 {strides = array<i32>} : memref<128x512xbf16, #tpu.memory_space<vmem>>, vector<16x512xbf16>,
    %c0_22 = arith.constant 0 : index
    %c640 = arith.constant 640 : index
    %44 = vector.load %arg1[%c0_22, %c640] : memref<16x1024xf32, #tpu.memory_space<vmem>>, vector<16x128xf32>
    %45 = arith.addf %37, %44 : vector<16x128xf32>
    %46 = arith.truncf %44 : vector<16x128xf32> to vector<16x128xbf16>
    %cst_23 = arith.constant dense<0.000000e+00> : vector<16x512xf32>
    %47 = tpu.matmul %46, %0, %cst_23 {dimension_numbers = #tpu.dot_dimension_numbers<[1], [0], [0], [1], [0, 0, 1, 1], [], []>} : vector<16x128xbf16>, vector<128x512xbf16>, vector<16x512xf32> -> vector<16x512xf32>
    %48 = vector.broadcast %2 : vector<1x512xf32> to vector<16x512xf32>
    %49 = arith.addf %47, %48 : vector<16x512xf32>
    %50 = arith.truncf %49 : vector<16x512xf32> to vector<16x512xbf16>
    %c80 = arith.constant 80 : index
    %c0_24 = arith.constant 0 : index
    %51 = vector.load %arg6[%c80, %c0_24] : memref<128x512xbf16, #tpu.memory_space<vmem>>, vector<16x512xbf16>
    tpu.vector_store %arg6[%c80, %c0_24], %50 {strides = array<i32>} : memref<128x512xbf16, #tpu.memory_space<vmem>>, vector<16x512xbf16>,
    %c0_25 = arith.constant 0 : index
    %c768 = arith.constant 768 : index
    %52 = vector.load %arg1[%c0_25, %c768] : memref<16x1024xf32, #tpu.memory_space<vmem>>, vector<16x128xf32>
    %53 = arith.addf %45, %52 : vector<16x128xf32>
    %54 = arith.truncf %52 : vector<16x128xf32> to vector<16x128xbf16>
    %cst_26 = arith.constant dense<0.000000e+00> : vector<16x512xf32>
    %55 = tpu.matmul %54, %0, %cst_26 {dimension_numbers = #tpu.dot_dimension_numbers<[1], [0], [0], [1], [0, 0, 1, 1], [], []>} : vector<16x128xbf16>, vector<128x512xbf16>, vector<16x512xf32> -> vector<16x512xf32>
    %56 = vector.broadcast %2 : vector<1x512xf32> to vector<16x512xf32>
    %57 = arith.addf %55, %56 : vector<16x512xf32>
    %58 = arith.truncf %57 : vector<16x512xf32> to vector<16x512xbf16>
    %c96 = arith.constant 96 : index
    %c0_27 = arith.constant 0 : index
    %59 = vector.load %arg6[%c96, %c0_27] : memref<128x512xbf16, #tpu.memory_space<vmem>>, vector<16x512xbf16>
    tpu.vector_store %arg6[%c96, %c0_27], %58 {strides = array<i32>} : memref<128x512xbf16, #tpu.memory_space<vmem>>, vector<16x512xbf16>,
    %c0_28 = arith.constant 0 : index
    %c896 = arith.constant 896 : index
    %60 = vector.load %arg1[%c0_28, %c896] : memref<16x1024xf32, #tpu.memory_space<vmem>>, vector<16x128xf32>
    %61 = arith.addf %53, %60 : vector<16x128xf32>
    %62 = arith.truncf %60 : vector<16x128xf32> to vector<16x128xbf16>
    %cst_29 = arith.constant dense<0.000000e+00> : vector<16x512xf32>
    %63 = tpu.matmul %62, %0, %cst_29 {dimension_numbers = #tpu.dot_dimension_numbers<[1], [0], [0], [1], [0, 0, 1, 1], [], []>} : vector<16x128xbf16>, vector<128x512xbf16>, vector<16x512xf32> -> vector<16x512xf32>
    %64 = vector.broadcast %2 : vector<1x512xf32> to vector<16x512xf32>
    %65 = arith.addf %63, %64 : vector<16x512xf32>
    %66 = arith.truncf %65 : vector<16x512xf32> to vector<16x512xbf16>
    %c112 = arith.constant 112 : index
    %c0_30 = arith.constant 0 : index
    %67 = vector.load %arg6[%c112, %c0_30] : memref<128x512xbf16, #tpu.memory_space<vmem>>, vector<16x512xbf16>
    tpu.vector_store %arg6[%c112, %c0_30], %66 {strides = array<i32>} : memref<128x512xbf16, #tpu.memory_space<vmem>>, vector<16x512xbf16>,
    %cst_31 = arith.constant 1.250000e-01 : f32
    %68 = vector.broadcast %cst_31 : f32 to vector<16x128xf32>
    %69 = arith.mulf %61, %68 : vector<16x128xf32>
    %c0_32 = arith.constant 0 : index
    %c0_33 = arith.constant 0 : index
    %70 = vector.load %arg5[%c0_32, %c0_33] : memref<16x128xf32, #tpu.memory_space<vmem>>, vector<16x128xf32>
    tpu.vector_store %arg5[%c0_32, %c0_33], %69 {strides = array<i32>} : memref<16x128xf32, #tpu.memory_space<vmem>>, vector<16x128xf32>,
    %cst_34 = arith.constant 0.000000e+00 : f32
    %71 = vector.broadcast %cst_34 : f32 to vector<8x128xf32>
    %cst_35 = arith.constant 0.000000e+00 : f32
    %72 = vector.broadcast %cst_35 : f32 to vector<8x128xf32>
    %cst_36 = arith.constant 0.000000e+00 : f32
    %73 = vector.broadcast %cst_36 : f32 to vector<8x128xf32>
    %cst_37 = arith.constant 0.000000e+00 : f32
    %74 = vector.broadcast %cst_37 : f32 to vector<8x128xf32>
    %cst_38 = arith.constant 0.000000e+00 : f32
    %75 = vector.broadcast %cst_38 : f32 to vector<8x128xf32>
    %cst_39 = arith.constant 0.000000e+00 : f32
    %76 = vector.broadcast %cst_39 : f32 to vector<8x128xf32>
    %c0_i32 = arith.constant 0 : i32
    %c16_i32 = arith.constant 16 : i32
    %77 = arith.muli %c0_i32, %c16_i32 : i32
    %c0_i32_40 = arith.constant 0 : i32
    %78 = arith.addi %77, %c0_i32_40 : i32
    %79 = tpu.assume_multiple %78, 8 : i32
    %80 = arith.index_cast %79 : i32 to index
    %c0_41 = arith.constant 0 : index
    %81 = vector.load %arg6[%80, %c0_41] : memref<128x512xbf16, #tpu.memory_space<vmem>>, vector<8x512xbf16>
    %82 = arith.extf %81 : vector<8x512xbf16> to vector<8x512xf32>
    %83 = arith.truncf %71 : vector<8x128xf32> to vector<8x128xbf16>
    %cst_42 = arith.constant dense<0.000000e+00> : vector<8x512xf32>
    %84 = tpu.matmul %83, %1, %cst_42 {dimension_numbers = #tpu.dot_dimension_numbers<[1], [0], [0], [1], [0, 0, 1, 1], [], []>} : vector<8x128xbf16>, vector<128x512xbf16>, vector<8x512xf32> -> vector<8x512xf32>
    %85 = arith.addf %82, %84 : vector<8x512xf32>
    %86 = vector.extract_strided_slice %85 {offsets = [0, 0], sizes = [8, 128], strides = [1, 1]} : vector<8x512xf32> to vector<8x128xf32>
    %87 = arith.negf %86 : vector<8x128xf32>
    %88 = math.exp %87 : vector<8x128xf32>
    %cst_43 = arith.constant 1.000000e+00 : f32
    %89 = vector.broadcast %cst_43 : f32 to vector<8x128xf32>
    %90 = arith.addf %89, %88 : vector<8x128xf32>
    %91 = arith.divf %89, %90 : vector<8x128xf32>
    %92 = vector.extract_strided_slice %85 {offsets = [0, 128], sizes = [8, 128], strides = [1, 1]} : vector<8x512xf32> to vector<8x128xf32>
    %93 = arith.negf %92 : vector<8x128xf32>
    %94 = math.exp %93 : vector<8x128xf32>
    %cst_44 = arith.constant 1.000000e+00 : f32
    %95 = vector.broadcast %cst_44 : f32 to vector<8x128xf32>
    %96 = arith.addf %95, %94 : vector<8x128xf32>
    %97 = arith.divf %95, %96 : vector<8x128xf32>
    %98 = vector.extract_strided_slice %85 {offsets = [0, 256], sizes = [8, 128], strides = [1, 1]} : vector<8x512xf32> to vector<8x128xf32>
    %99 = math.tanh %98 : vector<8x128xf32>
    %100 = vector.extract_strided_slice %85 {offsets = [0, 384], sizes = [8, 128], strides = [1, 1]} : vector<8x512xf32> to vector<8x128xf32>
    %101 = arith.negf %100 : vector<8x128xf32>
    %102 = math.exp %101 : vector<8x128xf32>
    %cst_45 = arith.constant 1.000000e+00 : f32
    %103 = vector.broadcast %cst_45 : f32 to vector<8x128xf32>
    %104 = arith.addf %103, %102 : vector<8x128xf32>
    %105 = arith.divf %103, %104 : vector<8x128xf32>
    %106 = arith.mulf %97, %73 : vector<8x128xf32>
    %107 = arith.mulf %91, %99 : vector<8x128xf32>
    %108 = arith.addf %106, %107 : vector<8x128xf32>
    %109 = math.tanh %108 : vector<8x128xf32>
    %110 = arith.mulf %105, %109 : vector<8x128xf32>
    %111 = arith.addf %75, %110 : vector<8x128xf32>
    %c16_i32_46 = arith.constant 16 : i32
    %112 = arith.muli %c0_i32, %c16_i32_46 : i32
    %c8_i32 = arith.constant 8 : i32
    %113 = arith.addi %112, %c8_i32 : i32
    %114 = tpu.assume_multiple %113, 8 : i32
    %115 = arith.index_cast %114 : i32 to index
    %c0_47 = arith.constant 0 : index
    %116 = vector.load %arg6[%115, %c0_47] : memref<128x512xbf16, #tpu.memory_space<vmem>>, vector<8x512xbf16>
    %117 = arith.extf %116 : vector<8x512xbf16> to vector<8x512xf32>
    %118 = arith.truncf %72 : vector<8x128xf32> to vector<8x128xbf16>
    %cst_48 = arith.constant dense<0.000000e+00> : vector<8x512xf32>
    %119 = tpu.matmul %118, %1, %cst_48 {dimension_numbers = #tpu.dot_dimension_numbers<[1], [0], [0], [1], [0, 0, 1, 1], [], []>} : vector<8x128xbf16>, vector<128x512xbf16>, vector<8x512xf32> -> vector<8x512xf32>
    %120 = arith.addf %117, %119 : vector<8x512xf32>
    %121 = vector.extract_strided_slice %120 {offsets = [0, 0], sizes = [8, 128], strides = [1, 1]} : vector<8x512xf32> to vector<8x128xf32>
    %122 = arith.negf %121 : vector<8x128xf32>
    %123 = math.exp %122 : vector<8x128xf32>
    %cst_49 = arith.constant 1.000000e+00 : f32
    %124 = vector.broadcast %cst_49 : f32 to vector<8x128xf32>
    %125 = arith.addf %124, %123 : vector<8x128xf32>
    %126 = arith.divf %124, %125 : vector<8x128xf32>
    %127 = vector.extract_strided_slice %120 {offsets = [0, 128], sizes = [8, 128], strides = [1, 1]} : vector<8x512xf32> to vector<8x128xf32>
    %128 = arith.negf %127 : vector<8x128xf32>
    %129 = math.exp %128 : vector<8x128xf32>
    %cst_50 = arith.constant 1.000000e+00 : f32
    %130 = vector.broadcast %cst_50 : f32 to vector<8x128xf32>
    %131 = arith.addf %130, %129 : vector<8x128xf32>
    %132 = arith.divf %130, %131 : vector<8x128xf32>
    %133 = vector.extract_strided_slice %120 {offsets = [0, 256], sizes = [8, 128], strides = [1, 1]} : vector<8x512xf32> to vector<8x128xf32>
    %134 = math.tanh %133 : vector<8x128xf32>
    %135 = vector.extract_strided_slice %120 {offsets = [0, 384], sizes = [8, 128], strides = [1, 1]} : vector<8x512xf32> to vector<8x128xf32>
    %136 = arith.negf %135 : vector<8x128xf32>
    %137 = math.exp %136 : vector<8x128xf32>
    %cst_51 = arith.constant 1.000000e+00 : f32
    %138 = vector.broadcast %cst_51 : f32 to vector<8x128xf32>
    %139 = arith.addf %138, %137 : vector<8x128xf32>
    %140 = arith.divf %138, %139 : vector<8x128xf32>
    %141 = arith.mulf %132, %74 : vector<8x128xf32>
    %142 = arith.mulf %126, %134 : vector<8x128xf32>
    %143 = arith.addf %141, %142 : vector<8x128xf32>
    %144 = math.tanh %143 : vector<8x128xf32>
    %145 = arith.mulf %140, %144 : vector<8x128xf32>
    %146 = arith.addf %76, %145 : vector<8x128xf32>
    %c1_i32 = arith.constant 1 : i32
    %c16_i32_52 = arith.constant 16 : i32
    %147 = arith.muli %c1_i32, %c16_i32_52 : i32
    %c0_i32_53 = arith.constant 0 : i32
    %148 = arith.addi %147, %c0_i32_53 : i32
    %149 = tpu.assume_multiple %148, 8 : i32
    %150 = arith.index_cast %149 : i32 to index
    %c0_54 = arith.constant 0 : index
    %151 = vector.load %arg6[%150, %c0_54] : memref<128x512xbf16, #tpu.memory_space<vmem>>, vector<8x512xbf16>
    %152 = arith.extf %151 : vector<8x512xbf16> to vector<8x512xf32>
    %153 = arith.truncf %110 : vector<8x128xf32> to vector<8x128xbf16>
    %cst_55 = arith.constant dense<0.000000e+00> : vector<8x512xf32>
    %154 = tpu.matmul %153, %1, %cst_55 {dimension_numbers = #tpu.dot_dimension_numbers<[1], [0], [0], [1], [0, 0, 1, 1], [], []>} : vector<8x128xbf16>, vector<128x512xbf16>, vector<8x512xf32> -> vector<8x512xf32>
    %155 = arith.addf %152, %154 : vector<8x512xf32>
    %156 = vector.extract_strided_slice %155 {offsets = [0, 0], sizes = [8, 128], strides = [1, 1]} : vector<8x512xf32> to vector<8x128xf32>
    %157 = arith.negf %156 : vector<8x128xf32>
    %158 = math.exp %157 : vector<8x128xf32>
    %cst_56 = arith.constant 1.000000e+00 : f32
    %159 = vector.broadcast %cst_56 : f32 to vector<8x128xf32>
    %160 = arith.addf %159, %158 : vector<8x128xf32>
    %161 = arith.divf %159, %160 : vector<8x128xf32>
    %162 = vector.extract_strided_slice %155 {offsets = [0, 128], sizes = [8, 128], strides = [1, 1]} : vector<8x512xf32> to vector<8x128xf32>
    %163 = arith.negf %162 : vector<8x128xf32>
    %164 = math.exp %163 : vector<8x128xf32>
    %cst_57 = arith.constant 1.000000e+00 : f32
    %165 = vector.broadcast %cst_57 : f32 to vector<8x128xf32>
    %166 = arith.addf %165, %164 : vector<8x128xf32>
    %167 = arith.divf %165, %166 : vector<8x128xf32>
    %168 = vector.extract_strided_slice %155 {offsets = [0, 256], sizes = [8, 128], strides = [1, 1]} : vector<8x512xf32> to vector<8x128xf32>
    %169 = math.tanh %168 : vector<8x128xf32>
    %170 = vector.extract_strided_slice %155 {offsets = [0, 384], sizes = [8, 128], strides = [1, 1]} : vector<8x512xf32> to vector<8x128xf32>
    %171 = arith.negf %170 : vector<8x128xf32>
    %172 = math.exp %171 : vector<8x128xf32>
    %cst_58 = arith.constant 1.000000e+00 : f32
    %173 = vector.broadcast %cst_58 : f32 to vector<8x128xf32>
    %174 = arith.addf %173, %172 : vector<8x128xf32>
    %175 = arith.divf %173, %174 : vector<8x128xf32>
    %176 = arith.mulf %167, %108 : vector<8x128xf32>
    %177 = arith.mulf %161, %169 : vector<8x128xf32>
    %178 = arith.addf %176, %177 : vector<8x128xf32>
    %179 = math.tanh %178 : vector<8x128xf32>
    %180 = arith.mulf %175, %179 : vector<8x128xf32>
    %181 = arith.addf %111, %180 : vector<8x128xf32>
    %c16_i32_59 = arith.constant 16 : i32
    %182 = arith.muli %c1_i32, %c16_i32_59 : i32
    %c8_i32_60 = arith.constant 8 : i32
    %183 = arith.addi %182, %c8_i32_60 : i32
    %184 = tpu.assume_multiple %183, 8 : i32
    %185 = arith.index_cast %184 : i32 to index
    %c0_61 = arith.constant 0 : index
    %186 = vector.load %arg6[%185, %c0_61] : memref<128x512xbf16, #tpu.memory_space<vmem>>, vector<8x512xbf16>
    %187 = arith.extf %186 : vector<8x512xbf16> to vector<8x512xf32>
    %188 = arith.truncf %145 : vector<8x128xf32> to vector<8x128xbf16>
    %cst_62 = arith.constant dense<0.000000e+00> : vector<8x512xf32>
    %189 = tpu.matmul %188, %1, %cst_62 {dimension_numbers = #tpu.dot_dimension_numbers<[1], [0], [0], [1], [0, 0, 1, 1], [], []>} : vector<8x128xbf16>, vector<128x512xbf16>, vector<8x512xf32> -> vector<8x512xf32>
    %190 = arith.addf %187, %189 : vector<8x512xf32>
    %191 = vector.extract_strided_slice %190 {offsets = [0, 0], sizes = [8, 128], strides = [1, 1]} : vector<8x512xf32> to vector<8x128xf32>
    %192 = arith.negf %191 : vector<8x128xf32>
    %193 = math.exp %192 : vector<8x128xf32>
    %cst_63 = arith.constant 1.000000e+00 : f32
    %194 = vector.broadcast %cst_63 : f32 to vector<8x128xf32>
    %195 = arith.addf %194, %193 : vector<8x128xf32>
    %196 = arith.divf %194, %195 : vector<8x128xf32>
    %197 = vector.extract_strided_slice %190 {offsets = [0, 128], sizes = [8, 128], strides = [1, 1]} : vector<8x512xf32> to vector<8x128xf32>
    %198 = arith.negf %197 : vector<8x128xf32>
    %199 = math.exp %198 : vector<8x128xf32>
    %cst_64 = arith.constant 1.000000e+00 : f32
    %200 = vector.broadcast %cst_64 : f32 to vector<8x128xf32>
    %201 = arith.addf %200, %199 : vector<8x128xf32>
    %202 = arith.divf %200, %201 : vector<8x128xf32>
    %203 = vector.extract_strided_slice %190 {offsets = [0, 256], sizes = [8, 128], strides = [1, 1]} : vector<8x512xf32> to vector<8x128xf32>
    %204 = math.tanh %203 : vector<8x128xf32>
    %205 = vector.extract_strided_slice %190 {offsets = [0, 384], sizes = [8, 128], strides = [1, 1]} : vector<8x512xf32> to vector<8x128xf32>
    %206 = arith.negf %205 : vector<8x128xf32>
    %207 = math.exp %206 : vector<8x128xf32>
    %cst_65 = arith.constant 1.000000e+00 : f32
    %208 = vector.broadcast %cst_65 : f32 to vector<8x128xf32>
    %209 = arith.addf %208, %207 : vector<8x128xf32>
    %210 = arith.divf %208, %209 : vector<8x128xf32>
    %211 = arith.mulf %202, %143 : vector<8x128xf32>
    %212 = arith.mulf %196, %204 : vector<8x128xf32>
    %213 = arith.addf %211, %212 : vector<8x128xf32>
    %214 = math.tanh %213 : vector<8x128xf32>
    %215 = arith.mulf %210, %214 : vector<8x128xf32>
    %216 = arith.addf %146, %215 : vector<8x128xf32>
    %c2_i32 = arith.constant 2 : i32
    %c16_i32_66 = arith.constant 16 : i32
    %217 = arith.muli %c2_i32, %c16_i32_66 : i32
    %c0_i32_67 = arith.constant 0 : i32
    %218 = arith.addi %217, %c0_i32_67 : i32
    %219 = tpu.assume_multiple %218, 8 : i32
    %220 = arith.index_cast %219 : i32 to index
    %c0_68 = arith.constant 0 : index
    %221 = vector.load %arg6[%220, %c0_68] : memref<128x512xbf16, #tpu.memory_space<vmem>>, vector<8x512xbf16>
    %222 = arith.extf %221 : vector<8x512xbf16> to vector<8x512xf32>
    %223 = arith.truncf %180 : vector<8x128xf32> to vector<8x128xbf16>
    %cst_69 = arith.constant dense<0.000000e+00> : vector<8x512xf32>
    %224 = tpu.matmul %223, %1, %cst_69 {dimension_numbers = #tpu.dot_dimension_numbers<[1], [0], [0], [1], [0, 0, 1, 1], [], []>} : vector<8x128xbf16>, vector<128x512xbf16>, vector<8x512xf32> -> vector<8x512xf32>
    %225 = arith.addf %222, %224 : vector<8x512xf32>
    %226 = vector.extract_strided_slice %225 {offsets = [0, 0], sizes = [8, 128], strides = [1, 1]} : vector<8x512xf32> to vector<8x128xf32>
    %227 = arith.negf %226 : vector<8x128xf32>
    %228 = math.exp %227 : vector<8x128xf32>
    %cst_70 = arith.constant 1.000000e+00 : f32
    %229 = vector.broadcast %cst_70 : f32 to vector<8x128xf32>
    %230 = arith.addf %229, %228 : vector<8x128xf32>
    %231 = arith.divf %229, %230 : vector<8x128xf32>
    %232 = vector.extract_strided_slice %225 {offsets = [0, 128], sizes = [8, 128], strides = [1, 1]} : vector<8x512xf32> to vector<8x128xf32>
    %233 = arith.negf %232 : vector<8x128xf32>
    %234 = math.exp %233 : vector<8x128xf32>
    %cst_71 = arith.constant 1.000000e+00 : f32
    %235 = vector.broadcast %cst_71 : f32 to vector<8x128xf32>
    %236 = arith.addf %235, %234 : vector<8x128xf32>
    %237 = arith.divf %235, %236 : vector<8x128xf32>
    %238 = vector.extract_strided_slice %225 {offsets = [0, 256], sizes = [8, 128], strides = [1, 1]} : vector<8x512xf32> to vector<8x128xf32>
    %239 = math.tanh %238 : vector<8x128xf32>
    %240 = vector.extract_strided_slice %225 {offsets = [0, 384], sizes = [8, 128], strides = [1, 1]} : vector<8x512xf32> to vector<8x128xf32>
    %241 = arith.negf %240 : vector<8x128xf32>
    %242 = math.exp %241 : vector<8x128xf32>
    %cst_72 = arith.constant 1.000000e+00 : f32
    %243 = vector.broadcast %cst_72 : f32 to vector<8x128xf32>
    %244 = arith.addf %243, %242 : vector<8x128xf32>
    %245 = arith.divf %243, %244 : vector<8x128xf32>
    %246 = arith.mulf %237, %178 : vector<8x128xf32>
    %247 = arith.mulf %231, %239 : vector<8x128xf32>
    %248 = arith.addf %246, %247 : vector<8x128xf32>
    %249 = math.tanh %248 : vector<8x128xf32>
    %250 = arith.mulf %245, %249 : vector<8x128xf32>
    %251 = arith.addf %181, %250 : vector<8x128xf32>
    %c16_i32_73 = arith.constant 16 : i32
    %252 = arith.muli %c2_i32, %c16_i32_73 : i32
    %c8_i32_74 = arith.constant 8 : i32
    %253 = arith.addi %252, %c8_i32_74 : i32
    %254 = tpu.assume_multiple %253, 8 : i32
    %255 = arith.index_cast %254 : i32 to index
    %c0_75 = arith.constant 0 : index
    %256 = vector.load %arg6[%255, %c0_75] : memref<128x512xbf16, #tpu.memory_space<vmem>>, vector<8x512xbf16>
    %257 = arith.extf %256 : vector<8x512xbf16> to vector<8x512xf32>
    %258 = arith.truncf %215 : vector<8x128xf32> to vector<8x128xbf16>
    %cst_76 = arith.constant dense<0.000000e+00> : vector<8x512xf32>
    %259 = tpu.matmul %258, %1, %cst_76 {dimension_numbers = #tpu.dot_dimension_numbers<[1], [0], [0], [1], [0, 0, 1, 1], [], []>} : vector<8x128xbf16>, vector<128x512xbf16>, vector<8x512xf32> -> vector<8x512xf32>
    %260 = arith.addf %257, %259 : vector<8x512xf32>
    %261 = vector.extract_strided_slice %260 {offsets = [0, 0], sizes = [8, 128], strides = [1, 1]} : vector<8x512xf32> to vector<8x128xf32>
    %262 = arith.negf %261 : vector<8x128xf32>
    %263 = math.exp %262 : vector<8x128xf32>
    %cst_77 = arith.constant 1.000000e+00 : f32
    %264 = vector.broadcast %cst_77 : f32 to vector<8x128xf32>
    %265 = arith.addf %264, %263 : vector<8x128xf32>
    %266 = arith.divf %264, %265 : vector<8x128xf32>
    %267 = vector.extract_strided_slice %260 {offsets = [0, 128], sizes = [8, 128], strides = [1, 1]} : vector<8x512xf32> to vector<8x128xf32>
    %268 = arith.negf %267 : vector<8x128xf32>
    %269 = math.exp %268 : vector<8x128xf32>
    %cst_78 = arith.constant 1.000000e+00 : f32
    %270 = vector.broadcast %cst_78 : f32 to vector<8x128xf32>
    %271 = arith.addf %270, %269 : vector<8x128xf32>
    %272 = arith.divf %270, %271 : vector<8x128xf32>
    %273 = vector.extract_strided_slice %260 {offsets = [0, 256], sizes = [8, 128], strides = [1, 1]} : vector<8x512xf32> to vector<8x128xf32>
    %274 = math.tanh %273 : vector<8x128xf32>
    %275 = vector.extract_strided_slice %260 {offsets = [0, 384], sizes = [8, 128], strides = [1, 1]} : vector<8x512xf32> to vector<8x128xf32>
    %276 = arith.negf %275 : vector<8x128xf32>
    %277 = math.exp %276 : vector<8x128xf32>
    %cst_79 = arith.constant 1.000000e+00 : f32
    %278 = vector.broadcast %cst_79 : f32 to vector<8x128xf32>
    %279 = arith.addf %278, %277 : vector<8x128xf32>
    %280 = arith.divf %278, %279 : vector<8x128xf32>
    %281 = arith.mulf %272, %213 : vector<8x128xf32>
    %282 = arith.mulf %266, %274 : vector<8x128xf32>
    %283 = arith.addf %281, %282 : vector<8x128xf32>
    %284 = math.tanh %283 : vector<8x128xf32>
    %285 = arith.mulf %280, %284 : vector<8x128xf32>
    %286 = arith.addf %216, %285 : vector<8x128xf32>
    %c3_i32 = arith.constant 3 : i32
    %c16_i32_80 = arith.constant 16 : i32
    %287 = arith.muli %c3_i32, %c16_i32_80 : i32
    %c0_i32_81 = arith.constant 0 : i32
    %288 = arith.addi %287, %c0_i32_81 : i32
    %289 = tpu.assume_multiple %288, 8 : i32
    %290 = arith.index_cast %289 : i32 to index
    %c0_82 = arith.constant 0 : index
    %291 = vector.load %arg6[%290, %c0_82] : memref<128x512xbf16, #tpu.memory_space<vmem>>, vector<8x512xbf16>
    %292 = arith.extf %291 : vector<8x512xbf16> to vector<8x512xf32>
    %293 = arith.truncf %250 : vector<8x128xf32> to vector<8x128xbf16>
    %cst_83 = arith.constant dense<0.000000e+00> : vector<8x512xf32>
    %294 = tpu.matmul %293, %1, %cst_83 {dimension_numbers = #tpu.dot_dimension_numbers<[1], [0], [0], [1], [0, 0, 1, 1], [], []>} : vector<8x128xbf16>, vector<128x512xbf16>, vector<8x512xf32> -> vector<8x512xf32>
    %295 = arith.addf %292, %294 : vector<8x512xf32>
    %296 = vector.extract_strided_slice %295 {offsets = [0, 0], sizes = [8, 128], strides = [1, 1]} : vector<8x512xf32> to vector<8x128xf32>
    %297 = arith.negf %296 : vector<8x128xf32>
    %298 = math.exp %297 : vector<8x128xf32>
    %cst_84 = arith.constant 1.000000e+00 : f32
    %299 = vector.broadcast %cst_84 : f32 to vector<8x128xf32>
    %300 = arith.addf %299, %298 : vector<8x128xf32>
    %301 = arith.divf %299, %300 : vector<8x128xf32>
    %302 = vector.extract_strided_slice %295 {offsets = [0, 128], sizes = [8, 128], strides = [1, 1]} : vector<8x512xf32> to vector<8x128xf32>
    %303 = arith.negf %302 : vector<8x128xf32>
    %304 = math.exp %303 : vector<8x128xf32>
    %cst_85 = arith.constant 1.000000e+00 : f32
    %305 = vector.broadcast %cst_85 : f32 to vector<8x128xf32>
    %306 = arith.addf %305, %304 : vector<8x128xf32>
    %307 = arith.divf %305, %306 : vector<8x128xf32>
    %308 = vector.extract_strided_slice %295 {offsets = [0, 256], sizes = [8, 128], strides = [1, 1]} : vector<8x512xf32> to vector<8x128xf32>
    %309 = math.tanh %308 : vector<8x128xf32>
    %310 = vector.extract_strided_slice %295 {offsets = [0, 384], sizes = [8, 128], strides = [1, 1]} : vector<8x512xf32> to vector<8x128xf32>
    %311 = arith.negf %310 : vector<8x128xf32>
    %312 = math.exp %311 : vector<8x128xf32>
    %cst_86 = arith.constant 1.000000e+00 : f32
    %313 = vector.broadcast %cst_86 : f32 to vector<8x128xf32>
    %314 = arith.addf %313, %312 : vector<8x128xf32>
    %315 = arith.divf %313, %314 : vector<8x128xf32>
    %316 = arith.mulf %307, %248 : vector<8x128xf32>
    %317 = arith.mulf %301, %309 : vector<8x128xf32>
    %318 = arith.addf %316, %317 : vector<8x128xf32>
    %319 = math.tanh %318 : vector<8x128xf32>
    %320 = arith.mulf %315, %319 : vector<8x128xf32>
    %321 = arith.addf %251, %320 : vector<8x128xf32>
    %c16_i32_87 = arith.constant 16 : i32
    %322 = arith.muli %c3_i32, %c16_i32_87 : i32
    %c8_i32_88 = arith.constant 8 : i32
    %323 = arith.addi %322, %c8_i32_88 : i32
    %324 = tpu.assume_multiple %323, 8 : i32
    %325 = arith.index_cast %324 : i32 to index
    %c0_89 = arith.constant 0 : index
    %326 = vector.load %arg6[%325, %c0_89] : memref<128x512xbf16, #tpu.memory_space<vmem>>, vector<8x512xbf16>
    %327 = arith.extf %326 : vector<8x512xbf16> to vector<8x512xf32>
    %328 = arith.truncf %285 : vector<8x128xf32> to vector<8x128xbf16>
    %cst_90 = arith.constant dense<0.000000e+00> : vector<8x512xf32>
    %329 = tpu.matmul %328, %1, %cst_90 {dimension_numbers = #tpu.dot_dimension_numbers<[1], [0], [0], [1], [0, 0, 1, 1], [], []>} : vector<8x128xbf16>, vector<128x512xbf16>, vector<8x512xf32> -> vector<8x512xf32>
    %330 = arith.addf %327, %329 : vector<8x512xf32>
    %331 = vector.extract_strided_slice %330 {offsets = [0, 0], sizes = [8, 128], strides = [1, 1]} : vector<8x512xf32> to vector<8x128xf32>
    %332 = arith.negf %331 : vector<8x128xf32>
    %333 = math.exp %332 : vector<8x128xf32>
    %cst_91 = arith.constant 1.000000e+00 : f32
    %334 = vector.broadcast %cst_91 : f32 to vector<8x128xf32>
    %335 = arith.addf %334, %333 : vector<8x128xf32>
    %336 = arith.divf %334, %335 : vector<8x128xf32>
    %337 = vector.extract_strided_slice %330 {offsets = [0, 128], sizes = [8, 128], strides = [1, 1]} : vector<8x512xf32> to vector<8x128xf32>
    %338 = arith.negf %337 : vector<8x128xf32>
    %339 = math.exp %338 : vector<8x128xf32>
    %cst_92 = arith.constant 1.000000e+00 : f32
    %340 = vector.broadcast %cst_92 : f32 to vector<8x128xf32>
    %341 = arith.addf %340, %339 : vector<8x128xf32>
    %342 = arith.divf %340, %341 : vector<8x128xf32>
    %343 = vector.extract_strided_slice %330 {offsets = [0, 256], sizes = [8, 128], strides = [1, 1]} : vector<8x512xf32> to vector<8x128xf32>
    %344 = math.tanh %343 : vector<8x128xf32>
    %345 = vector.extract_strided_slice %330 {offsets = [0, 384], sizes = [8, 128], strides = [1, 1]} : vector<8x512xf32> to vector<8x128xf32>
    %346 = arith.negf %345 : vector<8x128xf32>
    %347 = math.exp %346 : vector<8x128xf32>
    %cst_93 = arith.constant 1.000000e+00 : f32
    %348 = vector.broadcast %cst_93 : f32 to vector<8x128xf32>
    %349 = arith.addf %348, %347 : vector<8x128xf32>
    %350 = arith.divf %348, %349 : vector<8x128xf32>
    %351 = arith.mulf %342, %283 : vector<8x128xf32>
    %352 = arith.mulf %336, %344 : vector<8x128xf32>
    %353 = arith.addf %351, %352 : vector<8x128xf32>
    %354 = math.tanh %353 : vector<8x128xf32>
    %355 = arith.mulf %350, %354 : vector<8x128xf32>
    %356 = arith.addf %286, %355 : vector<8x128xf32>
    %c4_i32 = arith.constant 4 : i32
    %c16_i32_94 = arith.constant 16 : i32
    %357 = arith.muli %c4_i32, %c16_i32_94 : i32
    %c0_i32_95 = arith.constant 0 : i32
    %358 = arith.addi %357, %c0_i32_95 : i32
    %359 = tpu.assume_multiple %358, 8 : i32
    %360 = arith.index_cast %359 : i32 to index
    %c0_96 = arith.constant 0 : index
    %361 = vector.load %arg6[%360, %c0_96] : memref<128x512xbf16, #tpu.memory_space<vmem>>, vector<8x512xbf16>
    %362 = arith.extf %361 : vector<8x512xbf16> to vector<8x512xf32>
    %363 = arith.truncf %320 : vector<8x128xf32> to vector<8x128xbf16>
    %cst_97 = arith.constant dense<0.000000e+00> : vector<8x512xf32>
    %364 = tpu.matmul %363, %1, %cst_97 {dimension_numbers = #tpu.dot_dimension_numbers<[1], [0], [0], [1], [0, 0, 1, 1], [], []>} : vector<8x128xbf16>, vector<128x512xbf16>, vector<8x512xf32> -> vector<8x512xf32>
    %365 = arith.addf %362, %364 : vector<8x512xf32>
    %366 = vector.extract_strided_slice %365 {offsets = [0, 0], sizes = [8, 128], strides = [1, 1]} : vector<8x512xf32> to vector<8x128xf32>
    %367 = arith.negf %366 : vector<8x128xf32>
    %368 = math.exp %367 : vector<8x128xf32>
    %cst_98 = arith.constant 1.000000e+00 : f32
    %369 = vector.broadcast %cst_98 : f32 to vector<8x128xf32>
    %370 = arith.addf %369, %368 : vector<8x128xf32>
    %371 = arith.divf %369, %370 : vector<8x128xf32>
    %372 = vector.extract_strided_slice %365 {offsets = [0, 128], sizes = [8, 128], strides = [1, 1]} : vector<8x512xf32> to vector<8x128xf32>
    %373 = arith.negf %372 : vector<8x128xf32>
    %374 = math.exp %373 : vector<8x128xf32>
    %cst_99 = arith.constant 1.000000e+00 : f32
    %375 = vector.broadcast %cst_99 : f32 to vector<8x128xf32>
    %376 = arith.addf %375, %374 : vector<8x128xf32>
    %377 = arith.divf %375, %376 : vector<8x128xf32>
    %378 = vector.extract_strided_slice %365 {offsets = [0, 256], sizes = [8, 128], strides = [1, 1]} : vector<8x512xf32> to vector<8x128xf32>
    %379 = math.tanh %378 : vector<8x128xf32>
    %380 = vector.extract_strided_slice %365 {offsets = [0, 384], sizes = [8, 128], strides = [1, 1]} : vector<8x512xf32> to vector<8x128xf32>
    %381 = arith.negf %380 : vector<8x128xf32>
    %382 = math.exp %381 : vector<8x128xf32>
    %cst_100 = arith.constant 1.000000e+00 : f32
    %383 = vector.broadcast %cst_100 : f32 to vector<8x128xf32>
    %384 = arith.addf %383, %382 : vector<8x128xf32>
    %385 = arith.divf %383, %384 : vector<8x128xf32>
    %386 = arith.mulf %377, %318 : vector<8x128xf32>
    %387 = arith.mulf %371, %379 : vector<8x128xf32>
    %388 = arith.addf %386, %387 : vector<8x128xf32>
    %389 = math.tanh %388 : vector<8x128xf32>
    %390 = arith.mulf %385, %389 : vector<8x128xf32>
    %391 = arith.addf %321, %390 : vector<8x128xf32>
    %c16_i32_101 = arith.constant 16 : i32
    %392 = arith.muli %c4_i32, %c16_i32_101 : i32
    %c8_i32_102 = arith.constant 8 : i32
    %393 = arith.addi %392, %c8_i32_102 : i32
    %394 = tpu.assume_multiple %393, 8 : i32
    %395 = arith.index_cast %394 : i32 to index
    %c0_103 = arith.constant 0 : index
    %396 = vector.load %arg6[%395, %c0_103] : memref<128x512xbf16, #tpu.memory_space<vmem>>, vector<8x512xbf16>
    %397 = arith.extf %396 : vector<8x512xbf16> to vector<8x512xf32>
    %398 = arith.truncf %355 : vector<8x128xf32> to vector<8x128xbf16>
    %cst_104 = arith.constant dense<0.000000e+00> : vector<8x512xf32>
    %399 = tpu.matmul %398, %1, %cst_104 {dimension_numbers = #tpu.dot_dimension_numbers<[1], [0], [0], [1], [0, 0, 1, 1], [], []>} : vector<8x128xbf16>, vector<128x512xbf16>, vector<8x512xf32> -> vector<8x512xf32>
    %400 = arith.addf %397, %399 : vector<8x512xf32>
    %401 = vector.extract_strided_slice %400 {offsets = [0, 0], sizes = [8, 128], strides = [1, 1]} : vector<8x512xf32> to vector<8x128xf32>
    %402 = arith.negf %401 : vector<8x128xf32>
    %403 = math.exp %402 : vector<8x128xf32>
    %cst_105 = arith.constant 1.000000e+00 : f32
    %404 = vector.broadcast %cst_105 : f32 to vector<8x128xf32>
    %405 = arith.addf %404, %403 : vector<8x128xf32>
    %406 = arith.divf %404, %405 : vector<8x128xf32>
    %407 = vector.extract_strided_slice %400 {offsets = [0, 128], sizes = [8, 128], strides = [1, 1]} : vector<8x512xf32> to vector<8x128xf32>
    %408 = arith.negf %407 : vector<8x128xf32>
    %409 = math.exp %408 : vector<8x128xf32>
    %cst_106 = arith.constant 1.000000e+00 : f32
    %410 = vector.broadcast %cst_106 : f32 to vector<8x128xf32>
    %411 = arith.addf %410, %409 : vector<8x128xf32>
    %412 = arith.divf %410, %411 : vector<8x128xf32>
    %413 = vector.extract_strided_slice %400 {offsets = [0, 256], sizes = [8, 128], strides = [1, 1]} : vector<8x512xf32> to vector<8x128xf32>
    %414 = math.tanh %413 : vector<8x128xf32>
    %415 = vector.extract_strided_slice %400 {offsets = [0, 384], sizes = [8, 128], strides = [1, 1]} : vector<8x512xf32> to vector<8x128xf32>
    %416 = arith.negf %415 : vector<8x128xf32>
    %417 = math.exp %416 : vector<8x128xf32>
    %cst_107 = arith.constant 1.000000e+00 : f32
    %418 = vector.broadcast %cst_107 : f32 to vector<8x128xf32>
    %419 = arith.addf %418, %417 : vector<8x128xf32>
    %420 = arith.divf %418, %419 : vector<8x128xf32>
    %421 = arith.mulf %412, %353 : vector<8x128xf32>
    %422 = arith.mulf %406, %414 : vector<8x128xf32>
    %423 = arith.addf %421, %422 : vector<8x128xf32>
    %424 = math.tanh %423 : vector<8x128xf32>
    %425 = arith.mulf %420, %424 : vector<8x128xf32>
    %426 = arith.addf %356, %425 : vector<8x128xf32>
    %c5_i32 = arith.constant 5 : i32
    %c16_i32_108 = arith.constant 16 : i32
    %427 = arith.muli %c5_i32, %c16_i32_108 : i32
    %c0_i32_109 = arith.constant 0 : i32
    %428 = arith.addi %427, %c0_i32_109 : i32
    %429 = tpu.assume_multiple %428, 8 : i32
    %430 = arith.index_cast %429 : i32 to index
    %c0_110 = arith.constant 0 : index
    %431 = vector.load %arg6[%430, %c0_110] : memref<128x512xbf16, #tpu.memory_space<vmem>>, vector<8x512xbf16>
    %432 = arith.extf %431 : vector<8x512xbf16> to vector<8x512xf32>
    %433 = arith.truncf %390 : vector<8x128xf32> to vector<8x128xbf16>
    %cst_111 = arith.constant dense<0.000000e+00> : vector<8x512xf32>
    %434 = tpu.matmul %433, %1, %cst_111 {dimension_numbers = #tpu.dot_dimension_numbers<[1], [0], [0], [1], [0, 0, 1, 1], [], []>} : vector<8x128xbf16>, vector<128x512xbf16>, vector<8x512xf32> -> vector<8x512xf32>
    %435 = arith.addf %432, %434 : vector<8x512xf32>
    %436 = vector.extract_strided_slice %435 {offsets = [0, 0], sizes = [8, 128], strides = [1, 1]} : vector<8x512xf32> to vector<8x128xf32>
    %437 = arith.negf %436 : vector<8x128xf32>
    %438 = math.exp %437 : vector<8x128xf32>
    %cst_112 = arith.constant 1.000000e+00 : f32
    %439 = vector.broadcast %cst_112 : f32 to vector<8x128xf32>
    %440 = arith.addf %439, %438 : vector<8x128xf32>
    %441 = arith.divf %439, %440 : vector<8x128xf32>
    %442 = vector.extract_strided_slice %435 {offsets = [0, 128], sizes = [8, 128], strides = [1, 1]} : vector<8x512xf32> to vector<8x128xf32>
    %443 = arith.negf %442 : vector<8x128xf32>
    %444 = math.exp %443 : vector<8x128xf32>
    %cst_113 = arith.constant 1.000000e+00 : f32
    %445 = vector.broadcast %cst_113 : f32 to vector<8x128xf32>
    %446 = arith.addf %445, %444 : vector<8x128xf32>
    %447 = arith.divf %445, %446 : vector<8x128xf32>
    %448 = vector.extract_strided_slice %435 {offsets = [0, 256], sizes = [8, 128], strides = [1, 1]} : vector<8x512xf32> to vector<8x128xf32>
    %449 = math.tanh %448 : vector<8x128xf32>
    %450 = vector.extract_strided_slice %435 {offsets = [0, 384], sizes = [8, 128], strides = [1, 1]} : vector<8x512xf32> to vector<8x128xf32>
    %451 = arith.negf %450 : vector<8x128xf32>
    %452 = math.exp %451 : vector<8x128xf32>
    %cst_114 = arith.constant 1.000000e+00 : f32
    %453 = vector.broadcast %cst_114 : f32 to vector<8x128xf32>
    %454 = arith.addf %453, %452 : vector<8x128xf32>
    %455 = arith.divf %453, %454 : vector<8x128xf32>
    %456 = arith.mulf %447, %388 : vector<8x128xf32>
    %457 = arith.mulf %441, %449 : vector<8x128xf32>
    %458 = arith.addf %456, %457 : vector<8x128xf32>
    %459 = math.tanh %458 : vector<8x128xf32>
    %460 = arith.mulf %455, %459 : vector<8x128xf32>
    %461 = arith.addf %391, %460 : vector<8x128xf32>
    %c16_i32_115 = arith.constant 16 : i32
    %462 = arith.muli %c5_i32, %c16_i32_115 : i32
    %c8_i32_116 = arith.constant 8 : i32
    %463 = arith.addi %462, %c8_i32_116 : i32
    %464 = tpu.assume_multiple %463, 8 : i32
    %465 = arith.index_cast %464 : i32 to index
    %c0_117 = arith.constant 0 : index
    %466 = vector.load %arg6[%465, %c0_117] : memref<128x512xbf16, #tpu.memory_space<vmem>>, vector<8x512xbf16>
    %467 = arith.extf %466 : vector<8x512xbf16> to vector<8x512xf32>
    %468 = arith.truncf %425 : vector<8x128xf32> to vector<8x128xbf16>
    %cst_118 = arith.constant dense<0.000000e+00> : vector<8x512xf32>
    %469 = tpu.matmul %468, %1, %cst_118 {dimension_numbers = #tpu.dot_dimension_numbers<[1], [0], [0], [1], [0, 0, 1, 1], [], []>} : vector<8x128xbf16>, vector<128x512xbf16>, vector<8x512xf32> -> vector<8x512xf32>
    %470 = arith.addf %467, %469 : vector<8x512xf32>
    %471 = vector.extract_strided_slice %470 {offsets = [0, 0], sizes = [8, 128], strides = [1, 1]} : vector<8x512xf32> to vector<8x128xf32>
    %472 = arith.negf %471 : vector<8x128xf32>
    %473 = math.exp %472 : vector<8x128xf32>
    %cst_119 = arith.constant 1.000000e+00 : f32
    %474 = vector.broadcast %cst_119 : f32 to vector<8x128xf32>
    %475 = arith.addf %474, %473 : vector<8x128xf32>
    %476 = arith.divf %474, %475 : vector<8x128xf32>
    %477 = vector.extract_strided_slice %470 {offsets = [0, 128], sizes = [8, 128], strides = [1, 1]} : vector<8x512xf32> to vector<8x128xf32>
    %478 = arith.negf %477 : vector<8x128xf32>
    %479 = math.exp %478 : vector<8x128xf32>
    %cst_120 = arith.constant 1.000000e+00 : f32
    %480 = vector.broadcast %cst_120 : f32 to vector<8x128xf32>
    %481 = arith.addf %480, %479 : vector<8x128xf32>
    %482 = arith.divf %480, %481 : vector<8x128xf32>
    %483 = vector.extract_strided_slice %470 {offsets = [0, 256], sizes = [8, 128], strides = [1, 1]} : vector<8x512xf32> to vector<8x128xf32>
    %484 = math.tanh %483 : vector<8x128xf32>
    %485 = vector.extract_strided_slice %470 {offsets = [0, 384], sizes = [8, 128], strides = [1, 1]} : vector<8x512xf32> to vector<8x128xf32>
    %486 = arith.negf %485 : vector<8x128xf32>
    %487 = math.exp %486 : vector<8x128xf32>
    %cst_121 = arith.constant 1.000000e+00 : f32
    %488 = vector.broadcast %cst_121 : f32 to vector<8x128xf32>
    %489 = arith.addf %488, %487 : vector<8x128xf32>
    %490 = arith.divf %488, %489 : vector<8x128xf32>
    %491 = arith.mulf %482, %423 : vector<8x128xf32>
    %492 = arith.mulf %476, %484 : vector<8x128xf32>
    %493 = arith.addf %491, %492 : vector<8x128xf32>
    %494 = math.tanh %493 : vector<8x128xf32>
    %495 = arith.mulf %490, %494 : vector<8x128xf32>
    %496 = arith.addf %426, %495 : vector<8x128xf32>
    %c6_i32 = arith.constant 6 : i32
    %c16_i32_122 = arith.constant 16 : i32
    %497 = arith.muli %c6_i32, %c16_i32_122 : i32
    %c0_i32_123 = arith.constant 0 : i32
    %498 = arith.addi %497, %c0_i32_123 : i32
    %499 = tpu.assume_multiple %498, 8 : i32
    %500 = arith.index_cast %499 : i32 to index
    %c0_124 = arith.constant 0 : index
    %501 = vector.load %arg6[%500, %c0_124] : memref<128x512xbf16, #tpu.memory_space<vmem>>, vector<8x512xbf16>
    %502 = arith.extf %501 : vector<8x512xbf16> to vector<8x512xf32>
    %503 = arith.truncf %460 : vector<8x128xf32> to vector<8x128xbf16>
    %cst_125 = arith.constant dense<0.000000e+00> : vector<8x512xf32>
    %504 = tpu.matmul %503, %1, %cst_125 {dimension_numbers = #tpu.dot_dimension_numbers<[1], [0], [0], [1], [0, 0, 1, 1], [], []>} : vector<8x128xbf16>, vector<128x512xbf16>, vector<8x512xf32> -> vector<8x512xf32>
    %505 = arith.addf %502, %504 : vector<8x512xf32>
    %506 = vector.extract_strided_slice %505 {offsets = [0, 0], sizes = [8, 128], strides = [1, 1]} : vector<8x512xf32> to vector<8x128xf32>
    %507 = arith.negf %506 : vector<8x128xf32>
    %508 = math.exp %507 : vector<8x128xf32>
    %cst_126 = arith.constant 1.000000e+00 : f32
    %509 = vector.broadcast %cst_126 : f32 to vector<8x128xf32>
    %510 = arith.addf %509, %508 : vector<8x128xf32>
    %511 = arith.divf %509, %510 : vector<8x128xf32>
    %512 = vector.extract_strided_slice %505 {offsets = [0, 128], sizes = [8, 128], strides = [1, 1]} : vector<8x512xf32> to vector<8x128xf32>
    %513 = arith.negf %512 : vector<8x128xf32>
    %514 = math.exp %513 : vector<8x128xf32>
    %cst_127 = arith.constant 1.000000e+00 : f32
    %515 = vector.broadcast %cst_127 : f32 to vector<8x128xf32>
    %516 = arith.addf %515, %514 : vector<8x128xf32>
    %517 = arith.divf %515, %516 : vector<8x128xf32>
    %518 = vector.extract_strided_slice %505 {offsets = [0, 256], sizes = [8, 128], strides = [1, 1]} : vector<8x512xf32> to vector<8x128xf32>
    %519 = math.tanh %518 : vector<8x128xf32>
    %520 = vector.extract_strided_slice %505 {offsets = [0, 384], sizes = [8, 128], strides = [1, 1]} : vector<8x512xf32> to vector<8x128xf32>
    %521 = arith.negf %520 : vector<8x128xf32>
    %522 = math.exp %521 : vector<8x128xf32>
    %cst_128 = arith.constant 1.000000e+00 : f32
    %523 = vector.broadcast %cst_128 : f32 to vector<8x128xf32>
    %524 = arith.addf %523, %522 : vector<8x128xf32>
    %525 = arith.divf %523, %524 : vector<8x128xf32>
    %526 = arith.mulf %517, %458 : vector<8x128xf32>
    %527 = arith.mulf %511, %519 : vector<8x128xf32>
    %528 = arith.addf %526, %527 : vector<8x128xf32>
    %529 = math.tanh %528 : vector<8x128xf32>
    %530 = arith.mulf %525, %529 : vector<8x128xf32>
    %531 = arith.addf %461, %530 : vector<8x128xf32>
    %c16_i32_129 = arith.constant 16 : i32
    %532 = arith.muli %c6_i32, %c16_i32_129 : i32
    %c8_i32_130 = arith.constant 8 : i32
    %533 = arith.addi %532, %c8_i32_130 : i32
    %534 = tpu.assume_multiple %533, 8 : i32
    %535 = arith.index_cast %534 : i32 to index
    %c0_131 = arith.constant 0 : index
    %536 = vector.load %arg6[%535, %c0_131] : memref<128x512xbf16, #tpu.memory_space<vmem>>, vector<8x512xbf16>
    %537 = arith.extf %536 : vector<8x512xbf16> to vector<8x512xf32>
    %538 = arith.truncf %495 : vector<8x128xf32> to vector<8x128xbf16>
    %cst_132 = arith.constant dense<0.000000e+00> : vector<8x512xf32>
    %539 = tpu.matmul %538, %1, %cst_132 {dimension_numbers = #tpu.dot_dimension_numbers<[1], [0], [0], [1], [0, 0, 1, 1], [], []>} : vector<8x128xbf16>, vector<128x512xbf16>, vector<8x512xf32> -> vector<8x512xf32>
    %540 = arith.addf %537, %539 : vector<8x512xf32>
    %541 = vector.extract_strided_slice %540 {offsets = [0, 0], sizes = [8, 128], strides = [1, 1]} : vector<8x512xf32> to vector<8x128xf32>
    %542 = arith.negf %541 : vector<8x128xf32>
    %543 = math.exp %542 : vector<8x128xf32>
    %cst_133 = arith.constant 1.000000e+00 : f32
    %544 = vector.broadcast %cst_133 : f32 to vector<8x128xf32>
    %545 = arith.addf %544, %543 : vector<8x128xf32>
    %546 = arith.divf %544, %545 : vector<8x128xf32>
    %547 = vector.extract_strided_slice %540 {offsets = [0, 128], sizes = [8, 128], strides = [1, 1]} : vector<8x512xf32> to vector<8x128xf32>
    %548 = arith.negf %547 : vector<8x128xf32>
    %549 = math.exp %548 : vector<8x128xf32>
    %cst_134 = arith.constant 1.000000e+00 : f32
    %550 = vector.broadcast %cst_134 : f32 to vector<8x128xf32>
    %551 = arith.addf %550, %549 : vector<8x128xf32>
    %552 = arith.divf %550, %551 : vector<8x128xf32>
    %553 = vector.extract_strided_slice %540 {offsets = [0, 256], sizes = [8, 128], strides = [1, 1]} : vector<8x512xf32> to vector<8x128xf32>
    %554 = math.tanh %553 : vector<8x128xf32>
    %555 = vector.extract_strided_slice %540 {offsets = [0, 384], sizes = [8, 128], strides = [1, 1]} : vector<8x512xf32> to vector<8x128xf32>
    %556 = arith.negf %555 : vector<8x128xf32>
    %557 = math.exp %556 : vector<8x128xf32>
    %cst_135 = arith.constant 1.000000e+00 : f32
    %558 = vector.broadcast %cst_135 : f32 to vector<8x128xf32>
    %559 = arith.addf %558, %557 : vector<8x128xf32>
    %560 = arith.divf %558, %559 : vector<8x128xf32>
    %561 = arith.mulf %552, %493 : vector<8x128xf32>
    %562 = arith.mulf %546, %554 : vector<8x128xf32>
    %563 = arith.addf %561, %562 : vector<8x128xf32>
    %564 = math.tanh %563 : vector<8x128xf32>
    %565 = arith.mulf %560, %564 : vector<8x128xf32>
    %566 = arith.addf %496, %565 : vector<8x128xf32>
    %c7_i32 = arith.constant 7 : i32
    %c16_i32_136 = arith.constant 16 : i32
    %567 = arith.muli %c7_i32, %c16_i32_136 : i32
    %c0_i32_137 = arith.constant 0 : i32
    %568 = arith.addi %567, %c0_i32_137 : i32
    %569 = tpu.assume_multiple %568, 8 : i32
    %570 = arith.index_cast %569 : i32 to index
    %c0_138 = arith.constant 0 : index
    %571 = vector.load %arg6[%570, %c0_138] : memref<128x512xbf16, #tpu.memory_space<vmem>>, vector<8x512xbf16>
    %572 = arith.extf %571 : vector<8x512xbf16> to vector<8x512xf32>
    %573 = arith.truncf %530 : vector<8x128xf32> to vector<8x128xbf16>
    %cst_139 = arith.constant dense<0.000000e+00> : vector<8x512xf32>
    %574 = tpu.matmul %573, %1, %cst_139 {dimension_numbers = #tpu.dot_dimension_numbers<[1], [0], [0], [1], [0, 0, 1, 1], [], []>} : vector<8x128xbf16>, vector<128x512xbf16>, vector<8x512xf32> -> vector<8x512xf32>
    %575 = arith.addf %572, %574 : vector<8x512xf32>
    %576 = vector.extract_strided_slice %575 {offsets = [0, 0], sizes = [8, 128], strides = [1, 1]} : vector<8x512xf32> to vector<8x128xf32>
    %577 = arith.negf %576 : vector<8x128xf32>
    %578 = math.exp %577 : vector<8x128xf32>
    %cst_140 = arith.constant 1.000000e+00 : f32
    %579 = vector.broadcast %cst_140 : f32 to vector<8x128xf32>
    %580 = arith.addf %579, %578 : vector<8x128xf32>
    %581 = arith.divf %579, %580 : vector<8x128xf32>
    %582 = vector.extract_strided_slice %575 {offsets = [0, 128], sizes = [8, 128], strides = [1, 1]} : vector<8x512xf32> to vector<8x128xf32>
    %583 = arith.negf %582 : vector<8x128xf32>
    %584 = math.exp %583 : vector<8x128xf32>
    %cst_141 = arith.constant 1.000000e+00 : f32
    %585 = vector.broadcast %cst_141 : f32 to vector<8x128xf32>
    %586 = arith.addf %585, %584 : vector<8x128xf32>
    %587 = arith.divf %585, %586 : vector<8x128xf32>
    %588 = vector.extract_strided_slice %575 {offsets = [0, 256], sizes = [8, 128], strides = [1, 1]} : vector<8x512xf32> to vector<8x128xf32>
    %589 = math.tanh %588 : vector<8x128xf32>
    %590 = vector.extract_strided_slice %575 {offsets = [0, 384], sizes = [8, 128], strides = [1, 1]} : vector<8x512xf32> to vector<8x128xf32>
    %591 = arith.negf %590 : vector<8x128xf32>
    %592 = math.exp %591 : vector<8x128xf32>
    %cst_142 = arith.constant 1.000000e+00 : f32
    %593 = vector.broadcast %cst_142 : f32 to vector<8x128xf32>
    %594 = arith.addf %593, %592 : vector<8x128xf32>
    %595 = arith.divf %593, %594 : vector<8x128xf32>
    %596 = arith.mulf %587, %528 : vector<8x128xf32>
    %597 = arith.mulf %581, %589 : vector<8x128xf32>
    %598 = arith.addf %596, %597 : vector<8x128xf32>
    %599 = math.tanh %598 : vector<8x128xf32>
    %600 = arith.mulf %595, %599 : vector<8x128xf32>
    %601 = arith.addf %531, %600 : vector<8x128xf32>
    %c16_i32_143 = arith.constant 16 : i32
    %602 = arith.muli %c7_i32, %c16_i32_143 : i32
    %c8_i32_144 = arith.constant 8 : i32
    %603 = arith.addi %602, %c8_i32_144 : i32
    %604 = tpu.assume_multiple %603, 8 : i32
    %605 = arith.index_cast %604 : i32 to index
    %c0_145 = arith.constant 0 : index
    %606 = vector.load %arg6[%605, %c0_145] : memref<128x512xbf16, #tpu.memory_space<vmem>>, vector<8x512xbf16>
    %607 = arith.extf %606 : vector<8x512xbf16> to vector<8x512xf32>
    %608 = arith.truncf %565 : vector<8x128xf32> to vector<8x128xbf16>
    %cst_146 = arith.constant dense<0.000000e+00> : vector<8x512xf32>
    %609 = tpu.matmul %608, %1, %cst_146 {dimension_numbers = #tpu.dot_dimension_numbers<[1], [0], [0], [1], [0, 0, 1, 1], [], []>} : vector<8x128xbf16>, vector<128x512xbf16>, vector<8x512xf32> -> vector<8x512xf32>
    %610 = arith.addf %607, %609 : vector<8x512xf32>
    %611 = vector.extract_strided_slice %610 {offsets = [0, 0], sizes = [8, 128], strides = [1, 1]} : vector<8x512xf32> to vector<8x128xf32>
    %612 = arith.negf %611 : vector<8x128xf32>
    %613 = math.exp %612 : vector<8x128xf32>
    %cst_147 = arith.constant 1.000000e+00 : f32
    %614 = vector.broadcast %cst_147 : f32 to vector<8x128xf32>
    %615 = arith.addf %614, %613 : vector<8x128xf32>
    %616 = arith.divf %614, %615 : vector<8x128xf32>
    %617 = vector.extract_strided_slice %610 {offsets = [0, 128], sizes = [8, 128], strides = [1, 1]} : vector<8x512xf32> to vector<8x128xf32>
    %618 = arith.negf %617 : vector<8x128xf32>
    %619 = math.exp %618 : vector<8x128xf32>
    %cst_148 = arith.constant 1.000000e+00 : f32
    %620 = vector.broadcast %cst_148 : f32 to vector<8x128xf32>
    %621 = arith.addf %620, %619 : vector<8x128xf32>
    %622 = arith.divf %620, %621 : vector<8x128xf32>
    %623 = vector.extract_strided_slice %610 {offsets = [0, 256], sizes = [8, 128], strides = [1, 1]} : vector<8x512xf32> to vector<8x128xf32>
    %624 = math.tanh %623 : vector<8x128xf32>
    %625 = vector.extract_strided_slice %610 {offsets = [0, 384], sizes = [8, 128], strides = [1, 1]} : vector<8x512xf32> to vector<8x128xf32>
    %626 = arith.negf %625 : vector<8x128xf32>
    %627 = math.exp %626 : vector<8x128xf32>
    %cst_149 = arith.constant 1.000000e+00 : f32
    %628 = vector.broadcast %cst_149 : f32 to vector<8x128xf32>
    %629 = arith.addf %628, %627 : vector<8x128xf32>
    %630 = arith.divf %628, %629 : vector<8x128xf32>
    %631 = arith.mulf %622, %563 : vector<8x128xf32>
    %632 = arith.mulf %616, %624 : vector<8x128xf32>
    %633 = arith.addf %631, %632 : vector<8x128xf32>
    %634 = math.tanh %633 : vector<8x128xf32>
    %635 = arith.mulf %630, %634 : vector<8x128xf32>
    %636 = arith.addf %566, %635 : vector<8x128xf32>
    %c8_i32_150 = arith.constant 8 : i32
    %c0_151 = arith.constant 0 : index
    %c0_152 = arith.constant 0 : index
    %637 = vector.load %arg5[%c0_151, %c0_152] : memref<16x128xf32, #tpu.memory_space<vmem>>, vector<8x128xf32>
    %cst_153 = arith.constant 1.250000e-01 : f32
    %638 = vector.broadcast %cst_153 : f32 to vector<8x128xf32>
    %639 = arith.mulf %601, %638 : vector<8x128xf32>
    %640 = arith.addf %637, %639 : vector<8x128xf32>
    %c0_154 = arith.constant 0 : index
    %c0_155 = arith.constant 0 : index
    %641 = vector.load %arg5[%c0_154, %c0_155] : memref<16x128xf32, #tpu.memory_space<vmem>>, vector<8x128xf32>
    tpu.vector_store %arg5[%c0_154, %c0_155], %640 {strides = array<i32>} : memref<16x128xf32, #tpu.memory_space<vmem>>, vector<8x128xf32>,
    %c8 = arith.constant 8 : index
    %c0_156 = arith.constant 0 : index
    %642 = vector.load %arg5[%c8, %c0_156] : memref<16x128xf32, #tpu.memory_space<vmem>>, vector<8x128xf32>
    %cst_157 = arith.constant 1.250000e-01 : f32
    %643 = vector.broadcast %cst_157 : f32 to vector<8x128xf32>
    %644 = arith.mulf %636, %643 : vector<8x128xf32>
    %645 = arith.addf %642, %644 : vector<8x128xf32>
    %c8_158 = arith.constant 8 : index
    %c0_159 = arith.constant 0 : index
    %646 = vector.load %arg5[%c8_158, %c0_159] : memref<16x128xf32, #tpu.memory_space<vmem>>, vector<8x128xf32>
    tpu.vector_store %arg5[%c8_158, %c0_159], %645 {strides = array<i32>} : memref<16x128xf32, #tpu.memory_space<vmem>>, vector<8x128xf32>,
    return
  }
  func.func @transform_0(%arg0: i32) -> (i32, i32) {
    %c0_i32 = arith.constant 0 : i32
    %c0_i32_0 = arith.constant 0 : i32
    return %arg0, %c0_i32 : i32, i32
  }
  func.func @transform_1(%arg0: i32) -> (i32, i32) {
    %c0_i32 = arith.constant 0 : i32
    %c0_i32_0 = arith.constant 0 : i32
    %c0_i32_1 = arith.constant 0 : i32
    return %c0_i32, %c0_i32_0 : i32, i32
  }
  func.func @transform_2(%arg0: i32) -> (i32, i32) {
    %c0_i32 = arith.constant 0 : i32
    %c0_i32_0 = arith.constant 0 : i32
    %c0_i32_1 = arith.constant 0 : i32
    return %c0_i32, %c0_i32_0 : i32, i32
  }
  func.func @transform_3(%arg0: i32) -> (i32, i32) {
    %c0_i32 = arith.constant 0 : i32
    %c0_i32_0 = arith.constant 0 : i32
    %c0_i32_1 = arith.constant 0 : i32
    return %c0_i32, %c0_i32_0 : i32, i32
  }
  func.func @transform_4(%arg0: i32) -> (i32, i32) {
    %c0_i32 = arith.constant 0 : i32
    %c0_i32_0 = arith.constant 0 : i32
    return %arg0, %c0_i32 : i32, i32
  }
}

</mosaic_0001>

<llo_original>
// kernel: lstm_forward.1
$region0: #{lstm_forward.1}
  #allocation0 [shape = 'u32[]', space=smem, size = 0x4, offset = 0x4, fixed_abs, tag = 'smem constant byte address 0x4 - core index']
  #allocation1 [shape = 'u32[144,128]{1,0:T(1,128)}', space=vmem, size = 0x12000, scoped, tag = 'internal scratch']
  #allocation2 [shape = 'bf16[128,512]{1,0:T(8,128)(2,1)}', space=vmem, size = 0x20000, scoped, tag = 'scratch operand']
  %s0 = inlined_call_operand.vmem [shape: f32[32,1024], index: 0, kind: input, shape index: {}]
  %s1 = inlined_call_operand.vmem [shape: bf16[128,512], index: 1, kind: input, shape index: {}]
  %s2 = inlined_call_operand.vmem [shape: bf16[128,512], index: 2, kind: input, shape index: {}]
  %s3 = inlined_call_operand.vmem [shape: f32[1,512], index: 3, kind: input, shape index: {}]
  %s4 = inlined_call_operand.hbm [shape: f32[32,128], index: 4, kind: output, shape index: {}]
  %s5 = sld [smem:[#allocation0]]
  $region49: #{lstm_forward.1} parent=0
    _
  %s7 = ssub.s32 1, %s5
  %s8 = scalar_select 0, %s7, %s5
  $region1: #{lstm_forward.1} parent=0
    #allocation3 [shape = 'u8[16384]{0}', space=vmem, size = 0x4000, scoped, tag = 'output window, operand 0']
    #allocation4 [shape = 's32[2]{0}', space=sflag, size = 0x8, scoped, tag = 'scoped memory for lstm_forward.1']
    %9 = vsyncpa [#allocation4], 0
    %s10 = scalar_lea.sflag [#allocation4], 1
    %11 = vsyncpa %s10, 0
    loop: start=0, step=1, limit=4
    $region2: #{lstm_forward.1} parent=1 // loop_pre_header
      _
    $region3: #{lstm_forward.1} parent=1 // loop_header
      %s13 = sphi 0, %s17
      %p14 = scmp.ge.s32.totalorder %s13, 4
      %s23 = sphi 0, %s25
      %s26 = sphi 0, %s23
      %s27 = sphi 0, %s26
      %s43 = sphi 0, %s27
      %s47 = sphi 0, %s47
      %s49 = sphi 0, %s47
      %s50 = sphi 0, %s49
      %s64 = sphi 0, %s50
      %s68 = sphi 0, %s68
      %s70 = sphi 0, %s68
      %s71 = sphi 0, %s70
      %s85 = sphi 0, %s71
      %s89 = sphi 0, %s89
      %s91 = sphi 0, %s89
      %s92 = sphi 0, %s91
      %s106 = sphi 0, %s92
      %s112 = sphi 0, %s114
      %s115 = sphi 0, %s112
      %s116 = sphi 0, %s115
      %s132 = sphi 0, %s116
    $region4: #{lstm_forward.1} parent=1 // loop_header_branch
      %16 = sbr.rel (%p14) target = $region8
    $region5: #{lstm_forward.1} parent=1 // loop_body
      %s18 = ssub.s32 %s13, 1
      %s19 = ssub.s32 %s13, 2
      %s20 = sadd.s32 %s13, 1
      %s21 = ssub.s32 %s13, %s20
      %p22 = scmp.eq.s32.totalorder %s21, 0
      %s24 = sadd.s32 %s23, 1
      %s25 = scalar_select %p22, %s23, %s24
      %p28 = pneg %p22
      %p29 = scmp.eq.s32.totalorder %s13, 1
      %p30 = por %p28, %p29
      %p31 = scmp.ne.s32.totalorder %s23, %s26
      %p32 = scmp.eq.s32.totalorder %s13, 0
      %p33 = por %p31, %p32
      %p34 = scmp.ne.s32.totalorder %s23, %s26
      %p35 = scmp.eq.s32.totalorder %s18, 1
      %p36 = por %p34, %p35
      %p37 = scmp.ne.s32.totalorder %s26, %s27
      %p38 = scmp.eq.s32.totalorder %s18, 0
      %p39 = por %p37, %p38
      %p40 = scmp.ne.s32.totalorder %s26, %s27
      %p41 = scmp.eq.s32.totalorder %s19, 1
      %p42 = por %p40, %p41
      %p44 = scmp.ne.s32.totalorder %s27, %s43
      %p45 = scmp.eq.s32.totalorder %s19, 0
      %p46 = por %p44, %p45
      %s48 = sadd.s32 %s47, 1
      %p51 = scmp.eq.s32.totalorder %s13, 1
      %p52 = scmp.ne.s32.totalorder %s47, %s49
      %p53 = scmp.eq.s32.totalorder %s13, 0
      %p54 = por %p52, %p53
      %p55 = scmp.ne.s32.totalorder %s47, %s49
      %p56 = scmp.eq.s32.totalorder %s18, 1
      %p57 = por %p55, %p56
      %p58 = scmp.ne.s32.totalorder %s49, %s50
      %p59 = scmp.eq.s32.totalorder %s18, 0
      %p60 = por %p58, %p59
      %p61 = scmp.ne.s32.totalorder %s49, %s50
      %p62 = scmp.eq.s32.totalorder %s19, 1
      %p63 = por %p61, %p62
      %p65 = scmp.ne.s32.totalorder %s50, %s64
      %p66 = scmp.eq.s32.totalorder %s19, 0
      %p67 = por %p65, %p66
      %s69 = sadd.s32 %s68, 1
      %p72 = scmp.eq.s32.totalorder %s13, 1
      %p73 = scmp.ne.s32.totalorder %s68, %s70
      %p74 = scmp.eq.s32.totalorder %s13, 0
      %p75 = por %p73, %p74
      %p76 = scmp.ne.s32.totalorder %s68, %s70
      %p77 = scmp.eq.s32.totalorder %s18, 1
      %p78 = por %p76, %p77
      %p79 = scmp.ne.s32.totalorder %s70, %s71
      %p80 = scmp.eq.s32.totalorder %s18, 0
      %p81 = por %p79, %p80
      %p82 = scmp.ne.s32.totalorder %s70, %s71
      %p83 = scmp.eq.s32.totalorder %s19, 1
      %p84 = por %p82, %p83
      %p86 = scmp.ne.s32.totalorder %s71, %s85
      %p87 = scmp.eq.s32.totalorder %s19, 0
      %p88 = por %p86, %p87
      %s90 = sadd.s32 %s89, 1
      %p93 = scmp.eq.s32.totalorder %s13, 1
      %p94 = scmp.ne.s32.totalorder %s89, %s91
      %p95 = scmp.eq.s32.totalorder %s13, 0
      %p96 = por %p94, %p95
      %p97 = scmp.ne.s32.totalorder %s89, %s91
      %p98 = scmp.eq.s32.totalorder %s18, 1
      %p99 = por %p97, %p98
      %p100 = scmp.ne.s32.totalorder %s91, %s92
      %p101 = scmp.eq.s32.totalorder %s18, 0
      %p102 = por %p100, %p101
      %p103 = scmp.ne.s32.totalorder %s91, %s92
      %p104 = scmp.eq.s32.totalorder %s19, 1
      %p105 = por %p103, %p104
      %p107 = scmp.ne.s32.totalorder %s92, %s106
      %p108 = scmp.eq.s32.totalorder %s19, 0
      %p109 = por %p107, %p108
      %s110 = ssub.s32 %s13, %s20
      %p111 = scmp.eq.s32.totalorder %s110, 0
      %s113 = sadd.s32 %s112, 1
      %s114 = scalar_select %p111, %s112, %s113
      %p117 = pneg %p111
      %p118 = scmp.eq.s32.totalorder %s13, 1
      %p119 = por %p117, %p118
      %p120 = scmp.ne.s32.totalorder %s112, %s115
      %p121 = scmp.eq.s32.totalorder %s13, 0
      %p122 = por %p120, %p121
      %p123 = scmp.ne.s32.totalorder %s112, %s115
      %p124 = scmp.eq.s32.totalorder %s18, 1
      %p125 = por %p123, %p124
      %p126 = scmp.ne.s32.totalorder %s115, %s116
      %p127 = scmp.eq.s32.totalorder %s18, 0
      %p128 = por %p126, %p127
      %p129 = scmp.ne.s32.totalorder %s115, %s116
      %p130 = scmp.eq.s32.totalorder %s19, 1
      %p131 = por %p129, %p130
      %p133 = scmp.ne.s32.totalorder %s116, %s132
      %p134 = scmp.eq.s32.totalorder %s19, 0
      %p135 = por %p133, %p134
      %p136 = scmp.le.s32.totalorder 1, %s13
      %p137 = scmp.lt.s32.totalorder %s13, 3
      %p138 = pnand %p136, %p137
      %p139 = pneg %p138
      // Predicated region
      $region9: #{lstm_forward.1} parent=5 // pred_check
        _
      $region10: #{lstm_forward.1} parent=5 // pred_check_branch
        %141 = sbr.rel (%p138) target = $region12
      $region11: #{lstm_forward.1} parent=5 // pred_region
        %s142 = ssub.s32 %s13, 1
        // Predicated region
        $region13: #{lstm_forward.1} parent=11 // pred_check
          %p143 = pneg %p60
        $region14: #{lstm_forward.1} parent=11 // pred_check_branch
          %145 = sbr.rel (%p143) target = $region16
        $region15: #{lstm_forward.1} parent=11 // pred_region
          _
        $region16: #{lstm_forward.1} parent=11 // pred_fallthru
          _
        // Predicated region
        $region17: #{lstm_forward.1} parent=11 // pred_check
          %p146 = pneg %p81
        $region18: #{lstm_forward.1} parent=11 // pred_check_branch
          %148 = sbr.rel (%p146) target = $region20
        $region19: #{lstm_forward.1} parent=11 // pred_region
          _
        $region20: #{lstm_forward.1} parent=11 // pred_fallthru
          _
        // Predicated region
        $region21: #{lstm_forward.1} parent=11 // pred_check
          %p149 = pneg %p102
        $region22: #{lstm_forward.1} parent=11 // pred_check_branch
          %151 = sbr.rel (%p149) target = $region24
        $region23: #{lstm_forward.1} parent=11 // pred_region
          _
        $region24: #{lstm_forward.1} parent=11 // pred_fallthru
          _
      $region12: #{lstm_forward.1} parent=5 // pred_fallthru
        _
      %p152 = scmp.lt.s32.totalorder %s13, 2
      // Predicated region
      $region25: #{lstm_forward.1} parent=5 // pred_check
        %p153 = pneg %p152
      $region26: #{lstm_forward.1} parent=5 // pred_check_branch
        %155 = sbr.rel (%p153) target = $region28
      $region27: #{lstm_forward.1} parent=5 // pred_region
        // Predicated region
        $region29: #{lstm_forward.1} parent=27 // pred_check
          %p156 = pneg %p33
        $region30: #{lstm_forward.1} parent=27 // pred_check_branch
          %158 = sbr.rel (%p156) target = $region32
        $region31: #{lstm_forward.1} parent=27 // pred_region
          %s159 = smul.u32 2, %s13
          %p160 = scmp.lt.s32.totalorder %s159, 3
          %s161 = scalar_select %p160, %s159, 3
          %s162 = smul.addr %s161, 8
          %s163 = smul.addr %s162, 8
          %s164 = scalar_lea.vmem %s0, %s163
          %s165 = smul.u32 2, %s13
        $region32: #{lstm_forward.1} parent=27 // pred_fallthru
          _
      $region28: #{lstm_forward.1} parent=5 // pred_fallthru
        _
      %p166 = scmp.le.s32.totalorder 1, %s13
      %p167 = scmp.lt.s32.totalorder %s13, 3
      %p168 = pnand %p166, %p167
      %p169 = pneg %p168
      // Predicated region
      $region33: #{lstm_forward.1} parent=5 // pred_check
        _
      $region34: #{lstm_forward.1} parent=5 // pred_check_branch
        %171 = sbr.rel (%p168) target = $region36
      $region35: #{lstm_forward.1} parent=5 // pred_region
        %s172 = ssub.s32 %s13, 1
        %s173 = smul.u32 2, %s18
        %p174 = scmp.lt.s32.totalorder %s173, 3
        %s175 = scalar_select %p174, %s173, 3
        %s176 = smul.addr %s175, 8
        %s177 = smul.addr %s176, 8
        %s178 = scalar_lea.vmem %s0, %s177
        %p179 = pneg %p39
        %p180 = pneg %p36
        %p181 = pneg %p60
        %p182 = pneg %p57
        %p183 = pneg %p81
        %p184 = pneg %p78
        %p185 = pneg %p102
        %p186 = pneg %p99
        %p187 = pneg %p128
        %p188 = pneg %p125
        %s189 = sand.u32 %s115, 1
        %s190 = scalar_lea.sflag [#allocation4], %s189
        %s191 = sand.u32 %s115, 1
        %s192 = smul.addr %s191, 16
        %s193 = scalar_lea.vmem [#allocation3], %s192
        %s194 = smul.u32 2, %s18
        %p195 = scmp.lt.s32.totalorder %s194, 3
        %s196 = scalar_select %p195, %s194, 3
        %s197 = smul.addr %s196, 8
        %s198 = smul.addr %s197, 8
        %s199 = scalar_lea.vmem %s0, %s198
        %s200 = smul.u32 2, %s18
        %s201 = smul.u32 2, %s18
        %v203 = vld [vmem:[%s1] sm:$0xff]
        %v204 = vld [vmem:[%s1 + $0x8] sm:$0xff]
        %v205 = vld [vmem:[%s1 + $0x10] sm:$0xff]
        %v206 = vld [vmem:[%s1 + $0x18] sm:$0xff]
        %v207 = vld [vmem:[%s1 + $0x20] sm:$0xff]
        %v208 = vld [vmem:[%s1 + $0x28] sm:$0xff]
        %v209 = vld [vmem:[%s1 + $0x30] sm:$0xff]
        %v210 = vld [vmem:[%s1 + $0x38] sm:$0xff]
        %v211 = vld [vmem:[%s1 + $0x40] sm:$0xff]
        %v212 = vld [vmem:[%s1 + $0x48] sm:$0xff]
        %v213 = vld [vmem:[%s1 + $0x50] sm:$0xff]
        %v214 = vld [vmem:[%s1 + $0x58] sm:$0xff]
        %v215 = vld [vmem:[%s1 + $0x60] sm:$0xff]
        %v216 = vld [vmem:[%s1 + $0x68] sm:$0xff]
        %v217 = vld [vmem:[%s1 + $0x70] sm:$0xff]
        %v218 = vld [vmem:[%s1 + $0x78] sm:$0xff]
        %v219 = vld [vmem:[%s1 + $0x80] sm:$0xff]
        %v220 = vld [vmem:[%s1 + $0x88] sm:$0xff]
        %v221 = vld [vmem:[%s1 + $0x90] sm:$0xff]
        %v222 = vld [vmem:[%s1 + $0x98] sm:$0xff]
        %v223 = vld [vmem:[%s1 + $0xa0] sm:$0xff]
        %v224 = vld [vmem:[%s1 + $0xa8] sm:$0xff]
        %v225 = vld [vmem:[%s1 + $0xb0] sm:$0xff]
        %v226 = vld [vmem:[%s1 + $0xb8] sm:$0xff]
        %v227 = vld [vmem:[%s1 + $0xc0] sm:$0xff]
        %v228 = vld [vmem:[%s1 + $0xc8] sm:$0xff]
        %v229 = vld [vmem:[%s1 + $0xd0] sm:$0xff]
        %v230 = vld [vmem:[%s1 + $0xd8] sm:$0xff]
        %v231 = vld [vmem:[%s1 + $0xe0] sm:$0xff]
        %v232 = vld [vmem:[%s1 + $0xe8] sm:$0xff]
        %v233 = vld [vmem:[%s1 + $0xf0] sm:$0xff]
        %v234 = vld [vmem:[%s1 + $0xf8] sm:$0xff]
        %v235 = vld [vmem:[%s2] sm:$0xff]
        %v236 = vld [vmem:[%s2 + $0x8] sm:$0xff]
        %v237 = vld [vmem:[%s2 + $0x10] sm:$0xff]
        %v238 = vld [vmem:[%s2 + $0x18] sm:$0xff]
        %v239 = vld [vmem:[%s2 + $0x20] sm:$0xff]
        %v240 = vld [vmem:[%s2 + $0x28] sm:$0xff]
        %v241 = vld [vmem:[%s2 + $0x30] sm:$0xff]
        %v242 = vld [vmem:[%s2 + $0x38] sm:$0xff]
        %v243 = vld [vmem:[%s2 + $0x40] sm:$0xff]
        %v244 = vld [vmem:[%s2 + $0x48] sm:$0xff]
        %v245 = vld [vmem:[%s2 + $0x50] sm:$0xff]
        %v246 = vld [vmem:[%s2 + $0x58] sm:$0xff]
        %v247 = vld [vmem:[%s2 + $0x60] sm:$0xff]
        %v248 = vld [vmem:[%s2 + $0x68] sm:$0xff]
        %v249 = vld [vmem:[%s2 + $0x70] sm:$0xff]
        %v250 = vld [vmem:[%s2 + $0x78] sm:$0xff]
        %v251 = vld [vmem:[%s2 + $0x80] sm:$0xff]
        %v252 = vld [vmem:[%s2 + $0x88] sm:$0xff]
        %v253 = vld [vmem:[%s2 + $0x90] sm:$0xff]
        %v254 = vld [vmem:[%s2 + $0x98] sm:$0xff]
        %v255 = vld [vmem:[%s2 + $0xa0] sm:$0xff]
        %v256 = vld [vmem:[%s2 + $0xa8] sm:$0xff]
        %v257 = vld [vmem:[%s2 + $0xb0] sm:$0xff]
        %v258 = vld [vmem:[%s2 + $0xb8] sm:$0xff]
        %v259 = vld [vmem:[%s2 + $0xc0] sm:$0xff]
        %v260 = vld [vmem:[%s2 + $0xc8] sm:$0xff]
        %v261 = vld [vmem:[%s2 + $0xd0] sm:$0xff]
        %v262 = vld [vmem:[%s2 + $0xd8] sm:$0xff]
        %v263 = vld [vmem:[%s2 + $0xe0] sm:$0xff]
        %v264 = vld [vmem:[%s2 + $0xe8] sm:$0xff]
        %v265 = vld [vmem:[%s2 + $0xf0] sm:$0xff]
        %v266 = vld [vmem:[%s2 + $0xf8] sm:$0xff]
        %v267 = vld [vmem:[%s3] sm:$0xf]
        %v268 = vld [vmem:[%s199] sm:$0xff]
        %v269 = vld [vmem:[%s199 + $0x40] sm:$0xff]
        %v270 = vadd.f32 %v268, 0.0
        %v271 = vadd.f32 %v269, 0.0
        %v272 = vpack.c.bf16 %v269, %v268
        %v274 = vlaneseq
        %v275 = vshrl.u32 %v274, 7
        %v276 = vsub.s32 0, %v275
        %v277 = vrot.slane %v267, %v276
        %v278 = vlaneseq
        %v279 = vshrl.u32 %v278, 7
        %v280 = vsub.s32 1, %v279
        %v281 = vrot.slane %v267, %v280
        %v282 = vlaneseq
        %v283 = vshrl.u32 %v282, 7
        %v284 = vsub.s32 2, %v283
        %v285 = vrot.slane %v267, %v284
        %v286 = vlaneseq
        %v287 = vshrl.u32 %v286, 7
        %v288 = vsub.s32 3, %v287
        %v289 = vrot.slane %v267, %v288
        %v326 = vunpack.c.l.b16 %v203
        %v327 = vunpack.c.h.b16 %v203
        %v328 = vunpack.c.l.b16 %v204
        %v329 = vunpack.c.h.b16 %v204
        %v330 = vunpack.c.l.b16 %v205
        %v331 = vunpack.c.h.b16 %v205
        %v332 = vunpack.c.l.b16 %v206
        %v333 = vunpack.c.h.b16 %v206
        %v334 = vunpack.c.l.b16 %v207
        %v335 = vunpack.c.h.b16 %v207
        %v336 = vunpack.c.l.b16 %v208
        %v337 = vunpack.c.h.b16 %v208
        %v338 = vunpack.c.l.b16 %v209
        %v339 = vunpack.c.h.b16 %v209
        %v340 = vunpack.c.l.b16 %v210
        %v341 = vunpack.c.h.b16 %v210
        %v342 = vunpack.c.l.b16 %v211
        %v343 = vunpack.c.h.b16 %v211
        %v344 = vunpack.c.l.b16 %v212
        %v345 = vunpack.c.h.b16 %v212
        %v346 = vunpack.c.l.b16 %v213
        %v347 = vunpack.c.h.b16 %v213
        %v348 = vunpack.c.l.b16 %v214
        %v349 = vunpack.c.h.b16 %v214
        %v350 = vunpack.c.l.b16 %v215
        %v351 = vunpack.c.h.b16 %v215
        %v352 = vunpack.c.l.b16 %v216
        %v353 = vunpack.c.h.b16 %v216
        %v354 = vunpack.c.l.b16 %v217
        %v355 = vunpack.c.h.b16 %v217
        %v356 = vunpack.c.l.b16 %v218
        %v357 = vunpack.c.h.b16 %v218
        %v358 = vunpack.c.l.b16 %v219
        %v359 = vunpack.c.h.b16 %v219
        %v360 = vunpack.c.l.b16 %v220
        %v361 = vunpack.c.h.b16 %v220
        %v362 = vunpack.c.l.b16 %v221
        %v363 = vunpack.c.h.b16 %v221
        %v364 = vunpack.c.l.b16 %v222
        %v365 = vunpack.c.h.b16 %v222
        %v366 = vunpack.c.l.b16 %v223
        %v367 = vunpack.c.h.b16 %v223
        %v368 = vunpack.c.l.b16 %v224
        %v369 = vunpack.c.h.b16 %v224
        %v370 = vunpack.c.l.b16 %v225
        %v371 = vunpack.c.h.b16 %v225
        %v372 = vunpack.c.l.b16 %v226
        %v373 = vunpack.c.h.b16 %v226
        %v374 = vunpack.c.l.b16 %v227
        %v375 = vunpack.c.h.b16 %v227
        %v376 = vunpack.c.l.b16 %v228
        %v377 = vunpack.c.h.b16 %v228
        %v378 = vunpack.c.l.b16 %v229
        %v379 = vunpack.c.h.b16 %v229
        %v380 = vunpack.c.l.b16 %v230
        %v381 = vunpack.c.h.b16 %v230
        %v382 = vunpack.c.l.b16 %v231
        %v383 = vunpack.c.h.b16 %v231
        %v384 = vunpack.c.l.b16 %v232
        %v385 = vunpack.c.h.b16 %v232
        %v386 = vunpack.c.l.b16 %v233
        %v387 = vunpack.c.h.b16 %v233
        %v388 = vunpack.c.l.b16 %v234
        %v389 = vunpack.c.h.b16 %v234
        %v390 = vpack.c.b16 %v330, %v326
        %v391 = vpack.c.b16 %v331, %v327
        %v392 = vpack.c.b16 %v332, %v328
        %v393 = vpack.c.b16 %v333, %v329
        %v394 = vpack.c.b16 %v338, %v334
        %v395 = vpack.c.b16 %v339, %v335
        %v396 = vpack.c.b16 %v340, %v336
        %v397 = vpack.c.b16 %v341, %v337
        %v398 = vpack.c.b16 %v346, %v342
        %v399 = vpack.c.b16 %v347, %v343
        %v400 = vpack.c.b16 %v348, %v344
        %v401 = vpack.c.b16 %v349, %v345
        %v402 = vpack.c.b16 %v354, %v350
        %v403 = vpack.c.b16 %v355, %v351
        %v404 = vpack.c.b16 %v356, %v352
        %v405 = vpack.c.b16 %v357, %v353
        %v406 = vpack.c.b16 %v362, %v358
        %v407 = vpack.c.b16 %v363, %v359
        %v408 = vpack.c.b16 %v364, %v360
        %v409 = vpack.c.b16 %v365, %v361
        %v410 = vpack.c.b16 %v370, %v366
        %v411 = vpack.c.b16 %v371, %v367
        %v412 = vpack.c.b16 %v372, %v368
        %v413 = vpack.c.b16 %v373, %v369
        %v414 = vpack.c.b16 %v378, %v374
        %v415 = vpack.c.b16 %v379, %v375
        %v416 = vpack.c.b16 %v380, %v376
        %v417 = vpack.c.b16 %v381, %v377
        %v418 = vpack.c.b16 %v386, %v382
        %v419 = vpack.c.b16 %v387, %v383
        %v420 = vpack.c.b16 %v388, %v384
        %v421 = vpack.c.b16 %v389, %v385
        %454 = vmatprep.subr.bf16.mxu0 %v419
        %455 = vmatpush1.bf16.msra.mxu0 %v418
        %456 = vmatprep.subr.bf16.mxu0 %v415
        %457 = vmatpush1.bf16.msra.mxu0 %v414
        %458 = vmatprep.subr.bf16.mxu0 %v411
        %459 = vmatpush1.bf16.msra.mxu0 %v410
        %460 = vmatprep.subr.bf16.mxu0 %v407
        %461 = vmatpush1.bf16.msra.mxu0 %v406
        %462 = vmatprep.subr.bf16.mxu0 %v403
        %463 = vmatpush1.bf16.msra.mxu0 %v402
        %464 = vmatprep.subr.bf16.mxu0 %v399
        %465 = vmatpush1.bf16.msra.mxu0 %v398
        %466 = vmatprep.subr.bf16.mxu0 %v395
        %467 = vmatpush1.bf16.msra.mxu0 %v394
        %468 = vmatprep.subr.bf16.mxu0 %v391
        %469 = vmatpush1.bf16.msra.mxu0 %v390
        %470 = vmatprep.subr.bf16.mxu0 0
        %471 = vmatpush2.bf16.msra.mxu0 0
        %472 = vmatprep.subr.bf16.mxu0 0
        %473 = vmatpush2.bf16.msra.mxu0 0
        %474 = vmatprep.subr.bf16.mxu0 0
        %475 = vmatpush2.bf16.msra.mxu0 0
        %476 = vmatprep.subr.bf16.mxu0 0
        %477 = vmatpush2.bf16.msra.mxu0 0
        %478 = vmatprep.subr.bf16.mxu0 0
        %479 = vmatpush2.bf16.msra.mxu0 0
        %480 = vmatprep.subr.bf16.mxu0 0
        %481 = vmatpush2.bf16.msra.mxu0 0
        %482 = vmatprep.subr.bf16.mxu0 0
        %483 = vmatpush2.bf16.msra.mxu0 0
        %484 = vmatprep.subr.bf16.mxu0 0
        %485 = vmatpush2.bf16.msra.mxu0 0
        %486 = vmatprep.mubr.bf16.mxu0 0
        %487 = vmatmul.mubr.bf16.gmra.mxu0 %v272
        %v488 = vpop.f32.mrf.mxu0
        %v489 = vadd.f32 %v277, %v488
        %v490 = vpop.f32.mrf.mxu0
        %v491 = vadd.f32 %v281, %v490
        %v492 = vpop.f32.mrf.mxu0
        %v493 = vadd.f32 %v277, %v492
        %v494 = vpop.f32.mrf.mxu0
        %v495 = vadd.f32 %v281, %v494
        %496 = vdwg.mxu0
        %497 = vmatprep.subr.bf16.mxu0 %v421
        %498 = vmatpush1.bf16.msra.mxu0 %v420
        %499 = vmatprep.subr.bf16.mxu0 %v417
        %500 = vmatpush1.bf16.msra.mxu0 %v416
        %501 = vmatprep.subr.bf16.mxu0 %v413
        %502 = vmatpush1.bf16.msra.mxu0 %v412
        %503 = vmatprep.subr.bf16.mxu0 %v409
        %504 = vmatpush1.bf16.msra.mxu0 %v408
        %505 = vmatprep.subr.bf16.mxu0 %v405
        %506 = vmatpush1.bf16.msra.mxu0 %v404
        %507 = vmatprep.subr.bf16.mxu0 %v401
        %508 = vmatpush1.bf16.msra.mxu0 %v400
        %509 = vmatprep.subr.bf16.mxu0 %v397
        %510 = vmatpush1.bf16.msra.mxu0 %v396
        %511 = vmatprep.subr.bf16.mxu0 %v393
        %512 = vmatpush1.bf16.msra.mxu0 %v392
        %513 = vmatprep.subr.bf16.mxu0 0
        %514 = vmatpush2.bf16.msra.mxu0 0
        %515 = vmatprep.subr.bf16.mxu0 0
        %516 = vmatpush2.bf16.msra.mxu0 0
        %517 = vmatprep.subr.bf16.mxu0 0
        %518 = vmatpush2.bf16.msra.mxu0 0
        %519 = vmatprep.subr.bf16.mxu0 0
        %520 = vmatpush2.bf16.msra.mxu0 0
        %521 = vmatprep.subr.bf16.mxu0 0
        %522 = vmatpush2.bf16.msra.mxu0 0
        %523 = vmatprep.subr.bf16.mxu0 0
        %524 = vmatpush2.bf16.msra.mxu0 0
        %525 = vmatprep.subr.bf16.mxu0 0
        %526 = vmatpush2.bf16.msra.mxu0 0
        %527 = vmatprep.subr.bf16.mxu0 0
        %528 = vmatpush2.bf16.msra.mxu0 0
        %529 = vmatprep.mubr.bf16.mxu0 0
        %530 = vmatmul.mubr.bf16.gmra.mxu0 %v272
        %v531 = vpop.f32.mrf.mxu0
        %v532 = vadd.f32 %v285, %v531
        %v533 = vpop.f32.mrf.mxu0
        %v534 = vadd.f32 %v289, %v533
        %v535 = vpop.f32.mrf.mxu0
        %v536 = vadd.f32 %v285, %v535
        %v537 = vpop.f32.mrf.mxu0
        %v538 = vadd.f32 %v289, %v537
        %539 = vdwg.mxu0
        %v540 = vpack.c.bf16 %v493, %v489
        %v541 = vpack.c.bf16 %v495, %v491
        %v542 = vpack.c.bf16 %v536, %v532
        %v543 = vpack.c.bf16 %v538, %v534
        %v548 = vunpack.c.l.b16 %v540
        %v549 = vunpack.c.l.b16 %v541
        %v550 = vunpack.c.l.b16 %v542
        %v551 = vunpack.c.l.b16 %v543
        %v552 = vunpack.c.h.b16 %v540
        %v553 = vunpack.c.h.b16 %v541
        %v554 = vunpack.c.h.b16 %v542
        %v555 = vunpack.c.h.b16 %v543
        %v556 = vpack.c.b16 %v549, %v548
        %v557 = vpack.c.b16 %v551, %v550
        %v558 = vpack.c.b16 %v553, %v552
        %v559 = vpack.c.b16 %v555, %v554
        %564 = vst [vmem:[#allocation2] sm:$0xff] %v556
        %565 = vst [vmem:[#allocation2 + $0x8] sm:$0xff] %v557
        %566 = vst [vmem:[#allocation2 + $0x10] sm:$0xff] %v558
        %567 = vst [vmem:[#allocation2 + $0x18] sm:$0xff] %v559
        %v568 = vld [vmem:[%s199 + $0x8] sm:$0xff]
        %v569 = vld [vmem:[%s199 + $0x48] sm:$0xff]
        %v570 = vadd.f32 %v270, %v568
        %v571 = vadd.f32 %v271, %v569
        %v572 = vpack.c.bf16 %v569, %v568
        %573 = vmatprep.subr.bf16.mxu0 %v419
        %574 = vmatpush1.bf16.msra.mxu0 %v418
        %575 = vmatprep.subr.bf16.mxu0 %v415
        %576 = vmatpush1.bf16.msra.mxu0 %v414
        %577 = vmatprep.subr.bf16.mxu0 %v411
        %578 = vmatpush1.bf16.msra.mxu0 %v410
        %579 = vmatprep.subr.bf16.mxu0 %v407
        %580 = vmatpush1.bf16.msra.mxu0 %v406
        %581 = vmatprep.subr.bf16.mxu0 %v403
        %582 = vmatpush1.bf16.msra.mxu0 %v402
        %583 = vmatprep.subr.bf16.mxu0 %v399
        %584 = vmatpush1.bf16.msra.mxu0 %v398
        %585 = vmatprep.subr.bf16.mxu0 %v395
        %586 = vmatpush1.bf16.msra.mxu0 %v394
        %587 = vmatprep.subr.bf16.mxu0 %v391
        %588 = vmatpush1.bf16.msra.mxu0 %v390
        %589 = vmatprep.subr.bf16.mxu0 0
        %590 = vmatpush2.bf16.msra.mxu0 0
        %591 = vmatprep.subr.bf16.mxu0 0
        %592 = vmatpush2.bf16.msra.mxu0 0
        %593 = vmatprep.subr.bf16.mxu0 0
        %594 = vmatpush2.bf16.msra.mxu0 0
        %595 = vmatprep.subr.bf16.mxu0 0
        %596 = vmatpush2.bf16.msra.mxu0 0
        %597 = vmatprep.subr.bf16.mxu0 0
        %598 = vmatpush2.bf16.msra.mxu0 0
        %599 = vmatprep.subr.bf16.mxu0 0
        %600 = vmatpush2.bf16.msra.mxu0 0
        %601 = vmatprep.subr.bf16.mxu0 0
        %602 = vmatpush2.bf16.msra.mxu0 0
        %603 = vmatprep.subr.bf16.mxu0 0
        %604 = vmatpush2.bf16.msra.mxu0 0
        %605 = vmatprep.mubr.bf16.mxu0 0
        %606 = vmatmul.mubr.bf16.gmra.mxu0 %v572
        %v607 = vpop.f32.mrf.mxu0
        %v608 = vadd.f32 %v277, %v607
        %v609 = vpop.f32.mrf.mxu0
        %v610 = vadd.f32 %v281, %v609
        %v611 = vpop.f32.mrf.mxu0
        %v612 = vadd.f32 %v277, %v611
        %v613 = vpop.f32.mrf.mxu0
        %v614 = vadd.f32 %v281, %v613
        %615 = vdwg.mxu0
        %616 = vmatprep.subr.bf16.mxu0 %v421
        %617 = vmatpush1.bf16.msra.mxu0 %v420
        %618 = vmatprep.subr.bf16.mxu0 %v417
        %619 = vmatpush1.bf16.msra.mxu0 %v416
        %620 = vmatprep.subr.bf16.mxu0 %v413
        %621 = vmatpush1.bf16.msra.mxu0 %v412
        %622 = vmatprep.subr.bf16.mxu0 %v409
        %623 = vmatpush1.bf16.msra.mxu0 %v408
        %624 = vmatprep.subr.bf16.mxu0 %v405
        %625 = vmatpush1.bf16.msra.mxu0 %v404
        %626 = vmatprep.subr.bf16.mxu0 %v401
        %627 = vmatpush1.bf16.msra.mxu0 %v400
        %628 = vmatprep.subr.bf16.mxu0 %v397
        %629 = vmatpush1.bf16.msra.mxu0 %v396
        %630 = vmatprep.subr.bf16.mxu0 %v393
        %631 = vmatpush1.bf16.msra.mxu0 %v392
        %632 = vmatprep.subr.bf16.mxu0 0
        %633 = vmatpush2.bf16.msra.mxu0 0
        %634 = vmatprep.subr.bf16.mxu0 0
        %635 = vmatpush2.bf16.msra.mxu0 0
        %636 = vmatprep.subr.bf16.mxu0 0
        %637 = vmatpush2.bf16.msra.mxu0 0
        %638 = vmatprep.subr.bf16.mxu0 0
        %639 = vmatpush2.bf16.msra.mxu0 0
        %640 = vmatprep.subr.bf16.mxu0 0
        %641 = vmatpush2.bf16.msra.mxu0 0
        %642 = vmatprep.subr.bf16.mxu0 0
        %643 = vmatpush2.bf16.msra.mxu0 0
        %644 = vmatprep.subr.bf16.mxu0 0
        %645 = vmatpush2.bf16.msra.mxu0 0
        %646 = vmatprep.subr.bf16.mxu0 0
        %647 = vmatpush2.bf16.msra.mxu0 0
        %648 = vmatprep.mubr.bf16.mxu0 0
        %649 = vmatmul.mubr.bf16.gmra.mxu0 %v572
        %v650 = vpop.f32.mrf.mxu0
        %v651 = vadd.f32 %v285, %v650
        %v652 = vpop.f32.mrf.mxu0
        %v653 = vadd.f32 %v289, %v652
        %v654 = vpop.f32.mrf.mxu0
        %v655 = vadd.f32 %v285, %v654
        %v656 = vpop.f32.mrf.mxu0
        %v657 = vadd.f32 %v289, %v656
        %658 = vdwg.mxu0
        %v659 = vpack.c.bf16 %v612, %v608
        %v660 = vpack.c.bf16 %v614, %v610
        %v661 = vpack.c.bf16 %v655, %v651
        %v662 = vpack.c.bf16 %v657, %v653
        %v667 = vunpack.c.l.b16 %v659
        %v668 = vunpack.c.l.b16 %v660
        %v669 = vunpack.c.l.b16 %v661
        %v670 = vunpack.c.l.b16 %v662
        %v671 = vunpack.c.h.b16 %v659
        %v672 = vunpack.c.h.b16 %v660
        %v673 = vunpack.c.h.b16 %v661
        %v674 = vunpack.c.h.b16 %v662
        %v675 = vpack.c.b16 %v668, %v667
        %v676 = vpack.c.b16 %v670, %v669
        %v677 = vpack.c.b16 %v672, %v671
        %v678 = vpack.c.b16 %v674, %v673
        %683 = vst [vmem:[#allocation2 + $0x20] sm:$0xff] %v675
        %684 = vst [vmem:[#allocation2 + $0x28] sm:$0xff] %v676
        %685 = vst [vmem:[#allocation2 + $0x30] sm:$0xff] %v677
        %686 = vst [vmem:[#allocation2 + $0x38] sm:$0xff] %v678
        %v687 = vld [vmem:[%s199 + $0x10] sm:$0xff]
        %v688 = vld [vmem:[%s199 + $0x50] sm:$0xff]
        %v689 = vadd.f32 %v570, %v687
        %v690 = vadd.f32 %v571, %v688
        %v691 = vpack.c.bf16 %v688, %v687
        %692 = vmatprep.subr.bf16.mxu0 %v419
        %693 = vmatpush1.bf16.msra.mxu0 %v418
        %694 = vmatprep.subr.bf16.mxu0 %v415
        %695 = vmatpush1.bf16.msra.mxu0 %v414
        %696 = vmatprep.subr.bf16.mxu0 %v411
        %697 = vmatpush1.bf16.msra.mxu0 %v410
        %698 = vmatprep.subr.bf16.mxu0 %v407
        %699 = vmatpush1.bf16.msra.mxu0 %v406
        %700 = vmatprep.subr.bf16.mxu0 %v403
        %701 = vmatpush1.bf16.msra.mxu0 %v402
        %702 = vmatprep.subr.bf16.mxu0 %v399
        %703 = vmatpush1.bf16.msra.mxu0 %v398
        %704 = vmatprep.subr.bf16.mxu0 %v395
        %705 = vmatpush1.bf16.msra.mxu0 %v394
        %706 = vmatprep.subr.bf16.mxu0 %v391
        %707 = vmatpush1.bf16.msra.mxu0 %v390
        %708 = vmatprep.subr.bf16.mxu0 0
        %709 = vmatpush2.bf16.msra.mxu0 0
        %710 = vmatprep.subr.bf16.mxu0 0
        %711 = vmatpush2.bf16.msra.mxu0 0
        %712 = vmatprep.subr.bf16.mxu0 0
        %713 = vmatpush2.bf16.msra.mxu0 0
        %714 = vmatprep.subr.bf16.mxu0 0
        %715 = vmatpush2.bf16.msra.mxu0 0
        %716 = vmatprep.subr.bf16.mxu0 0
        %717 = vmatpush2.bf16.msra.mxu0 0
        %718 = vmatprep.subr.bf16.mxu0 0
        %719 = vmatpush2.bf16.msra.mxu0 0
        %720 = vmatprep.subr.bf16.mxu0 0
        %721 = vmatpush2.bf16.msra.mxu0 0
        %722 = vmatprep.subr.bf16.mxu0 0
        %723 = vmatpush2.bf16.msra.mxu0 0
        %724 = vmatprep.mubr.bf16.mxu0 0
        %725 = vmatmul.mubr.bf16.gmra.mxu0 %v691
        %v726 = vpop.f32.mrf.mxu0
        %v727 = vadd.f32 %v277, %v726
        %v728 = vpop.f32.mrf.mxu0
        %v729 = vadd.f32 %v281, %v728
        %v730 = vpop.f32.mrf.mxu0
        %v731 = vadd.f32 %v277, %v730
        %v732 = vpop.f32.mrf.mxu0
        %v733 = vadd.f32 %v281, %v732
        %734 = vdwg.mxu0
        %735 = vmatprep.subr.bf16.mxu0 %v421
        %736 = vmatpush1.bf16.msra.mxu0 %v420
        %737 = vmatprep.subr.bf16.mxu0 %v417
        %738 = vmatpush1.bf16.msra.mxu0 %v416
        %739 = vmatprep.subr.bf16.mxu0 %v413
        %740 = vmatpush1.bf16.msra.mxu0 %v412
        %741 = vmatprep.subr.bf16.mxu0 %v409
        %742 = vmatpush1.bf16.msra.mxu0 %v408
        %743 = vmatprep.subr.bf16.mxu0 %v405
        %744 = vmatpush1.bf16.msra.mxu0 %v404
        %745 = vmatprep.subr.bf16.mxu0 %v401
        %746 = vmatpush1.bf16.msra.mxu0 %v400
        %747 = vmatprep.subr.bf16.mxu0 %v397
        %748 = vmatpush1.bf16.msra.mxu0 %v396
        %749 = vmatprep.subr.bf16.mxu0 %v393
        %750 = vmatpush1.bf16.msra.mxu0 %v392
        %751 = vmatprep.subr.bf16.mxu0 0
        %752 = vmatpush2.bf16.msra.mxu0 0
        %753 = vmatprep.subr.bf16.mxu0 0
        %754 = vmatpush2.bf16.msra.mxu0 0
        %755 = vmatprep.subr.bf16.mxu0 0
        %756 = vmatpush2.bf16.msra.mxu0 0
        %757 = vmatprep.subr.bf16.mxu0 0
        %758 = vmatpush2.bf16.msra.mxu0 0
        %759 = vmatprep.subr.bf16.mxu0 0
        %760 = vmatpush2.bf16.msra.mxu0 0
        %761 = vmatprep.subr.bf16.mxu0 0
        %762 = vmatpush2.bf16.msra.mxu0 0
        %763 = vmatprep.subr.bf16.mxu0 0
        %764 = vmatpush2.bf16.msra.mxu0 0
        %765 = vmatprep.subr.bf16.mxu0 0
        %766 = vmatpush2.bf16.msra.mxu0 0
        %767 = vmatprep.mubr.bf16.mxu0 0
        %768 = vmatmul.mubr.bf16.gmra.mxu0 %v691
        %v769 = vpop.f32.mrf.mxu0
        %v770 = vadd.f32 %v285, %v769
        %v771 = vpop.f32.mrf.mxu0
        %v772 = vadd.f32 %v289, %v771
        %v773 = vpop.f32.mrf.mxu0
        %v774 = vadd.f32 %v285, %v773
        %v775 = vpop.f32.mrf.mxu0
        %v776 = vadd.f32 %v289, %v775
        %777 = vdwg.mxu0
        %v778 = vpack.c.bf16 %v731, %v727
        %v779 = vpack.c.bf16 %v733, %v729
        %v780 = vpack.c.bf16 %v774, %v770
        %v781 = vpack.c.bf16 %v776, %v772
        %v786 = vunpack.c.l.b16 %v778
        %v787 = vunpack.c.l.b16 %v779
        %v788 = vunpack.c.l.b16 %v780
        %v789 = vunpack.c.l.b16 %v781
        %v790 = vunpack.c.h.b16 %v778
        %v791 = vunpack.c.h.b16 %v779
        %v792 = vunpack.c.h.b16 %v780
        %v793 = vunpack.c.h.b16 %v781
        %v794 = vpack.c.b16 %v787, %v786
        %v795 = vpack.c.b16 %v789, %v788
        %v796 = vpack.c.b16 %v791, %v790
        %v797 = vpack.c.b16 %v793, %v792
        %802 = vst [vmem:[#allocation2 + $0x40] sm:$0xff] %v794
        %803 = vst [vmem:[#allocation2 + $0x48] sm:$0xff] %v795
        %804 = vst [vmem:[#allocation2 + $0x50] sm:$0xff] %v796
        %805 = vst [vmem:[#allocation2 + $0x58] sm:$0xff] %v797
        %v806 = vld [vmem:[%s199 + $0x18] sm:$0xff]
        %v807 = vld [vmem:[%s199 + $0x58] sm:$0xff]
        %v808 = vadd.f32 %v689, %v806
        %v809 = vadd.f32 %v690, %v807
        %v810 = vpack.c.bf16 %v807, %v806
        %811 = vmatprep.subr.bf16.mxu0 %v419
        %812 = vmatpush1.bf16.msra.mxu0 %v418
        %813 = vmatprep.subr.bf16.mxu0 %v415
        %814 = vmatpush1.bf16.msra.mxu0 %v414
        %815 = vmatprep.subr.bf16.mxu0 %v411
        %816 = vmatpush1.bf16.msra.mxu0 %v410
        %817 = vmatprep.subr.bf16.mxu0 %v407
        %818 = vmatpush1.bf16.msra.mxu0 %v406
        %819 = vmatprep.subr.bf16.mxu0 %v403
        %820 = vmatpush1.bf16.msra.mxu0 %v402
        %821 = vmatprep.subr.bf16.mxu0 %v399
        %822 = vmatpush1.bf16.msra.mxu0 %v398
        %823 = vmatprep.subr.bf16.mxu0 %v395
        %824 = vmatpush1.bf16.msra.mxu0 %v394
        %825 = vmatprep.subr.bf16.mxu0 %v391
        %826 = vmatpush1.bf16.msra.mxu0 %v390
        %827 = vmatprep.subr.bf16.mxu0 0
        %828 = vmatpush2.bf16.msra.mxu0 0
        %829 = vmatprep.subr.bf16.mxu0 0
        %830 = vmatpush2.bf16.msra.mxu0 0
        %831 = vmatprep.subr.bf16.mxu0 0
        %832 = vmatpush2.bf16.msra.mxu0 0
        %833 = vmatprep.subr.bf16.mxu0 0
        %834 = vmatpush2.bf16.msra.mxu0 0
        %835 = vmatprep.subr.bf16.mxu0 0
        %836 = vmatpush2.bf16.msra.mxu0 0
        %837 = vmatprep.subr.bf16.mxu0 0
        %838 = vmatpush2.bf16.msra.mxu0 0
        %839 = vmatprep.subr.bf16.mxu0 0
        %840 = vmatpush2.bf16.msra.mxu0 0
        %841 = vmatprep.subr.bf16.mxu0 0
        %842 = vmatpush2.bf16.msra.mxu0 0
        %843 = vmatprep.mubr.bf16.mxu0 0
        %844 = vmatmul.mubr.bf16.gmra.mxu0 %v810
        %v845 = vpop.f32.mrf.mxu0
        %v846 = vadd.f32 %v277, %v845
        %v847 = vpop.f32.mrf.mxu0
        %v848 = vadd.f32 %v281, %v847
        %v849 = vpop.f32.mrf.mxu0
        %v850 = vadd.f32 %v277, %v849
        %v851 = vpop.f32.mrf.mxu0
        %v852 = vadd.f32 %v281, %v851
        %853 = vdwg.mxu0
        %854 = vmatprep.subr.bf16.mxu0 %v421
        %855 = vmatpush1.bf16.msra.mxu0 %v420
        %856 = vmatprep.subr.bf16.mxu0 %v417
        %857 = vmatpush1.bf16.msra.mxu0 %v416
        %858 = vmatprep.subr.bf16.mxu0 %v413
        %859 = vmatpush1.bf16.msra.mxu0 %v412
        %860 = vmatprep.subr.bf16.mxu0 %v409
        %861 = vmatpush1.bf16.msra.mxu0 %v408
        %862 = vmatprep.subr.bf16.mxu0 %v405
        %863 = vmatpush1.bf16.msra.mxu0 %v404
        %864 = vmatprep.subr.bf16.mxu0 %v401
        %865 = vmatpush1.bf16.msra.mxu0 %v400
        %866 = vmatprep.subr.bf16.mxu0 %v397
        %867 = vmatpush1.bf16.msra.mxu0 %v396
        %868 = vmatprep.subr.bf16.mxu0 %v393
        %869 = vmatpush1.bf16.msra.mxu0 %v392
        %870 = vmatprep.subr.bf16.mxu0 0
        %871 = vmatpush2.bf16.msra.mxu0 0
        %872 = vmatprep.subr.bf16.mxu0 0
        %873 = vmatpush2.bf16.msra.mxu0 0
        %874 = vmatprep.subr.bf16.mxu0 0
        %875 = vmatpush2.bf16.msra.mxu0 0
        %876 = vmatprep.subr.bf16.mxu0 0
        %877 = vmatpush2.bf16.msra.mxu0 0
        %878 = vmatprep.subr.bf16.mxu0 0
        %879 = vmatpush2.bf16.msra.mxu0 0
        %880 = vmatprep.subr.bf16.mxu0 0
        %881 = vmatpush2.bf16.msra.mxu0 0
        %882 = vmatprep.subr.bf16.mxu0 0
        %883 = vmatpush2.bf16.msra.mxu0 0
        %884 = vmatprep.subr.bf16.mxu0 0
        %885 = vmatpush2.bf16.msra.mxu0 0
        %886 = vmatprep.mubr.bf16.mxu0 0
        %887 = vmatmul.mubr.bf16.gmra.mxu0 %v810
        %v888 = vpop.f32.mrf.mxu0
        %v889 = vadd.f32 %v285, %v888
        %v890 = vpop.f32.mrf.mxu0
        %v891 = vadd.f32 %v289, %v890
        %v892 = vpop.f32.mrf.mxu0
        %v893 = vadd.f32 %v285, %v892
        %v894 = vpop.f32.mrf.mxu0
        %v895 = vadd.f32 %v289, %v894
        %896 = vdwg.mxu0
        %v897 = vpack.c.bf16 %v850, %v846
        %v898 = vpack.c.bf16 %v852, %v848
        %v899 = vpack.c.bf16 %v893, %v889
        %v900 = vpack.c.bf16 %v895, %v891
        %v905 = vunpack.c.l.b16 %v897
        %v906 = vunpack.c.l.b16 %v898
        %v907 = vunpack.c.l.b16 %v899
        %v908 = vunpack.c.l.b16 %v900
        %v909 = vunpack.c.h.b16 %v897
        %v910 = vunpack.c.h.b16 %v898
        %v911 = vunpack.c.h.b16 %v899
        %v912 = vunpack.c.h.b16 %v900
        %v913 = vpack.c.b16 %v906, %v905
        %v914 = vpack.c.b16 %v908, %v907
        %v915 = vpack.c.b16 %v910, %v909
        %v916 = vpack.c.b16 %v912, %v911
        %921 = vst [vmem:[#allocation2 + $0x60] sm:$0xff] %v913
        %922 = vst [vmem:[#allocation2 + $0x68] sm:$0xff] %v914
        %923 = vst [vmem:[#allocation2 + $0x70] sm:$0xff] %v915
        %924 = vst [vmem:[#allocation2 + $0x78] sm:$0xff] %v916
        %v925 = vld [vmem:[%s199 + $0x20] sm:$0xff]
        %v926 = vld [vmem:[%s199 + $0x60] sm:$0xff]
        %v927 = vadd.f32 %v808, %v925
        %v928 = vadd.f32 %v809, %v926
        %v929 = vpack.c.bf16 %v926, %v925
        %930 = vmatprep.subr.bf16.mxu0 %v419
        %931 = vmatpush1.bf16.msra.mxu0 %v418
        %932 = vmatprep.subr.bf16.mxu0 %v415
        %933 = vmatpush1.bf16.msra.mxu0 %v414
        %934 = vmatprep.subr.bf16.mxu0 %v411
        %935 = vmatpush1.bf16.msra.mxu0 %v410
        %936 = vmatprep.subr.bf16.mxu0 %v407
        %937 = vmatpush1.bf16.msra.mxu0 %v406
        %938 = vmatprep.subr.bf16.mxu0 %v403
        %939 = vmatpush1.bf16.msra.mxu0 %v402
        %940 = vmatprep.subr.bf16.mxu0 %v399
        %941 = vmatpush1.bf16.msra.mxu0 %v398
        %942 = vmatprep.subr.bf16.mxu0 %v395
        %943 = vmatpush1.bf16.msra.mxu0 %v394
        %944 = vmatprep.subr.bf16.mxu0 %v391
        %945 = vmatpush1.bf16.msra.mxu0 %v390
        %946 = vmatprep.subr.bf16.mxu0 0
        %947 = vmatpush2.bf16.msra.mxu0 0
        %948 = vmatprep.subr.bf16.mxu0 0
        %949 = vmatpush2.bf16.msra.mxu0 0
        %950 = vmatprep.subr.bf16.mxu0 0
        %951 = vmatpush2.bf16.msra.mxu0 0
        %952 = vmatprep.subr.bf16.mxu0 0
        %953 = vmatpush2.bf16.msra.mxu0 0
        %954 = vmatprep.subr.bf16.mxu0 0
        %955 = vmatpush2.bf16.msra.mxu0 0
        %956 = vmatprep.subr.bf16.mxu0 0
        %957 = vmatpush2.bf16.msra.mxu0 0
        %958 = vmatprep.subr.bf16.mxu0 0
        %959 = vmatpush2.bf16.msra.mxu0 0
        %960 = vmatprep.subr.bf16.mxu0 0
        %961 = vmatpush2.bf16.msra.mxu0 0
        %962 = vmatprep.mubr.bf16.mxu0 0
        %963 = vmatmul.mubr.bf16.gmra.mxu0 %v929
        %v964 = vpop.f32.mrf.mxu0
        %v965 = vadd.f32 %v277, %v964
        %v966 = vpop.f32.mrf.mxu0
        %v967 = vadd.f32 %v281, %v966
        %v968 = vpop.f32.mrf.mxu0
        %v969 = vadd.f32 %v277, %v968
        %v970 = vpop.f32.mrf.mxu0
        %v971 = vadd.f32 %v281, %v970
        %972 = vdwg.mxu0
        %973 = vmatprep.subr.bf16.mxu0 %v421
        %974 = vmatpush1.bf16.msra.mxu0 %v420
        %975 = vmatprep.subr.bf16.mxu0 %v417
        %976 = vmatpush1.bf16.msra.mxu0 %v416
        %977 = vmatprep.subr.bf16.mxu0 %v413
        %978 = vmatpush1.bf16.msra.mxu0 %v412
        %979 = vmatprep.subr.bf16.mxu0 %v409
        %980 = vmatpush1.bf16.msra.mxu0 %v408
        %981 = vmatprep.subr.bf16.mxu0 %v405
        %982 = vmatpush1.bf16.msra.mxu0 %v404
        %983 = vmatprep.subr.bf16.mxu0 %v401
        %984 = vmatpush1.bf16.msra.mxu0 %v400
        %985 = vmatprep.subr.bf16.mxu0 %v397
        %986 = vmatpush1.bf16.msra.mxu0 %v396
        %987 = vmatprep.subr.bf16.mxu0 %v393
        %988 = vmatpush1.bf16.msra.mxu0 %v392
        %989 = vmatprep.subr.bf16.mxu0 0
        %990 = vmatpush2.bf16.msra.mxu0 0
        %991 = vmatprep.subr.bf16.mxu0 0
        %992 = vmatpush2.bf16.msra.mxu0 0
        %993 = vmatprep.subr.bf16.mxu0 0
        %994 = vmatpush2.bf16.msra.mxu0 0
        %995 = vmatprep.subr.bf16.mxu0 0
        %996 = vmatpush2.bf16.msra.mxu0 0
        %997 = vmatprep.subr.bf16.mxu0 0
        %998 = vmatpush2.bf16.msra.mxu0 0
        %999 = vmatprep.subr.bf16.mxu0 0
        %1000 = vmatpush2.bf16.msra.mxu0 0
        %1001 = vmatprep.subr.bf16.mxu0 0
        %1002 = vmatpush2.bf16.msra.mxu0 0
        %1003 = vmatprep.subr.bf16.mxu0 0
        %1004 = vmatpush2.bf16.msra.mxu0 0
        %1005 = vmatprep.mubr.bf16.mxu0 0
        %1006 = vmatmul.mubr.bf16.gmra.mxu0 %v929
        %v1007 = vpop.f32.mrf.mxu0
        %v1008 = vadd.f32 %v285, %v1007
        %v1009 = vpop.f32.mrf.mxu0
        %v1010 = vadd.f32 %v289, %v1009
        %v1011 = vpop.f32.mrf.mxu0
        %v1012 = vadd.f32 %v285, %v1011
        %v1013 = vpop.f32.mrf.mxu0
        %v1014 = vadd.f32 %v289, %v1013
        %1015 = vdwg.mxu0
        %v1016 = vpack.c.bf16 %v969, %v965
        %v1017 = vpack.c.bf16 %v971, %v967
        %v1018 = vpack.c.bf16 %v1012, %v1008
        %v1019 = vpack.c.bf16 %v1014, %v1010
        %v1024 = vunpack.c.l.b16 %v1016
        %v1025 = vunpack.c.l.b16 %v1017
        %v1026 = vunpack.c.l.b16 %v1018
        %v1027 = vunpack.c.l.b16 %v1019
        %v1028 = vunpack.c.h.b16 %v1016
        %v1029 = vunpack.c.h.b16 %v1017
        %v1030 = vunpack.c.h.b16 %v1018
        %v1031 = vunpack.c.h.b16 %v1019
        %v1032 = vpack.c.b16 %v1025, %v1024
        %v1033 = vpack.c.b16 %v1027, %v1026
        %v1034 = vpack.c.b16 %v1029, %v1028
        %v1035 = vpack.c.b16 %v1031, %v1030
        %1040 = vst [vmem:[#allocation2 + $0x80] sm:$0xff] %v1032
        %1041 = vst [vmem:[#allocation2 + $0x88] sm:$0xff] %v1033
        %1042 = vst [vmem:[#allocation2 + $0x90] sm:$0xff] %v1034
        %1043 = vst [vmem:[#allocation2 + $0x98] sm:$0xff] %v1035
        %v1044 = vld [vmem:[%s199 + $0x28] sm:$0xff]
        %v1045 = vld [vmem:[%s199 + $0x68] sm:$0xff]
        %v1046 = vadd.f32 %v927, %v1044
        %v1047 = vadd.f32 %v928, %v1045
        %v1048 = vpack.c.bf16 %v1045, %v1044
        %1049 = vmatprep.subr.bf16.mxu0 %v419
        %1050 = vmatpush1.bf16.msra.mxu0 %v418
        %1051 = vmatprep.subr.bf16.mxu0 %v415
        %1052 = vmatpush1.bf16.msra.mxu0 %v414
        %1053 = vmatprep.subr.bf16.mxu0 %v411
        %1054 = vmatpush1.bf16.msra.mxu0 %v410
        %1055 = vmatprep.subr.bf16.mxu0 %v407
        %1056 = vmatpush1.bf16.msra.mxu0 %v406
        %1057 = vmatprep.subr.bf16.mxu0 %v403
        %1058 = vmatpush1.bf16.msra.mxu0 %v402
        %1059 = vmatprep.subr.bf16.mxu0 %v399
        %1060 = vmatpush1.bf16.msra.mxu0 %v398
        %1061 = vmatprep.subr.bf16.mxu0 %v395
        %1062 = vmatpush1.bf16.msra.mxu0 %v394
        %1063 = vmatprep.subr.bf16.mxu0 %v391
        %1064 = vmatpush1.bf16.msra.mxu0 %v390
        %1065 = vmatprep.subr.bf16.mxu0 0
        %1066 = vmatpush2.bf16.msra.mxu0 0
        %1067 = vmatprep.subr.bf16.mxu0 0
        %1068 = vmatpush2.bf16.msra.mxu0 0
        %1069 = vmatprep.subr.bf16.mxu0 0
        %1070 = vmatpush2.bf16.msra.mxu0 0
        %1071 = vmatprep.subr.bf16.mxu0 0
        %1072 = vmatpush2.bf16.msra.mxu0 0
        %1073 = vmatprep.subr.bf16.mxu0 0
        %1074 = vmatpush2.bf16.msra.mxu0 0
        %1075 = vmatprep.subr.bf16.mxu0 0
        %1076 = vmatpush2.bf16.msra.mxu0 0
        %1077 = vmatprep.subr.bf16.mxu0 0
        %1078 = vmatpush2.bf16.msra.mxu0 0
        %1079 = vmatprep.subr.bf16.mxu0 0
        %1080 = vmatpush2.bf16.msra.mxu0 0
        %1081 = vmatprep.mubr.bf16.mxu0 0
        %1082 = vmatmul.mubr.bf16.gmra.mxu0 %v1048
        %v1083 = vpop.f32.mrf.mxu0
        %v1084 = vadd.f32 %v277, %v1083
        %v1085 = vpop.f32.mrf.mxu0
        %v1086 = vadd.f32 %v281, %v1085
        %v1087 = vpop.f32.mrf.mxu0
        %v1088 = vadd.f32 %v277, %v1087
        %v1089 = vpop.f32.mrf.mxu0
        %v1090 = vadd.f32 %v281, %v1089
        %1091 = vdwg.mxu0
        %1092 = vmatprep.subr.bf16.mxu0 %v421
        %1093 = vmatpush1.bf16.msra.mxu0 %v420
        %1094 = vmatprep.subr.bf16.mxu0 %v417
        %1095 = vmatpush1.bf16.msra.mxu0 %v416
        %1096 = vmatprep.subr.bf16.mxu0 %v413
        %1097 = vmatpush1.bf16.msra.mxu0 %v412
        %1098 = vmatprep.subr.bf16.mxu0 %v409
        %1099 = vmatpush1.bf16.msra.mxu0 %v408
        %1100 = vmatprep.subr.bf16.mxu0 %v405
        %1101 = vmatpush1.bf16.msra.mxu0 %v404
        %1102 = vmatprep.subr.bf16.mxu0 %v401
        %1103 = vmatpush1.bf16.msra.mxu0 %v400
        %1104 = vmatprep.subr.bf16.mxu0 %v397
        %1105 = vmatpush1.bf16.msra.mxu0 %v396
        %1106 = vmatprep.subr.bf16.mxu0 %v393
        %1107 = vmatpush1.bf16.msra.mxu0 %v392
        %1108 = vmatprep.subr.bf16.mxu0 0
        %1109 = vmatpush2.bf16.msra.mxu0 0
        %1110 = vmatprep.subr.bf16.mxu0 0
        %1111 = vmatpush2.bf16.msra.mxu0 0
        %1112 = vmatprep.subr.bf16.mxu0 0
        %1113 = vmatpush2.bf16.msra.mxu0 0
        %1114 = vmatprep.subr.bf16.mxu0 0
        %1115 = vmatpush2.bf16.msra.mxu0 0
        %1116 = vmatprep.subr.bf16.mxu0 0
        %1117 = vmatpush2.bf16.msra.mxu0 0
        %1118 = vmatprep.subr.bf16.mxu0 0
        %1119 = vmatpush2.bf16.msra.mxu0 0
        %1120 = vmatprep.subr.bf16.mxu0 0
        %1121 = vmatpush2.bf16.msra.mxu0 0
        %1122 = vmatprep.subr.bf16.mxu0 0
        %1123 = vmatpush2.bf16.msra.mxu0 0
        %1124 = vmatprep.mubr.bf16.mxu0 0
        %1125 = vmatmul.mubr.bf16.gmra.mxu0 %v1048
        %v1126 = vpop.f32.mrf.mxu0
        %v1127 = vadd.f32 %v285, %v1126
        %v1128 = vpop.f32.mrf.mxu0
        %v1129 = vadd.f32 %v289, %v1128
        %v1130 = vpop.f32.mrf.mxu0
        %v1131 = vadd.f32 %v285, %v1130
        %v1132 = vpop.f32.mrf.mxu0
        %v1133 = vadd.f32 %v289, %v1132
        %1134 = vdwg.mxu0
        %v1135 = vpack.c.bf16 %v1088, %v1084
        %v1136 = vpack.c.bf16 %v1090, %v1086
        %v1137 = vpack.c.bf16 %v1131, %v1127
        %v1138 = vpack.c.bf16 %v1133, %v1129
        %v1143 = vunpack.c.l.b16 %v1135
        %v1144 = vunpack.c.l.b16 %v1136
        %v1145 = vunpack.c.l.b16 %v1137
        %v1146 = vunpack.c.l.b16 %v1138
        %v1147 = vunpack.c.h.b16 %v1135
        %v1148 = vunpack.c.h.b16 %v1136
        %v1149 = vunpack.c.h.b16 %v1137
        %v1150 = vunpack.c.h.b16 %v1138
        %v1151 = vpack.c.b16 %v1144, %v1143
        %v1152 = vpack.c.b16 %v1146, %v1145
        %v1153 = vpack.c.b16 %v1148, %v1147
        %v1154 = vpack.c.b16 %v1150, %v1149
        %1159 = vst [vmem:[#allocation2 + $0xa0] sm:$0xff] %v1151
        %1160 = vst [vmem:[#allocation2 + $0xa8] sm:$0xff] %v1152
        %1161 = vst [vmem:[#allocation2 + $0xb0] sm:$0xff] %v1153
        %1162 = vst [vmem:[#allocation2 + $0xb8] sm:$0xff] %v1154
        %v1163 = vld [vmem:[%s199 + $0x30] sm:$0xff]
        %v1164 = vld [vmem:[%s199 + $0x70] sm:$0xff]
        %v1165 = vadd.f32 %v1046, %v1163
        %v1166 = vadd.f32 %v1047, %v1164
        %v1167 = vpack.c.bf16 %v1164, %v1163
        %1168 = vmatprep.subr.bf16.mxu0 %v419
        %1169 = vmatpush1.bf16.msra.mxu0 %v418
        %1170 = vmatprep.subr.bf16.mxu0 %v415
        %1171 = vmatpush1.bf16.msra.mxu0 %v414
        %1172 = vmatprep.subr.bf16.mxu0 %v411
        %1173 = vmatpush1.bf16.msra.mxu0 %v410
        %1174 = vmatprep.subr.bf16.mxu0 %v407
        %1175 = vmatpush1.bf16.msra.mxu0 %v406
        %1176 = vmatprep.subr.bf16.mxu0 %v403
        %1177 = vmatpush1.bf16.msra.mxu0 %v402
        %1178 = vmatprep.subr.bf16.mxu0 %v399
        %1179 = vmatpush1.bf16.msra.mxu0 %v398
        %1180 = vmatprep.subr.bf16.mxu0 %v395
        %1181 = vmatpush1.bf16.msra.mxu0 %v394
        %1182 = vmatprep.subr.bf16.mxu0 %v391
        %1183 = vmatpush1.bf16.msra.mxu0 %v390
        %1184 = vmatprep.subr.bf16.mxu0 0
        %1185 = vmatpush2.bf16.msra.mxu0 0
        %1186 = vmatprep.subr.bf16.mxu0 0
        %1187 = vmatpush2.bf16.msra.mxu0 0
        %1188 = vmatprep.subr.bf16.mxu0 0
        %1189 = vmatpush2.bf16.msra.mxu0 0
        %1190 = vmatprep.subr.bf16.mxu0 0
        %1191 = vmatpush2.bf16.msra.mxu0 0
        %1192 = vmatprep.subr.bf16.mxu0 0
        %1193 = vmatpush2.bf16.msra.mxu0 0
        %1194 = vmatprep.subr.bf16.mxu0 0
        %1195 = vmatpush2.bf16.msra.mxu0 0
        %1196 = vmatprep.subr.bf16.mxu0 0
        %1197 = vmatpush2.bf16.msra.mxu0 0
        %1198 = vmatprep.subr.bf16.mxu0 0
        %1199 = vmatpush2.bf16.msra.mxu0 0
        %1200 = vmatprep.mubr.bf16.mxu0 0
        %1201 = vmatmul.mubr.bf16.gmra.mxu0 %v1167
        %v1202 = vpop.f32.mrf.mxu0
        %v1203 = vadd.f32 %v277, %v1202
        %v1204 = vpop.f32.mrf.mxu0
        %v1205 = vadd.f32 %v281, %v1204
        %v1206 = vpop.f32.mrf.mxu0
        %v1207 = vadd.f32 %v277, %v1206
        %v1208 = vpop.f32.mrf.mxu0
        %v1209 = vadd.f32 %v281, %v1208
        %1210 = vdwg.mxu0
        %1211 = vmatprep.subr.bf16.mxu0 %v421
        %1212 = vmatpush1.bf16.msra.mxu0 %v420
        %1213 = vmatprep.subr.bf16.mxu0 %v417
        %1214 = vmatpush1.bf16.msra.mxu0 %v416
        %1215 = vmatprep.subr.bf16.mxu0 %v413
        %1216 = vmatpush1.bf16.msra.mxu0 %v412
        %1217 = vmatprep.subr.bf16.mxu0 %v409
        %1218 = vmatpush1.bf16.msra.mxu0 %v408
        %1219 = vmatprep.subr.bf16.mxu0 %v405
        %1220 = vmatpush1.bf16.msra.mxu0 %v404
        %1221 = vmatprep.subr.bf16.mxu0 %v401
        %1222 = vmatpush1.bf16.msra.mxu0 %v400
        %1223 = vmatprep.subr.bf16.mxu0 %v397
        %1224 = vmatpush1.bf16.msra.mxu0 %v396
        %1225 = vmatprep.subr.bf16.mxu0 %v393
        %1226 = vmatpush1.bf16.msra.mxu0 %v392
        %1227 = vmatprep.subr.bf16.mxu0 0
        %1228 = vmatpush2.bf16.msra.mxu0 0
        %1229 = vmatprep.subr.bf16.mxu0 0
        %1230 = vmatpush2.bf16.msra.mxu0 0
        %1231 = vmatprep.subr.bf16.mxu0 0
        %1232 = vmatpush2.bf16.msra.mxu0 0
        %1233 = vmatprep.subr.bf16.mxu0 0
        %1234 = vmatpush2.bf16.msra.mxu0 0
        %1235 = vmatprep.subr.bf16.mxu0 0
        %1236 = vmatpush2.bf16.msra.mxu0 0
        %1237 = vmatprep.subr.bf16.mxu0 0
        %1238 = vmatpush2.bf16.msra.mxu0 0
        %1239 = vmatprep.subr.bf16.mxu0 0
        %1240 = vmatpush2.bf16.msra.mxu0 0
        %1241 = vmatprep.subr.bf16.mxu0 0
        %1242 = vmatpush2.bf16.msra.mxu0 0
        %1243 = vmatprep.mubr.bf16.mxu0 0
        %1244 = vmatmul.mubr.bf16.gmra.mxu0 %v1167
        %v1245 = vpop.f32.mrf.mxu0
        %v1246 = vadd.f32 %v285, %v1245
        %v1247 = vpop.f32.mrf.mxu0
        %v1248 = vadd.f32 %v289, %v1247
        %v1249 = vpop.f32.mrf.mxu0
        %v1250 = vadd.f32 %v285, %v1249
        %v1251 = vpop.f32.mrf.mxu0
        %v1252 = vadd.f32 %v289, %v1251
        %1253 = vdwg.mxu0
        %v1254 = vpack.c.bf16 %v1207, %v1203
        %v1255 = vpack.c.bf16 %v1209, %v1205
        %v1256 = vpack.c.bf16 %v1250, %v1246
        %v1257 = vpack.c.bf16 %v1252, %v1248
        %v1262 = vunpack.c.l.b16 %v1254
        %v1263 = vunpack.c.l.b16 %v1255
        %v1264 = vunpack.c.l.b16 %v1256
        %v1265 = vunpack.c.l.b16 %v1257
        %v1266 = vunpack.c.h.b16 %v1254
        %v1267 = vunpack.c.h.b16 %v1255
        %v1268 = vunpack.c.h.b16 %v1256
        %v1269 = vunpack.c.h.b16 %v1257
        %v1270 = vpack.c.b16 %v1263, %v1262
        %v1271 = vpack.c.b16 %v1265, %v1264
        %v1272 = vpack.c.b16 %v1267, %v1266
        %v1273 = vpack.c.b16 %v1269, %v1268
        %1278 = vst [vmem:[#allocation2 + $0xc0] sm:$0xff] %v1270
        %1279 = vst [vmem:[#allocation2 + $0xc8] sm:$0xff] %v1271
        %1280 = vst [vmem:[#allocation2 + $0xd0] sm:$0xff] %v1272
        %1281 = vst [vmem:[#allocation2 + $0xd8] sm:$0xff] %v1273
        %v1282 = vld [vmem:[%s199 + $0x38] sm:$0xff]
        %v1283 = vld [vmem:[%s199 + $0x78] sm:$0xff]
        %v1284 = vadd.f32 %v1165, %v1282
        %v1285 = vadd.f32 %v1166, %v1283
        %v1286 = vpack.c.bf16 %v1283, %v1282
        %1287 = vmatprep.subr.bf16.mxu0 %v419
        %1288 = vmatpush1.bf16.msra.mxu0 %v418
        %1289 = vmatprep.subr.bf16.mxu0 %v415
        %1290 = vmatpush1.bf16.msra.mxu0 %v414
        %1291 = vmatprep.subr.bf16.mxu0 %v411
        %1292 = vmatpush1.bf16.msra.mxu0 %v410
        %1293 = vmatprep.subr.bf16.mxu0 %v407
        %1294 = vmatpush1.bf16.msra.mxu0 %v406
        %1295 = vmatprep.subr.bf16.mxu0 %v403
        %1296 = vmatpush1.bf16.msra.mxu0 %v402
        %1297 = vmatprep.subr.bf16.mxu0 %v399
        %1298 = vmatpush1.bf16.msra.mxu0 %v398
        %1299 = vmatprep.subr.bf16.mxu0 %v395
        %1300 = vmatpush1.bf16.msra.mxu0 %v394
        %1301 = vmatprep.subr.bf16.mxu0 %v391
        %1302 = vmatpush1.bf16.msra.mxu0 %v390
        %1303 = vmatprep.subr.bf16.mxu0 0
        %1304 = vmatpush2.bf16.msra.mxu0 0
        %1305 = vmatprep.subr.bf16.mxu0 0
        %1306 = vmatpush2.bf16.msra.mxu0 0
        %1307 = vmatprep.subr.bf16.mxu0 0
        %1308 = vmatpush2.bf16.msra.mxu0 0
        %1309 = vmatprep.subr.bf16.mxu0 0
        %1310 = vmatpush2.bf16.msra.mxu0 0
        %1311 = vmatprep.subr.bf16.mxu0 0
        %1312 = vmatpush2.bf16.msra.mxu0 0
        %1313 = vmatprep.subr.bf16.mxu0 0
        %1314 = vmatpush2.bf16.msra.mxu0 0
        %1315 = vmatprep.subr.bf16.mxu0 0
        %1316 = vmatpush2.bf16.msra.mxu0 0
        %1317 = vmatprep.subr.bf16.mxu0 0
        %1318 = vmatpush2.bf16.msra.mxu0 0
        %1319 = vmatprep.mubr.bf16.mxu0 0
        %1320 = vmatmul.mubr.bf16.gmra.mxu0 %v1286
        %v1321 = vpop.f32.mrf.mxu0
        %v1322 = vadd.f32 %v277, %v1321
        %v1323 = vpop.f32.mrf.mxu0
        %v1324 = vadd.f32 %v281, %v1323
        %v1325 = vpop.f32.mrf.mxu0
        %v1326 = vadd.f32 %v277, %v1325
        %v1327 = vpop.f32.mrf.mxu0
        %v1328 = vadd.f32 %v281, %v1327
        %1329 = vdwg.mxu0
        %1330 = vmatprep.subr.bf16.mxu0 %v421
        %1331 = vmatpush1.bf16.msra.mxu0 %v420
        %1332 = vmatprep.subr.bf16.mxu0 %v417
        %1333 = vmatpush1.bf16.msra.mxu0 %v416
        %1334 = vmatprep.subr.bf16.mxu0 %v413
        %1335 = vmatpush1.bf16.msra.mxu0 %v412
        %1336 = vmatprep.subr.bf16.mxu0 %v409
        %1337 = vmatpush1.bf16.msra.mxu0 %v408
        %1338 = vmatprep.subr.bf16.mxu0 %v405
        %1339 = vmatpush1.bf16.msra.mxu0 %v404
        %1340 = vmatprep.subr.bf16.mxu0 %v401
        %1341 = vmatpush1.bf16.msra.mxu0 %v400
        %1342 = vmatprep.subr.bf16.mxu0 %v397
        %1343 = vmatpush1.bf16.msra.mxu0 %v396
        %1344 = vmatprep.subr.bf16.mxu0 %v393
        %1345 = vmatpush1.bf16.msra.mxu0 %v392
        %1346 = vmatprep.subr.bf16.mxu0 0
        %1347 = vmatpush2.bf16.msra.mxu0 0
        %1348 = vmatprep.subr.bf16.mxu0 0
        %1349 = vmatpush2.bf16.msra.mxu0 0
        %1350 = vmatprep.subr.bf16.mxu0 0
        %1351 = vmatpush2.bf16.msra.mxu0 0
        %1352 = vmatprep.subr.bf16.mxu0 0
        %1353 = vmatpush2.bf16.msra.mxu0 0
        %1354 = vmatprep.subr.bf16.mxu0 0
        %1355 = vmatpush2.bf16.msra.mxu0 0
        %1356 = vmatprep.subr.bf16.mxu0 0
        %1357 = vmatpush2.bf16.msra.mxu0 0
        %1358 = vmatprep.subr.bf16.mxu0 0
        %1359 = vmatpush2.bf16.msra.mxu0 0
        %1360 = vmatprep.subr.bf16.mxu0 0
        %1361 = vmatpush2.bf16.msra.mxu0 0
        %1362 = vmatprep.mubr.bf16.mxu0 0
        %1363 = vmatmul.mubr.bf16.gmra.mxu0 %v1286
        %v1364 = vpop.f32.mrf.mxu0
        %v1365 = vadd.f32 %v285, %v1364
        %v1366 = vpop.f32.mrf.mxu0
        %v1367 = vadd.f32 %v289, %v1366
        %v1368 = vpop.f32.mrf.mxu0
        %v1369 = vadd.f32 %v285, %v1368
        %v1370 = vpop.f32.mrf.mxu0
        %v1371 = vadd.f32 %v289, %v1370
        %1372 = vdwg.mxu0
        %v1373 = vpack.c.bf16 %v1326, %v1322
        %v1374 = vpack.c.bf16 %v1328, %v1324
        %v1375 = vpack.c.bf16 %v1369, %v1365
        %v1376 = vpack.c.bf16 %v1371, %v1367
        %v1381 = vunpack.c.l.b16 %v1373
        %v1382 = vunpack.c.l.b16 %v1374
        %v1383 = vunpack.c.l.b16 %v1375
        %v1384 = vunpack.c.l.b16 %v1376
        %v1385 = vunpack.c.h.b16 %v1373
        %v1386 = vunpack.c.h.b16 %v1374
        %v1387 = vunpack.c.h.b16 %v1375
        %v1388 = vunpack.c.h.b16 %v1376
        %v1389 = vpack.c.b16 %v1382, %v1381
        %v1390 = vpack.c.b16 %v1384, %v1383
        %v1391 = vpack.c.b16 %v1386, %v1385
        %v1392 = vpack.c.b16 %v1388, %v1387
        %1397 = vst [vmem:[#allocation2 + $0xe0] sm:$0xff] %v1389
        %1398 = vst [vmem:[#allocation2 + $0xe8] sm:$0xff] %v1390
        %1399 = vst [vmem:[#allocation2 + $0xf0] sm:$0xff] %v1391
        %1400 = vst [vmem:[#allocation2 + $0xf8] sm:$0xff] %v1392
        %v1401 = vmul.f32 %v1284, 0.125
        %v1402 = vmul.f32 %v1285, 0.125
        %1403 = vst [vmem:[%s193] sm:$0xff] %v1401
        %1404 = vst [vmem:[%s193 + $0x8] sm:$0xff] %v1402
        %s1405 = smul.u32 0, 4
        %s1406 = smul.addr %s1405, 4
        %s1407 = scalar_lea.vmem [#allocation2], %s1406
        %v1408 = vld [vmem:[%s1407] sm:$0xff]
        %v1409 = vld [vmem:[%s1407 + $0x8] sm:$0xff]
        %v1410 = vunpack.c.l.bf16 %v1408
        %v1411 = vunpack.c.h.bf16 %v1408
        %v1412 = vunpack.c.l.bf16 %v1409
        %v1413 = vunpack.c.h.bf16 %v1409
        %v1446 = vunpack.c.l.b16 %v235
        %v1447 = vunpack.c.h.b16 %v235
        %v1448 = vunpack.c.l.b16 %v236
        %v1449 = vunpack.c.h.b16 %v236
        %v1450 = vunpack.c.l.b16 %v237
        %v1451 = vunpack.c.h.b16 %v237
        %v1452 = vunpack.c.l.b16 %v238
        %v1453 = vunpack.c.h.b16 %v238
        %v1454 = vunpack.c.l.b16 %v239
        %v1455 = vunpack.c.h.b16 %v239
        %v1456 = vunpack.c.l.b16 %v240
        %v1457 = vunpack.c.h.b16 %v240
        %v1458 = vunpack.c.l.b16 %v241
        %v1459 = vunpack.c.h.b16 %v241
        %v1460 = vunpack.c.l.b16 %v242
        %v1461 = vunpack.c.h.b16 %v242
        %v1462 = vunpack.c.l.b16 %v243
        %v1463 = vunpack.c.h.b16 %v243
        %v1464 = vunpack.c.l.b16 %v244
        %v1465 = vunpack.c.h.b16 %v244
        %v1466 = vunpack.c.l.b16 %v245
        %v1467 = vunpack.c.h.b16 %v245
        %v1468 = vunpack.c.l.b16 %v246
        %v1469 = vunpack.c.h.b16 %v246
        %v1470 = vunpack.c.l.b16 %v247
        %v1471 = vunpack.c.h.b16 %v247
        %v1472 = vunpack.c.l.b16 %v248
        %v1473 = vunpack.c.h.b16 %v248
        %v1474 = vunpack.c.l.b16 %v249
        %v1475 = vunpack.c.h.b16 %v249
        %v1476 = vunpack.c.l.b16 %v250
        %v1477 = vunpack.c.h.b16 %v250
        %v1478 = vunpack.c.l.b16 %v251
        %v1479 = vunpack.c.h.b16 %v251
        %v1480 = vunpack.c.l.b16 %v252
        %v1481 = vunpack.c.h.b16 %v252
        %v1482 = vunpack.c.l.b16 %v253
        %v1483 = vunpack.c.h.b16 %v253
        %v1484 = vunpack.c.l.b16 %v254
        %v1485 = vunpack.c.h.b16 %v254
        %v1486 = vunpack.c.l.b16 %v255
        %v1487 = vunpack.c.h.b16 %v255
        %v1488 = vunpack.c.l.b16 %v256
        %v1489 = vunpack.c.h.b16 %v256
        %v1490 = vunpack.c.l.b16 %v257
        %v1491 = vunpack.c.h.b16 %v257
        %v1492 = vunpack.c.l.b16 %v258
        %v1493 = vunpack.c.h.b16 %v258
        %v1494 = vunpack.c.l.b16 %v259
        %v1495 = vunpack.c.h.b16 %v259
        %v1496 = vunpack.c.l.b16 %v260
        %v1497 = vunpack.c.h.b16 %v260
        %v1498 = vunpack.c.l.b16 %v261
        %v1499 = vunpack.c.h.b16 %v261
        %v1500 = vunpack.c.l.b16 %v262
        %v1501 = vunpack.c.h.b16 %v262
        %v1502 = vunpack.c.l.b16 %v263
        %v1503 = vunpack.c.h.b16 %v263
        %v1504 = vunpack.c.l.b16 %v264
        %v1505 = vunpack.c.h.b16 %v264
        %v1506 = vunpack.c.l.b16 %v265
        %v1507 = vunpack.c.h.b16 %v265
        %v1508 = vunpack.c.l.b16 %v266
        %v1509 = vunpack.c.h.b16 %v266
        %v1510 = vpack.c.b16 %v1450, %v1446
        %v1511 = vpack.c.b16 %v1451, %v1447
        %v1512 = vpack.c.b16 %v1452, %v1448
        %v1513 = vpack.c.b16 %v1453, %v1449
        %v1514 = vpack.c.b16 %v1458, %v1454
        %v1515 = vpack.c.b16 %v1459, %v1455
        %v1516 = vpack.c.b16 %v1460, %v1456
        %v1517 = vpack.c.b16 %v1461, %v1457
        %v1518 = vpack.c.b16 %v1466, %v1462
        %v1519 = vpack.c.b16 %v1467, %v1463
        %v1520 = vpack.c.b16 %v1468, %v1464
        %v1521 = vpack.c.b16 %v1469, %v1465
        %v1522 = vpack.c.b16 %v1474, %v1470
        %v1523 = vpack.c.b16 %v1475, %v1471
        %v1524 = vpack.c.b16 %v1476, %v1472
        %v1525 = vpack.c.b16 %v1477, %v1473
        %v1526 = vpack.c.b16 %v1482, %v1478
        %v1527 = vpack.c.b16 %v1483, %v1479
        %v1528 = vpack.c.b16 %v1484, %v1480
        %v1529 = vpack.c.b16 %v1485, %v1481
        %v1530 = vpack.c.b16 %v1490, %v1486
        %v1531 = vpack.c.b16 %v1491, %v1487
        %v1532 = vpack.c.b16 %v1492, %v1488
        %v1533 = vpack.c.b16 %v1493, %v1489
        %v1534 = vpack.c.b16 %v1498, %v1494
        %v1535 = vpack.c.b16 %v1499, %v1495
        %v1536 = vpack.c.b16 %v1500, %v1496
        %v1537 = vpack.c.b16 %v1501, %v1497
        %v1538 = vpack.c.b16 %v1506, %v1502
        %v1539 = vpack.c.b16 %v1507, %v1503
        %v1540 = vpack.c.b16 %v1508, %v1504
        %v1541 = vpack.c.b16 %v1509, %v1505
        %1574 = vmatprep.subr.bf16.mxu0 %v1539
        %1575 = vmatpush1.bf16.msra.mxu0 %v1538
        %1576 = vmatprep.subr.bf16.mxu0 %v1535
        %1577 = vmatpush1.bf16.msra.mxu0 %v1534
        %1578 = vmatprep.subr.bf16.mxu0 %v1531
        %1579 = vmatpush1.bf16.msra.mxu0 %v1530
        %1580 = vmatprep.subr.bf16.mxu0 %v1527
        %1581 = vmatpush1.bf16.msra.mxu0 %v1526
        %1582 = vmatprep.subr.bf16.mxu0 %v1523
        %1583 = vmatpush1.bf16.msra.mxu0 %v1522
        %1584 = vmatprep.subr.bf16.mxu0 %v1519
        %1585 = vmatpush1.bf16.msra.mxu0 %v1518
        %1586 = vmatprep.subr.bf16.mxu0 %v1515
        %1587 = vmatpush1.bf16.msra.mxu0 %v1514
        %1588 = vmatprep.subr.bf16.mxu0 %v1511
        %1589 = vmatpush1.bf16.msra.mxu0 %v1510
        %1590 = vmatprep.subr.bf16.mxu0 0
        %1591 = vmatpush2.bf16.msra.mxu0 0
        %1592 = vmatprep.subr.bf16.mxu0 0
        %1593 = vmatpush2.bf16.msra.mxu0 0
        %1594 = vmatprep.subr.bf16.mxu0 0
        %1595 = vmatpush2.bf16.msra.mxu0 0
        %1596 = vmatprep.subr.bf16.mxu0 0
        %1597 = vmatpush2.bf16.msra.mxu0 0
        %1598 = vmatprep.subr.bf16.mxu0 0
        %1599 = vmatpush2.bf16.msra.mxu0 0
        %1600 = vmatprep.subr.bf16.mxu0 0
        %1601 = vmatpush2.bf16.msra.mxu0 0
        %1602 = vmatprep.subr.bf16.mxu0 0
        %1603 = vmatpush2.bf16.msra.mxu0 0
        %1604 = vmatprep.subr.bf16.mxu0 0
        %1605 = vmatpush2.bf16.msra.mxu0 0
        %1606 = vmatprep.mubr.bf16.mxu0 0
        %1607 = vmatmul.mubr.bf16.gmra.mxu0 0
        %v1608 = vpop.f32.mrf.mxu0
        %v1609 = vadd.f32 0.0, %v1608
        %v1610 = vpop.f32.mrf.mxu0
        %v1611 = vadd.f32 0.0, %v1610
        %v1612 = vpop.f32.mrf.mxu0
        %v1613 = vpop.f32.mrf.mxu0
        %1614 = vdwg.mxu0
        %1615 = vmatprep.subr.bf16.mxu0 %v1541
        %1616 = vmatpush1.bf16.msra.mxu0 %v1540
        %1617 = vmatprep.subr.bf16.mxu0 %v1537
        %1618 = vmatpush1.bf16.msra.mxu0 %v1536
        %1619 = vmatprep.subr.bf16.mxu0 %v1533
        %1620 = vmatpush1.bf16.msra.mxu0 %v1532
        %1621 = vmatprep.subr.bf16.mxu0 %v1529
        %1622 = vmatpush1.bf16.msra.mxu0 %v1528
        %1623 = vmatprep.subr.bf16.mxu0 %v1525
        %1624 = vmatpush1.bf16.msra.mxu0 %v1524
        %1625 = vmatprep.subr.bf16.mxu0 %v1521
        %1626 = vmatpush1.bf16.msra.mxu0 %v1520
        %1627 = vmatprep.subr.bf16.mxu0 %v1517
        %1628 = vmatpush1.bf16.msra.mxu0 %v1516
        %1629 = vmatprep.subr.bf16.mxu0 %v1513
        %1630 = vmatpush1.bf16.msra.mxu0 %v1512
        %1631 = vmatprep.subr.bf16.mxu0 0
        %1632 = vmatpush2.bf16.msra.mxu0 0
        %1633 = vmatprep.subr.bf16.mxu0 0
        %1634 = vmatpush2.bf16.msra.mxu0 0
        %1635 = vmatprep.subr.bf16.mxu0 0
        %1636 = vmatpush2.bf16.msra.mxu0 0
        %1637 = vmatprep.subr.bf16.mxu0 0
        %1638 = vmatpush2.bf16.msra.mxu0 0
        %1639 = vmatprep.subr.bf16.mxu0 0
        %1640 = vmatpush2.bf16.msra.mxu0 0
        %1641 = vmatprep.subr.bf16.mxu0 0
        %1642 = vmatpush2.bf16.msra.mxu0 0
        %1643 = vmatprep.subr.bf16.mxu0 0
        %1644 = vmatpush2.bf16.msra.mxu0 0
        %1645 = vmatprep.subr.bf16.mxu0 0
        %1646 = vmatpush2.bf16.msra.mxu0 0
        %1647 = vmatprep.mubr.bf16.mxu0 0
        %1648 = vmatmul.mubr.bf16.gmra.mxu0 0
        %v1649 = vpop.f32.mrf.mxu0
        %v1650 = vadd.f32 0.0, %v1649
        %v1651 = vpop.f32.mrf.mxu0
        %v1652 = vadd.f32 0.0, %v1651
        %v1653 = vpop.f32.mrf.mxu0
        %v1654 = vpop.f32.mrf.mxu0
        %1655 = vdwg.mxu0
        %v1656 = vadd.f32 %v1410, %v1609
        %v1657 = vadd.f32 %v1411, %v1611
        %v1658 = vadd.f32 %v1412, %v1650
        %v1659 = vadd.f32 %v1413, %v1652
        %v1660 = vxor.u32 %v1656, 2147483648
        %v1661 = vmul.f32 %v1660, 1.442695
        %v1662 = vpow.pop %v1661
        %v1663 = vadd.f32 %v1662, 1.0
        %v1664 = vrcp.pop %v1663
        %v1665 = vmul.f32 1.0, %v1664
        %v1666 = vxor.u32 %v1657, 2147483648
        %v1667 = vmul.f32 %v1666, 1.442695
        %v1668 = vpow.pop %v1667
        %v1669 = vadd.f32 %v1668, 1.0
        %v1670 = vrcp.pop %v1669
        %v1671 = vmul.f32 1.0, %v1670
        %v1672 = vtanh.pop %v1658
        %v1673 = vxor.u32 %v1659, 2147483648
        %v1674 = vmul.f32 %v1673, 1.442695
        %v1675 = vpow.pop %v1674
        %v1676 = vadd.f32 %v1675, 1.0
        %v1677 = vrcp.pop %v1676
        %v1678 = vmul.f32 1.0, %v1677
        %v1679 = vmul.f32 %v1671, 0.0
        %v1680 = vmul.f32 %v1665, %v1672
        %v1681 = vadd.f32 %v1679, %v1680
        %v1682 = vtanh.pop %v1681
        %v1683 = vmul.f32 %v1678, %v1682
        %v1684 = vadd.f32 %v1683, 0.0
        %s1685 = smul.u32 1, 4
        %s1686 = smul.addr %s1685, 4
        %s1687 = scalar_lea.vmem [#allocation2], %s1686
        %v1688 = vld [vmem:[%s1687] sm:$0xff]
        %v1689 = vld [vmem:[%s1687 + $0x8] sm:$0xff]
        %v1690 = vunpack.c.l.bf16 %v1688
        %v1691 = vunpack.c.h.bf16 %v1688
        %v1692 = vunpack.c.l.bf16 %v1689
        %v1693 = vunpack.c.h.bf16 %v1689
        %v1694 = vadd.f32 %v1690, %v1609
        %v1695 = vadd.f32 %v1691, %v1611
        %v1696 = vadd.f32 %v1692, %v1650
        %v1697 = vadd.f32 %v1693, %v1652
        %v1698 = vxor.u32 %v1694, 2147483648
        %v1699 = vmul.f32 %v1698, 1.442695
        %v1700 = vpow.pop %v1699
        %v1701 = vadd.f32 %v1700, 1.0
        %v1702 = vrcp.pop %v1701
        %v1703 = vmul.f32 1.0, %v1702
        %v1704 = vxor.u32 %v1695, 2147483648
        %v1705 = vmul.f32 %v1704, 1.442695
        %v1706 = vpow.pop %v1705
        %v1707 = vadd.f32 %v1706, 1.0
        %v1708 = vrcp.pop %v1707
        %v1709 = vmul.f32 1.0, %v1708
        %v1710 = vtanh.pop %v1696
        %v1711 = vxor.u32 %v1697, 2147483648
        %v1712 = vmul.f32 %v1711, 1.442695
        %v1713 = vpow.pop %v1712
        %v1714 = vadd.f32 %v1713, 1.0
        %v1715 = vrcp.pop %v1714
        %v1716 = vmul.f32 1.0, %v1715
        %v1717 = vmul.f32 %v1709, 0.0
        %v1718 = vmul.f32 %v1703, %v1710
        %v1719 = vadd.f32 %v1717, %v1718
        %v1720 = vtanh.pop %v1719
        %v1721 = vmul.f32 %v1716, %v1720
        %v1722 = vadd.f32 %v1721, 0.0
        %s1723 = smul.u32 2, 4
        %s1724 = smul.addr %s1723, 4
        %s1725 = scalar_lea.vmem [#allocation2], %s1724
        %v1726 = vld [vmem:[%s1725] sm:$0xff]
        %v1727 = vld [vmem:[%s1725 + $0x8] sm:$0xff]
        %v1728 = vunpack.c.l.bf16 %v1726
        %v1729 = vunpack.c.h.bf16 %v1726
        %v1730 = vunpack.c.l.bf16 %v1727
        %v1731 = vunpack.c.h.bf16 %v1727
        %v1732 = vpack.c.bf16 %v1683, %v1683
        %1733 = vmatprep.subr.bf16.mxu0 %v1539
        %1734 = vmatpush1.bf16.msra.mxu0 %v1538
        %1735 = vmatprep.subr.bf16.mxu0 %v1535
        %1736 = vmatpush1.bf16.msra.mxu0 %v1534
        %1737 = vmatprep.subr.bf16.mxu0 %v1531
        %1738 = vmatpush1.bf16.msra.mxu0 %v1530
        %1739 = vmatprep.subr.bf16.mxu0 %v1527
        %1740 = vmatpush1.bf16.msra.mxu0 %v1526
        %1741 = vmatprep.subr.bf16.mxu0 %v1523
        %1742 = vmatpush1.bf16.msra.mxu0 %v1522
        %1743 = vmatprep.subr.bf16.mxu0 %v1519
        %1744 = vmatpush1.bf16.msra.mxu0 %v1518
        %1745 = vmatprep.subr.bf16.mxu0 %v1515
        %1746 = vmatpush1.bf16.msra.mxu0 %v1514
        %1747 = vmatprep.subr.bf16.mxu0 %v1511
        %1748 = vmatpush1.bf16.msra.mxu0 %v1510
        %1749 = vmatprep.subr.bf16.mxu0 0
        %1750 = vmatpush2.bf16.msra.mxu0 0
        %1751 = vmatprep.subr.bf16.mxu0 0
        %1752 = vmatpush2.bf16.msra.mxu0 0
        %1753 = vmatprep.subr.bf16.mxu0 0
        %1754 = vmatpush2.bf16.msra.mxu0 0
        %1755 = vmatprep.subr.bf16.mxu0 0
        %1756 = vmatpush2.bf16.msra.mxu0 0
        %1757 = vmatprep.subr.bf16.mxu0 0
        %1758 = vmatpush2.bf16.msra.mxu0 0
        %1759 = vmatprep.subr.bf16.mxu0 0
        %1760 = vmatpush2.bf16.msra.mxu0 0
        %1761 = vmatprep.subr.bf16.mxu0 0
        %1762 = vmatpush2.bf16.msra.mxu0 0
        %1763 = vmatprep.subr.bf16.mxu0 0
        %1764 = vmatpush2.bf16.msra.mxu0 0
        %1765 = vmatprep.mubr.bf16.mxu0 0
        %1766 = vmatmul.mubr.bf16.gmra.mxu0 %v1732
        %v1767 = vpop.f32.mrf.mxu0
        %v1768 = vadd.f32 0.0, %v1767
        %v1769 = vpop.f32.mrf.mxu0
        %v1770 = vadd.f32 0.0, %v1769
        %v1771 = vpop.f32.mrf.mxu0
        %v1772 = vpop.f32.mrf.mxu0
        %1773 = vdwg.mxu0
        %1774 = vmatprep.subr.bf16.mxu0 %v1541
        %1775 = vmatpush1.bf16.msra.mxu0 %v1540
        %1776 = vmatprep.subr.bf16.mxu0 %v1537
        %1777 = vmatpush1.bf16.msra.mxu0 %v1536
        %1778 = vmatprep.subr.bf16.mxu0 %v1533
        %1779 = vmatpush1.bf16.msra.mxu0 %v1532
        %1780 = vmatprep.subr.bf16.mxu0 %v1529
        %1781 = vmatpush1.bf16.msra.mxu0 %v1528
        %1782 = vmatprep.subr.bf16.mxu0 %v1525
        %1783 = vmatpush1.bf16.msra.mxu0 %v1524
        %1784 = vmatprep.subr.bf16.mxu0 %v1521
        %1785 = vmatpush1.bf16.msra.mxu0 %v1520
        %1786 = vmatprep.subr.bf16.mxu0 %v1517
        %1787 = vmatpush1.bf16.msra.mxu0 %v1516
        %1788 = vmatprep.subr.bf16.mxu0 %v1513
        %1789 = vmatpush1.bf16.msra.mxu0 %v1512
        %1790 = vmatprep.subr.bf16.mxu0 0
        %1791 = vmatpush2.bf16.msra.mxu0 0
        %1792 = vmatprep.subr.bf16.mxu0 0
        %1793 = vmatpush2.bf16.msra.mxu0 0
        %1794 = vmatprep.subr.bf16.mxu0 0
        %1795 = vmatpush2.bf16.msra.mxu0 0
        %1796 = vmatprep.subr.bf16.mxu0 0
        %1797 = vmatpush2.bf16.msra.mxu0 0
        %1798 = vmatprep.subr.bf16.mxu0 0
        %1799 = vmatpush2.bf16.msra.mxu0 0
        %1800 = vmatprep.subr.bf16.mxu0 0
        %1801 = vmatpush2.bf16.msra.mxu0 0
        %1802 = vmatprep.subr.bf16.mxu0 0
        %1803 = vmatpush2.bf16.msra.mxu0 0
        %1804 = vmatprep.subr.bf16.mxu0 0
        %1805 = vmatpush2.bf16.msra.mxu0 0
        %1806 = vmatprep.mubr.bf16.mxu0 0
        %1807 = vmatmul.mubr.bf16.gmra.mxu0 %v1732
        %v1808 = vpop.f32.mrf.mxu0
        %v1809 = vadd.f32 0.0, %v1808
        %v1810 = vpop.f32.mrf.mxu0
        %v1811 = vadd.f32 0.0, %v1810
        %v1812 = vpop.f32.mrf.mxu0
        %v1813 = vpop.f32.mrf.mxu0
        %1814 = vdwg.mxu0
        %v1815 = vadd.f32 %v1728, %v1768
        %v1816 = vadd.f32 %v1729, %v1770
        %v1817 = vadd.f32 %v1730, %v1809
        %v1818 = vadd.f32 %v1731, %v1811
        %v1819 = vxor.u32 %v1815, 2147483648
        %v1820 = vmul.f32 %v1819, 1.442695
        %v1821 = vpow.pop %v1820
        %v1822 = vadd.f32 %v1821, 1.0
        %v1823 = vrcp.pop %v1822
        %v1824 = vmul.f32 1.0, %v1823
        %v1825 = vxor.u32 %v1816, 2147483648
        %v1826 = vmul.f32 %v1825, 1.442695
        %v1827 = vpow.pop %v1826
        %v1828 = vadd.f32 %v1827, 1.0
        %v1829 = vrcp.pop %v1828
        %v1830 = vmul.f32 1.0, %v1829
        %v1831 = vtanh.pop %v1817
        %v1832 = vxor.u32 %v1818, 2147483648
        %v1833 = vmul.f32 %v1832, 1.442695
        %v1834 = vpow.pop %v1833
        %v1835 = vadd.f32 %v1834, 1.0
        %v1836 = vrcp.pop %v1835
        %v1837 = vmul.f32 1.0, %v1836
        %v1838 = vmul.f32 %v1830, %v1681
        %v1839 = vmul.f32 %v1824, %v1831
        %v1840 = vadd.f32 %v1838, %v1839
        %v1841 = vtanh.pop %v1840
        %v1842 = vmul.f32 %v1837, %v1841
        %v1843 = vadd.f32 %v1684, %v1842
        %s1844 = smul.u32 3, 4
        %s1845 = smul.addr %s1844, 4
        %s1846 = scalar_lea.vmem [#allocation2], %s1845
        %v1847 = vld [vmem:[%s1846] sm:$0xff]
        %v1848 = vld [vmem:[%s1846 + $0x8] sm:$0xff]
        %v1849 = vunpack.c.l.bf16 %v1847
        %v1850 = vunpack.c.h.bf16 %v1847
        %v1851 = vunpack.c.l.bf16 %v1848
        %v1852 = vunpack.c.h.bf16 %v1848
        %v1853 = vpack.c.bf16 %v1721, %v1721
        %1854 = vmatprep.subr.bf16.mxu0 %v1539
        %1855 = vmatpush1.bf16.msra.mxu0 %v1538
        %1856 = vmatprep.subr.bf16.mxu0 %v1535
        %1857 = vmatpush1.bf16.msra.mxu0 %v1534
        %1858 = vmatprep.subr.bf16.mxu0 %v1531
        %1859 = vmatpush1.bf16.msra.mxu0 %v1530
        %1860 = vmatprep.subr.bf16.mxu0 %v1527
        %1861 = vmatpush1.bf16.msra.mxu0 %v1526
        %1862 = vmatprep.subr.bf16.mxu0 %v1523
        %1863 = vmatpush1.bf16.msra.mxu0 %v1522
        %1864 = vmatprep.subr.bf16.mxu0 %v1519
        %1865 = vmatpush1.bf16.msra.mxu0 %v1518
        %1866 = vmatprep.subr.bf16.mxu0 %v1515
        %1867 = vmatpush1.bf16.msra.mxu0 %v1514
        %1868 = vmatprep.subr.bf16.mxu0 %v1511
        %1869 = vmatpush1.bf16.msra.mxu0 %v1510
        %1870 = vmatprep.subr.bf16.mxu0 0
        %1871 = vmatpush2.bf16.msra.mxu0 0
        %1872 = vmatprep.subr.bf16.mxu0 0
        %1873 = vmatpush2.bf16.msra.mxu0 0
        %1874 = vmatprep.subr.bf16.mxu0 0
        %1875 = vmatpush2.bf16.msra.mxu0 0
        %1876 = vmatprep.subr.bf16.mxu0 0
        %1877 = vmatpush2.bf16.msra.mxu0 0
        %1878 = vmatprep.subr.bf16.mxu0 0
        %1879 = vmatpush2.bf16.msra.mxu0 0
        %1880 = vmatprep.subr.bf16.mxu0 0
        %1881 = vmatpush2.bf16.msra.mxu0 0
        %1882 = vmatprep.subr.bf16.mxu0 0
        %1883 = vmatpush2.bf16.msra.mxu0 0
        %1884 = vmatprep.subr.bf16.mxu0 0
        %1885 = vmatpush2.bf16.msra.mxu0 0
        %1886 = vmatprep.mubr.bf16.mxu0 0
        %1887 = vmatmul.mubr.bf16.gmra.mxu0 %v1853
        %v1888 = vpop.f32.mrf.mxu0
        %v1889 = vadd.f32 0.0, %v1888
        %v1890 = vpop.f32.mrf.mxu0
        %v1891 = vadd.f32 0.0, %v1890
        %v1892 = vpop.f32.mrf.mxu0
        %v1893 = vpop.f32.mrf.mxu0
        %1894 = vdwg.mxu0
        %1895 = vmatprep.subr.bf16.mxu0 %v1541
        %1896 = vmatpush1.bf16.msra.mxu0 %v1540
        %1897 = vmatprep.subr.bf16.mxu0 %v1537
        %1898 = vmatpush1.bf16.msra.mxu0 %v1536
        %1899 = vmatprep.subr.bf16.mxu0 %v1533
        %1900 = vmatpush1.bf16.msra.mxu0 %v1532
        %1901 = vmatprep.subr.bf16.mxu0 %v1529
        %1902 = vmatpush1.bf16.msra.mxu0 %v1528
        %1903 = vmatprep.subr.bf16.mxu0 %v1525
        %1904 = vmatpush1.bf16.msra.mxu0 %v1524
        %1905 = vmatprep.subr.bf16.mxu0 %v1521
        %1906 = vmatpush1.bf16.msra.mxu0 %v1520
        %1907 = vmatprep.subr.bf16.mxu0 %v1517
        %1908 = vmatpush1.bf16.msra.mxu0 %v1516
        %1909 = vmatprep.subr.bf16.mxu0 %v1513
        %1910 = vmatpush1.bf16.msra.mxu0 %v1512
        %1911 = vmatprep.subr.bf16.mxu0 0
        %1912 = vmatpush2.bf16.msra.mxu0 0
        %1913 = vmatprep.subr.bf16.mxu0 0
        %1914 = vmatpush2.bf16.msra.mxu0 0
        %1915 = vmatprep.subr.bf16.mxu0 0
        %1916 = vmatpush2.bf16.msra.mxu0 0
        %1917 = vmatprep.subr.bf16.mxu0 0
        %1918 = vmatpush2.bf16.msra.mxu0 0
        %1919 = vmatprep.subr.bf16.mxu0 0
        %1920 = vmatpush2.bf16.msra.mxu0 0
        %1921 = vmatprep.subr.bf16.mxu0 0
        %1922 = vmatpush2.bf16.msra.mxu0 0
        %1923 = vmatprep.subr.bf16.mxu0 0
        %1924 = vmatpush2.bf16.msra.mxu0 0
        %1925 = vmatprep.subr.bf16.mxu0 0
        %1926 = vmatpush2.bf16.msra.mxu0 0
        %1927 = vmatprep.mubr.bf16.mxu0 0
        %1928 = vmatmul.mubr.bf16.gmra.mxu0 %v1853
        %v1929 = vpop.f32.mrf.mxu0
        %v1930 = vadd.f32 0.0, %v1929
        %v1931 = vpop.f32.mrf.mxu0
        %v1932 = vadd.f32 0.0, %v1931
        %v1933 = vpop.f32.mrf.mxu0
        %v1934 = vpop.f32.mrf.mxu0
        %1935 = vdwg.mxu0
        %v1936 = vadd.f32 %v1849, %v1889
        %v1937 = vadd.f32 %v1850, %v1891
        %v1938 = vadd.f32 %v1851, %v1930
        %v1939 = vadd.f32 %v1852, %v1932
        %v1940 = vxor.u32 %v1936, 2147483648
        %v1941 = vmul.f32 %v1940, 1.442695
        %v1942 = vpow.pop %v1941
        %v1943 = vadd.f32 %v1942, 1.0
        %v1944 = vrcp.pop %v1943
        %v1945 = vmul.f32 1.0, %v1944
        %v1946 = vxor.u32 %v1937, 2147483648
        %v1947 = vmul.f32 %v1946, 1.442695
        %v1948 = vpow.pop %v1947
        %v1949 = vadd.f32 %v1948, 1.0
        %v1950 = vrcp.pop %v1949
        %v1951 = vmul.f32 1.0, %v1950
        %v1952 = vtanh.pop %v1938
        %v1953 = vxor.u32 %v1939, 2147483648
        %v1954 = vmul.f32 %v1953, 1.442695
        %v1955 = vpow.pop %v1954
        %v1956 = vadd.f32 %v1955, 1.0
        %v1957 = vrcp.pop %v1956
        %v1958 = vmul.f32 1.0, %v1957
        %v1959 = vmul.f32 %v1951, %v1719
        %v1960 = vmul.f32 %v1945, %v1952
        %v1961 = vadd.f32 %v1959, %v1960
        %v1962 = vtanh.pop %v1961
        %v1963 = vmul.f32 %v1958, %v1962
        %v1964 = vadd.f32 %v1722, %v1963
        %s1965 = smul.u32 4, 4
        %s1966 = smul.addr %s1965, 4
        %s1967 = scalar_lea.vmem [#allocation2], %s1966
        %v1968 = vld [vmem:[%s1967] sm:$0xff]
        %v1969 = vld [vmem:[%s1967 + $0x8] sm:$0xff]
        %v1970 = vunpack.c.l.bf16 %v1968
        %v1971 = vunpack.c.h.bf16 %v1968
        %v1972 = vunpack.c.l.bf16 %v1969
        %v1973 = vunpack.c.h.bf16 %v1969
        %v1974 = vpack.c.bf16 %v1842, %v1842
        %1975 = vmatprep.subr.bf16.mxu0 %v1539
        %1976 = vmatpush1.bf16.msra.mxu0 %v1538
        %1977 = vmatprep.subr.bf16.mxu0 %v1535
        %1978 = vmatpush1.bf16.msra.mxu0 %v1534
        %1979 = vmatprep.subr.bf16.mxu0 %v1531
        %1980 = vmatpush1.bf16.msra.mxu0 %v1530
        %1981 = vmatprep.subr.bf16.mxu0 %v1527
        %1982 = vmatpush1.bf16.msra.mxu0 %v1526
        %1983 = vmatprep.subr.bf16.mxu0 %v1523
        %1984 = vmatpush1.bf16.msra.mxu0 %v1522
        %1985 = vmatprep.subr.bf16.mxu0 %v1519
        %1986 = vmatpush1.bf16.msra.mxu0 %v1518
        %1987 = vmatprep.subr.bf16.mxu0 %v1515
        %1988 = vmatpush1.bf16.msra.mxu0 %v1514
        %1989 = vmatprep.subr.bf16.mxu0 %v1511
        %1990 = vmatpush1.bf16.msra.mxu0 %v1510
        %1991 = vmatprep.subr.bf16.mxu0 0
        %1992 = vmatpush2.bf16.msra.mxu0 0
        %1993 = vmatprep.subr.bf16.mxu0 0
        %1994 = vmatpush2.bf16.msra.mxu0 0
        %1995 = vmatprep.subr.bf16.mxu0 0
        %1996 = vmatpush2.bf16.msra.mxu0 0
        %1997 = vmatprep.subr.bf16.mxu0 0
        %1998 = vmatpush2.bf16.msra.mxu0 0
        %1999 = vmatprep.subr.bf16.mxu0 0
        %2000 = vmatpush2.bf16.msra.mxu0 0
        %2001 = vmatprep.subr.bf16.mxu0 0
        %2002 = vmatpush2.bf16.msra.mxu0 0
        %2003 = vmatprep.subr.bf16.mxu0 0
        %2004 = vmatpush2.bf16.msra.mxu0 0
        %2005 = vmatprep.subr.bf16.mxu0 0
        %2006 = vmatpush2.bf16.msra.mxu0 0
        %2007 = vmatprep.mubr.bf16.mxu0 0
        %2008 = vmatmul.mubr.bf16.gmra.mxu0 %v1974
        %v2009 = vpop.f32.mrf.mxu0
        %v2010 = vadd.f32 0.0, %v2009
        %v2011 = vpop.f32.mrf.mxu0
        %v2012 = vadd.f32 0.0, %v2011
        %v2013 = vpop.f32.mrf.mxu0
        %v2014 = vpop.f32.mrf.mxu0
        %2015 = vdwg.mxu0
        %2016 = vmatprep.subr.bf16.mxu0 %v1541
        %2017 = vmatpush1.bf16.msra.mxu0 %v1540
        %2018 = vmatprep.subr.bf16.mxu0 %v1537
        %2019 = vmatpush1.bf16.msra.mxu0 %v1536
        %2020 = vmatprep.subr.bf16.mxu0 %v1533
        %2021 = vmatpush1.bf16.msra.mxu0 %v1532
        %2022 = vmatprep.subr.bf16.mxu0 %v1529
        %2023 = vmatpush1.bf16.msra.mxu0 %v1528
        %2024 = vmatprep.subr.bf16.mxu0 %v1525
        %2025 = vmatpush1.bf16.msra.mxu0 %v1524
        %2026 = vmatprep.subr.bf16.mxu0 %v1521
        %2027 = vmatpush1.bf16.msra.mxu0 %v1520
        %2028 = vmatprep.subr.bf16.mxu0 %v1517
        %2029 = vmatpush1.bf16.msra.mxu0 %v1516
        %2030 = vmatprep.subr.bf16.mxu0 %v1513
        %2031 = vmatpush1.bf16.msra.mxu0 %v1512
        %2032 = vmatprep.subr.bf16.mxu0 0
        %2033 = vmatpush2.bf16.msra.mxu0 0
        %2034 = vmatprep.subr.bf16.mxu0 0
        %2035 = vmatpush2.bf16.msra.mxu0 0
        %2036 = vmatprep.subr.bf16.mxu0 0
        %2037 = vmatpush2.bf16.msra.mxu0 0
        %2038 = vmatprep.subr.bf16.mxu0 0
        %2039 = vmatpush2.bf16.msra.mxu0 0
        %2040 = vmatprep.subr.bf16.mxu0 0
        %2041 = vmatpush2.bf16.msra.mxu0 0
        %2042 = vmatprep.subr.bf16.mxu0 0
        %2043 = vmatpush2.bf16.msra.mxu0 0
        %2044 = vmatprep.subr.bf16.mxu0 0
        %2045 = vmatpush2.bf16.msra.mxu0 0
        %2046 = vmatprep.subr.bf16.mxu0 0
        %2047 = vmatpush2.bf16.msra.mxu0 0
        %2048 = vmatprep.mubr.bf16.mxu0 0
        %2049 = vmatmul.mubr.bf16.gmra.mxu0 %v1974
        %v2050 = vpop.f32.mrf.mxu0
        %v2051 = vadd.f32 0.0, %v2050
        %v2052 = vpop.f32.mrf.mxu0
        %v2053 = vadd.f32 0.0, %v2052
        %v2054 = vpop.f32.mrf.mxu0
        %v2055 = vpop.f32.mrf.mxu0
        %2056 = vdwg.mxu0
        %v2057 = vadd.f32 %v1970, %v2010
        %v2058 = vadd.f32 %v1971, %v2012
        %v2059 = vadd.f32 %v1972, %v2051
        %v2060 = vadd.f32 %v1973, %v2053
        %v2061 = vxor.u32 %v2057, 2147483648
        %v2062 = vmul.f32 %v2061, 1.442695
        %v2063 = vpow.pop %v2062
        %v2064 = vadd.f32 %v2063, 1.0
        %v2065 = vrcp.pop %v2064
        %v2066 = vmul.f32 1.0, %v2065
        %v2067 = vxor.u32 %v2058, 2147483648
        %v2068 = vmul.f32 %v2067, 1.442695
        %v2069 = vpow.pop %v2068
        %v2070 = vadd.f32 %v2069, 1.0
        %v2071 = vrcp.pop %v2070
        %v2072 = vmul.f32 1.0, %v2071
        %v2073 = vtanh.pop %v2059
        %v2074 = vxor.u32 %v2060, 2147483648
        %v2075 = vmul.f32 %v2074, 1.442695
        %v2076 = vpow.pop %v2075
        %v2077 = vadd.f32 %v2076, 1.0
        %v2078 = vrcp.pop %v2077
        %v2079 = vmul.f32 1.0, %v2078
        %v2080 = vmul.f32 %v2072, %v1840
        %v2081 = vmul.f32 %v2066, %v2073
        %v2082 = vadd.f32 %v2080, %v2081
        %v2083 = vtanh.pop %v2082
        %v2084 = vmul.f32 %v2079, %v2083
        %v2085 = vadd.f32 %v1843, %v2084
        %s2086 = smul.u32 5, 4
        %s2087 = smul.addr %s2086, 4
        %s2088 = scalar_lea.vmem [#allocation2], %s2087
        %v2089 = vld [vmem:[%s2088] sm:$0xff]
        %v2090 = vld [vmem:[%s2088 + $0x8] sm:$0xff]
        %v2091 = vunpack.c.l.bf16 %v2089
        %v2092 = vunpack.c.h.bf16 %v2089
        %v2093 = vunpack.c.l.bf16 %v2090
        %v2094 = vunpack.c.h.bf16 %v2090
        %v2095 = vpack.c.bf16 %v1963, %v1963
        %2096 = vmatprep.subr.bf16.mxu0 %v1539
        %2097 = vmatpush1.bf16.msra.mxu0 %v1538
        %2098 = vmatprep.subr.bf16.mxu0 %v1535
        %2099 = vmatpush1.bf16.msra.mxu0 %v1534
        %2100 = vmatprep.subr.bf16.mxu0 %v1531
        %2101 = vmatpush1.bf16.msra.mxu0 %v1530
        %2102 = vmatprep.subr.bf16.mxu0 %v1527
        %2103 = vmatpush1.bf16.msra.mxu0 %v1526
        %2104 = vmatprep.subr.bf16.mxu0 %v1523
        %2105 = vmatpush1.bf16.msra.mxu0 %v1522
        %2106 = vmatprep.subr.bf16.mxu0 %v1519
        %2107 = vmatpush1.bf16.msra.mxu0 %v1518
        %2108 = vmatprep.subr.bf16.mxu0 %v1515
        %2109 = vmatpush1.bf16.msra.mxu0 %v1514
        %2110 = vmatprep.subr.bf16.mxu0 %v1511
        %2111 = vmatpush1.bf16.msra.mxu0 %v1510
        %2112 = vmatprep.subr.bf16.mxu0 0
        %2113 = vmatpush2.bf16.msra.mxu0 0
        %2114 = vmatprep.subr.bf16.mxu0 0
        %2115 = vmatpush2.bf16.msra.mxu0 0
        %2116 = vmatprep.subr.bf16.mxu0 0
        %2117 = vmatpush2.bf16.msra.mxu0 0
        %2118 = vmatprep.subr.bf16.mxu0 0
        %2119 = vmatpush2.bf16.msra.mxu0 0
        %2120 = vmatprep.subr.bf16.mxu0 0
        %2121 = vmatpush2.bf16.msra.mxu0 0
        %2122 = vmatprep.subr.bf16.mxu0 0
        %2123 = vmatpush2.bf16.msra.mxu0 0
        %2124 = vmatprep.subr.bf16.mxu0 0
        %2125 = vmatpush2.bf16.msra.mxu0 0
        %2126 = vmatprep.subr.bf16.mxu0 0
        %2127 = vmatpush2.bf16.msra.mxu0 0
        %2128 = vmatprep.mubr.bf16.mxu0 0
        %2129 = vmatmul.mubr.bf16.gmra.mxu0 %v2095
        %v2130 = vpop.f32.mrf.mxu0
        %v2131 = vadd.f32 0.0, %v2130
        %v2132 = vpop.f32.mrf.mxu0
        %v2133 = vadd.f32 0.0, %v2132
        %v2134 = vpop.f32.mrf.mxu0
        %v2135 = vpop.f32.mrf.mxu0
        %2136 = vdwg.mxu0
        %2137 = vmatprep.subr.bf16.mxu0 %v1541
        %2138 = vmatpush1.bf16.msra.mxu0 %v1540
        %2139 = vmatprep.subr.bf16.mxu0 %v1537
        %2140 = vmatpush1.bf16.msra.mxu0 %v1536
        %2141 = vmatprep.subr.bf16.mxu0 %v1533
        %2142 = vmatpush1.bf16.msra.mxu0 %v1532
        %2143 = vmatprep.subr.bf16.mxu0 %v1529
        %2144 = vmatpush1.bf16.msra.mxu0 %v1528
        %2145 = vmatprep.subr.bf16.mxu0 %v1525
        %2146 = vmatpush1.bf16.msra.mxu0 %v1524
        %2147 = vmatprep.subr.bf16.mxu0 %v1521
        %2148 = vmatpush1.bf16.msra.mxu0 %v1520
        %2149 = vmatprep.subr.bf16.mxu0 %v1517
        %2150 = vmatpush1.bf16.msra.mxu0 %v1516
        %2151 = vmatprep.subr.bf16.mxu0 %v1513
        %2152 = vmatpush1.bf16.msra.mxu0 %v1512
        %2153 = vmatprep.subr.bf16.mxu0 0
        %2154 = vmatpush2.bf16.msra.mxu0 0
        %2155 = vmatprep.subr.bf16.mxu0 0
        %2156 = vmatpush2.bf16.msra.mxu0 0
        %2157 = vmatprep.subr.bf16.mxu0 0
        %2158 = vmatpush2.bf16.msra.mxu0 0
        %2159 = vmatprep.subr.bf16.mxu0 0
        %2160 = vmatpush2.bf16.msra.mxu0 0
        %2161 = vmatprep.subr.bf16.mxu0 0
        %2162 = vmatpush2.bf16.msra.mxu0 0
        %2163 = vmatprep.subr.bf16.mxu0 0
        %2164 = vmatpush2.bf16.msra.mxu0 0
        %2165 = vmatprep.subr.bf16.mxu0 0
        %2166 = vmatpush2.bf16.msra.mxu0 0
        %2167 = vmatprep.subr.bf16.mxu0 0
        %2168 = vmatpush2.bf16.msra.mxu0 0
        %2169 = vmatprep.mubr.bf16.mxu0 0
        %2170 = vmatmul.mubr.bf16.gmra.mxu0 %v2095
        %v2171 = vpop.f32.mrf.mxu0
        %v2172 = vadd.f32 0.0, %v2171
        %v2173 = vpop.f32.mrf.mxu0
        %v2174 = vadd.f32 0.0, %v2173
        %v2175 = vpop.f32.mrf.mxu0
        %v2176 = vpop.f32.mrf.mxu0
        %2177 = vdwg.mxu0
        %v2178 = vadd.f32 %v2091, %v2131
        %v2179 = vadd.f32 %v2092, %v2133
        %v2180 = vadd.f32 %v2093, %v2172
        %v2181 = vadd.f32 %v2094, %v2174
        %v2182 = vxor.u32 %v2178, 2147483648
        %v2183 = vmul.f32 %v2182, 1.442695
        %v2184 = vpow.pop %v2183
        %v2185 = vadd.f32 %v2184, 1.0
        %v2186 = vrcp.pop %v2185
        %v2187 = vmul.f32 1.0, %v2186
        %v2188 = vxor.u32 %v2179, 2147483648
        %v2189 = vmul.f32 %v2188, 1.442695
        %v2190 = vpow.pop %v2189
        %v2191 = vadd.f32 %v2190, 1.0
        %v2192 = vrcp.pop %v2191
        %v2193 = vmul.f32 1.0, %v2192
        %v2194 = vtanh.pop %v2180
        %v2195 = vxor.u32 %v2181, 2147483648
        %v2196 = vmul.f32 %v2195, 1.442695
        %v2197 = vpow.pop %v2196
        %v2198 = vadd.f32 %v2197, 1.0
        %v2199 = vrcp.pop %v2198
        %v2200 = vmul.f32 1.0, %v2199
        %v2201 = vmul.f32 %v2193, %v1961
        %v2202 = vmul.f32 %v2187, %v2194
        %v2203 = vadd.f32 %v2201, %v2202
        %v2204 = vtanh.pop %v2203
        %v2205 = vmul.f32 %v2200, %v2204
        %v2206 = vadd.f32 %v1964, %v2205
        %s2207 = smul.u32 6, 4
        %s2208 = smul.addr %s2207, 4
        %s2209 = scalar_lea.vmem [#allocation2], %s2208
        %v2210 = vld [vmem:[%s2209] sm:$0xff]
        %v2211 = vld [vmem:[%s2209 + $0x8] sm:$0xff]
        %v2212 = vunpack.c.l.bf16 %v2210
        %v2213 = vunpack.c.h.bf16 %v2210
        %v2214 = vunpack.c.l.bf16 %v2211
        %v2215 = vunpack.c.h.bf16 %v2211
        %v2216 = vpack.c.bf16 %v2084, %v2084
        %2217 = vmatprep.subr.bf16.mxu0 %v1539
        %2218 = vmatpush1.bf16.msra.mxu0 %v1538
        %2219 = vmatprep.subr.bf16.mxu0 %v1535
        %2220 = vmatpush1.bf16.msra.mxu0 %v1534
        %2221 = vmatprep.subr.bf16.mxu0 %v1531
        %2222 = vmatpush1.bf16.msra.mxu0 %v1530
        %2223 = vmatprep.subr.bf16.mxu0 %v1527
        %2224 = vmatpush1.bf16.msra.mxu0 %v1526
        %2225 = vmatprep.subr.bf16.mxu0 %v1523
        %2226 = vmatpush1.bf16.msra.mxu0 %v1522
        %2227 = vmatprep.subr.bf16.mxu0 %v1519
        %2228 = vmatpush1.bf16.msra.mxu0 %v1518
        %2229 = vmatprep.subr.bf16.mxu0 %v1515
        %2230 = vmatpush1.bf16.msra.mxu0 %v1514
        %2231 = vmatprep.subr.bf16.mxu0 %v1511
        %2232 = vmatpush1.bf16.msra.mxu0 %v1510
        %2233 = vmatprep.subr.bf16.mxu0 0
        %2234 = vmatpush2.bf16.msra.mxu0 0
        %2235 = vmatprep.subr.bf16.mxu0 0
        %2236 = vmatpush2.bf16.msra.mxu0 0
        %2237 = vmatprep.subr.bf16.mxu0 0
        %2238 = vmatpush2.bf16.msra.mxu0 0
        %2239 = vmatprep.subr.bf16.mxu0 0
        %2240 = vmatpush2.bf16.msra.mxu0 0
        %2241 = vmatprep.subr.bf16.mxu0 0
        %2242 = vmatpush2.bf16.msra.mxu0 0
        %2243 = vmatprep.subr.bf16.mxu0 0
        %2244 = vmatpush2.bf16.msra.mxu0 0
        %2245 = vmatprep.subr.bf16.mxu0 0
        %2246 = vmatpush2.bf16.msra.mxu0 0
        %2247 = vmatprep.subr.bf16.mxu0 0
        %2248 = vmatpush2.bf16.msra.mxu0 0
        %2249 = vmatprep.mubr.bf16.mxu0 0
        %2250 = vmatmul.mubr.bf16.gmra.mxu0 %v2216
        %v2251 = vpop.f32.mrf.mxu0
        %v2252 = vadd.f32 0.0, %v2251
        %v2253 = vpop.f32.mrf.mxu0
        %v2254 = vadd.f32 0.0, %v2253
        %v2255 = vpop.f32.mrf.mxu0
        %v2256 = vpop.f32.mrf.mxu0
        %2257 = vdwg.mxu0
        %2258 = vmatprep.subr.bf16.mxu0 %v1541
        %2259 = vmatpush1.bf16.msra.mxu0 %v1540
        %2260 = vmatprep.subr.bf16.mxu0 %v1537
        %2261 = vmatpush1.bf16.msra.mxu0 %v1536
        %2262 = vmatprep.subr.bf16.mxu0 %v1533
        %2263 = vmatpush1.bf16.msra.mxu0 %v1532
        %2264 = vmatprep.subr.bf16.mxu0 %v1529
        %2265 = vmatpush1.bf16.msra.mxu0 %v1528
        %2266 = vmatprep.subr.bf16.mxu0 %v1525
        %2267 = vmatpush1.bf16.msra.mxu0 %v1524
        %2268 = vmatprep.subr.bf16.mxu0 %v1521
        %2269 = vmatpush1.bf16.msra.mxu0 %v1520
        %2270 = vmatprep.subr.bf16.mxu0 %v1517
        %2271 = vmatpush1.bf16.msra.mxu0 %v1516
        %2272 = vmatprep.subr.bf16.mxu0 %v1513
        %2273 = vmatpush1.bf16.msra.mxu0 %v1512
        %2274 = vmatprep.subr.bf16.mxu0 0
        %2275 = vmatpush2.bf16.msra.mxu0 0
        %2276 = vmatprep.subr.bf16.mxu0 0
        %2277 = vmatpush2.bf16.msra.mxu0 0
        %2278 = vmatprep.subr.bf16.mxu0 0
        %2279 = vmatpush2.bf16.msra.mxu0 0
        %2280 = vmatprep.subr.bf16.mxu0 0
        %2281 = vmatpush2.bf16.msra.mxu0 0
        %2282 = vmatprep.subr.bf16.mxu0 0
        %2283 = vmatpush2.bf16.msra.mxu0 0
        %2284 = vmatprep.subr.bf16.mxu0 0
        %2285 = vmatpush2.bf16.msra.mxu0 0
        %2286 = vmatprep.subr.bf16.mxu0 0
        %2287 = vmatpush2.bf16.msra.mxu0 0
        %2288 = vmatprep.subr.bf16.mxu0 0
        %2289 = vmatpush2.bf16.msra.mxu0 0
        %2290 = vmatprep.mubr.bf16.mxu0 0
        %2291 = vmatmul.mubr.bf16.gmra.mxu0 %v2216
        %v2292 = vpop.f32.mrf.mxu0
        %v2293 = vadd.f32 0.0, %v2292
        %v2294 = vpop.f32.mrf.mxu0
        %v2295 = vadd.f32 0.0, %v2294
        %v2296 = vpop.f32.mrf.mxu0
        %v2297 = vpop.f32.mrf.mxu0
        %2298 = vdwg.mxu0
        %v2299 = vadd.f32 %v2212, %v2252
        %v2300 = vadd.f32 %v2213, %v2254
        %v2301 = vadd.f32 %v2214, %v2293
        %v2302 = vadd.f32 %v2215, %v2295
        %v2303 = vxor.u32 %v2299, 2147483648
        %v2304 = vmul.f32 %v2303, 1.442695
        %v2305 = vpow.pop %v2304
        %v2306 = vadd.f32 %v2305, 1.0
        %v2307 = vrcp.pop %v2306
        %v2308 = vmul.f32 1.0, %v2307
        %v2309 = vxor.u32 %v2300, 2147483648
        %v2310 = vmul.f32 %v2309, 1.442695
        %v2311 = vpow.pop %v2310
        %v2312 = vadd.f32 %v2311, 1.0
        %v2313 = vrcp.pop %v2312
        %v2314 = vmul.f32 1.0, %v2313
        %v2315 = vtanh.pop %v2301
        %v2316 = vxor.u32 %v2302, 2147483648
        %v2317 = vmul.f32 %v2316, 1.442695
        %v2318 = vpow.pop %v2317
        %v2319 = vadd.f32 %v2318, 1.0
        %v2320 = vrcp.pop %v2319
        %v2321 = vmul.f32 1.0, %v2320
        %v2322 = vmul.f32 %v2314, %v2082
        %v2323 = vmul.f32 %v2308, %v2315
        %v2324 = vadd.f32 %v2322, %v2323
        %v2325 = vtanh.pop %v2324
        %v2326 = vmul.f32 %v2321, %v2325
        %v2327 = vadd.f32 %v2085, %v2326
        %s2328 = smul.u32 7, 4
        %s2329 = smul.addr %s2328, 4
        %s2330 = scalar_lea.vmem [#allocation2], %s2329
        %v2331 = vld [vmem:[%s2330] sm:$0xff]
        %v2332 = vld [vmem:[%s2330 + $0x8] sm:$0xff]
        %v2333 = vunpack.c.l.bf16 %v2331
        %v2334 = vunpack.c.h.bf16 %v2331
        %v2335 = vunpack.c.l.bf16 %v2332
        %v2336 = vunpack.c.h.bf16 %v2332
        %v2337 = vpack.c.bf16 %v2205, %v2205
        %2338 = vmatprep.subr.bf16.mxu0 %v1539
        %2339 = vmatpush1.bf16.msra.mxu0 %v1538
        %2340 = vmatprep.subr.bf16.mxu0 %v1535
        %2341 = vmatpush1.bf16.msra.mxu0 %v1534
        %2342 = vmatprep.subr.bf16.mxu0 %v1531
        %2343 = vmatpush1.bf16.msra.mxu0 %v1530
        %2344 = vmatprep.subr.bf16.mxu0 %v1527
        %2345 = vmatpush1.bf16.msra.mxu0 %v1526
        %2346 = vmatprep.subr.bf16.mxu0 %v1523
        %2347 = vmatpush1.bf16.msra.mxu0 %v1522
        %2348 = vmatprep.subr.bf16.mxu0 %v1519
        %2349 = vmatpush1.bf16.msra.mxu0 %v1518
        %2350 = vmatprep.subr.bf16.mxu0 %v1515
        %2351 = vmatpush1.bf16.msra.mxu0 %v1514
        %2352 = vmatprep.subr.bf16.mxu0 %v1511
        %2353 = vmatpush1.bf16.msra.mxu0 %v1510
        %2354 = vmatprep.subr.bf16.mxu0 0
        %2355 = vmatpush2.bf16.msra.mxu0 0
        %2356 = vmatprep.subr.bf16.mxu0 0
        %2357 = vmatpush2.bf16.msra.mxu0 0
        %2358 = vmatprep.subr.bf16.mxu0 0
        %2359 = vmatpush2.bf16.msra.mxu0 0
        %2360 = vmatprep.subr.bf16.mxu0 0
        %2361 = vmatpush2.bf16.msra.mxu0 0
        %2362 = vmatprep.subr.bf16.mxu0 0
        %2363 = vmatpush2.bf16.msra.mxu0 0
        %2364 = vmatprep.subr.bf16.mxu0 0
        %2365 = vmatpush2.bf16.msra.mxu0 0
        %2366 = vmatprep.subr.bf16.mxu0 0
        %2367 = vmatpush2.bf16.msra.mxu0 0
        %2368 = vmatprep.subr.bf16.mxu0 0
        %2369 = vmatpush2.bf16.msra.mxu0 0
        %2370 = vmatprep.mubr.bf16.mxu0 0
        %2371 = vmatmul.mubr.bf16.gmra.mxu0 %v2337
        %v2372 = vpop.f32.mrf.mxu0
        %v2373 = vadd.f32 0.0, %v2372
        %v2374 = vpop.f32.mrf.mxu0
        %v2375 = vadd.f32 0.0, %v2374
        %v2376 = vpop.f32.mrf.mxu0
        %v2377 = vpop.f32.mrf.mxu0
        %2378 = vdwg.mxu0
        %2379 = vmatprep.subr.bf16.mxu0 %v1541
        %2380 = vmatpush1.bf16.msra.mxu0 %v1540
        %2381 = vmatprep.subr.bf16.mxu0 %v1537
        %2382 = vmatpush1.bf16.msra.mxu0 %v1536
        %2383 = vmatprep.subr.bf16.mxu0 %v1533
        %2384 = vmatpush1.bf16.msra.mxu0 %v1532
        %2385 = vmatprep.subr.bf16.mxu0 %v1529
        %2386 = vmatpush1.bf16.msra.mxu0 %v1528
        %2387 = vmatprep.subr.bf16.mxu0 %v1525
        %2388 = vmatpush1.bf16.msra.mxu0 %v1524
        %2389 = vmatprep.subr.bf16.mxu0 %v1521
        %2390 = vmatpush1.bf16.msra.mxu0 %v1520
        %2391 = vmatprep.subr.bf16.mxu0 %v1517
        %2392 = vmatpush1.bf16.msra.mxu0 %v1516
        %2393 = vmatprep.subr.bf16.mxu0 %v1513
        %2394 = vmatpush1.bf16.msra.mxu0 %v1512
        %2395 = vmatprep.subr.bf16.mxu0 0
        %2396 = vmatpush2.bf16.msra.mxu0 0
        %2397 = vmatprep.subr.bf16.mxu0 0
        %2398 = vmatpush2.bf16.msra.mxu0 0
        %2399 = vmatprep.subr.bf16.mxu0 0
        %2400 = vmatpush2.bf16.msra.mxu0 0
        %2401 = vmatprep.subr.bf16.mxu0 0
        %2402 = vmatpush2.bf16.msra.mxu0 0
        %2403 = vmatprep.subr.bf16.mxu0 0
        %2404 = vmatpush2.bf16.msra.mxu0 0
        %2405 = vmatprep.subr.bf16.mxu0 0
        %2406 = vmatpush2.bf16.msra.mxu0 0
        %2407 = vmatprep.subr.bf16.mxu0 0
        %2408 = vmatpush2.bf16.msra.mxu0 0
        %2409 = vmatprep.subr.bf16.mxu0 0
        %2410 = vmatpush2.bf16.msra.mxu0 0
        %2411 = vmatprep.mubr.bf16.mxu0 0
        %2412 = vmatmul.mubr.bf16.gmra.mxu0 %v2337
        %v2413 = vpop.f32.mrf.mxu0
        %v2414 = vadd.f32 0.0, %v2413
        %v2415 = vpop.f32.mrf.mxu0
        %v2416 = vadd.f32 0.0, %v2415
        %v2417 = vpop.f32.mrf.mxu0
        %v2418 = vpop.f32.mrf.mxu0
        %2419 = vdwg.mxu0
        %v2420 = vadd.f32 %v2333, %v2373
        %v2421 = vadd.f32 %v2334, %v2375
        %v2422 = vadd.f32 %v2335, %v2414
        %v2423 = vadd.f32 %v2336, %v2416
        %v2424 = vxor.u32 %v2420, 2147483648
        %v2425 = vmul.f32 %v2424, 1.442695
        %v2426 = vpow.pop %v2425
        %v2427 = vadd.f32 %v2426, 1.0
        %v2428 = vrcp.pop %v2427
        %v2429 = vmul.f32 1.0, %v2428
        %v2430 = vxor.u32 %v2421, 2147483648
        %v2431 = vmul.f32 %v2430, 1.442695
        %v2432 = vpow.pop %v2431
        %v2433 = vadd.f32 %v2432, 1.0
        %v2434 = vrcp.pop %v2433
        %v2435 = vmul.f32 1.0, %v2434
        %v2436 = vtanh.pop %v2422
        %v2437 = vxor.u32 %v2423, 2147483648
        %v2438 = vmul.f32 %v2437, 1.442695
        %v2439 = vpow.pop %v2438
        %v2440 = vadd.f32 %v2439, 1.0
        %v2441 = vrcp.pop %v2440
        %v2442 = vmul.f32 1.0, %v2441
        %v2443 = vmul.f32 %v2435, %v2203
        %v2444 = vmul.f32 %v2429, %v2436
        %v2445 = vadd.f32 %v2443, %v2444
        %v2446 = vtanh.pop %v2445
        %v2447 = vmul.f32 %v2442, %v2446
        %v2448 = vadd.f32 %v2206, %v2447
        %s2449 = smul.u32 8, 4
        %s2450 = smul.addr %s2449, 4
        %s2451 = scalar_lea.vmem [#allocation2], %s2450
        %v2452 = vld [vmem:[%s2451] sm:$0xff]
        %v2453 = vld [vmem:[%s2451 + $0x8] sm:$0xff]
        %v2454 = vunpack.c.l.bf16 %v2452
        %v2455 = vunpack.c.h.bf16 %v2452
        %v2456 = vunpack.c.l.bf16 %v2453
        %v2457 = vunpack.c.h.bf16 %v2453
        %v2458 = vpack.c.bf16 %v2326, %v2326
        %2459 = vmatprep.subr.bf16.mxu0 %v1539
        %2460 = vmatpush1.bf16.msra.mxu0 %v1538
        %2461 = vmatprep.subr.bf16.mxu0 %v1535
        %2462 = vmatpush1.bf16.msra.mxu0 %v1534
        %2463 = vmatprep.subr.bf16.mxu0 %v1531
        %2464 = vmatpush1.bf16.msra.mxu0 %v1530
        %2465 = vmatprep.subr.bf16.mxu0 %v1527
        %2466 = vmatpush1.bf16.msra.mxu0 %v1526
        %2467 = vmatprep.subr.bf16.mxu0 %v1523
        %2468 = vmatpush1.bf16.msra.mxu0 %v1522
        %2469 = vmatprep.subr.bf16.mxu0 %v1519
        %2470 = vmatpush1.bf16.msra.mxu0 %v1518
        %2471 = vmatprep.subr.bf16.mxu0 %v1515
        %2472 = vmatpush1.bf16.msra.mxu0 %v1514
        %2473 = vmatprep.subr.bf16.mxu0 %v1511
        %2474 = vmatpush1.bf16.msra.mxu0 %v1510
        %2475 = vmatprep.subr.bf16.mxu0 0
        %2476 = vmatpush2.bf16.msra.mxu0 0
        %2477 = vmatprep.subr.bf16.mxu0 0
        %2478 = vmatpush2.bf16.msra.mxu0 0
        %2479 = vmatprep.subr.bf16.mxu0 0
        %2480 = vmatpush2.bf16.msra.mxu0 0
        %2481 = vmatprep.subr.bf16.mxu0 0
        %2482 = vmatpush2.bf16.msra.mxu0 0
        %2483 = vmatprep.subr.bf16.mxu0 0
        %2484 = vmatpush2.bf16.msra.mxu0 0
        %2485 = vmatprep.subr.bf16.mxu0 0
        %2486 = vmatpush2.bf16.msra.mxu0 0
        %2487 = vmatprep.subr.bf16.mxu0 0
        %2488 = vmatpush2.bf16.msra.mxu0 0
        %2489 = vmatprep.subr.bf16.mxu0 0
        %2490 = vmatpush2.bf16.msra.mxu0 0
        %2491 = vmatprep.mubr.bf16.mxu0 0
        %2492 = vmatmul.mubr.bf16.gmra.mxu0 %v2458
        %v2493 = vpop.f32.mrf.mxu0
        %v2494 = vadd.f32 0.0, %v2493
        %v2495 = vpop.f32.mrf.mxu0
        %v2496 = vadd.f32 0.0, %v2495
        %v2497 = vpop.f32.mrf.mxu0
        %v2498 = vpop.f32.mrf.mxu0
        %2499 = vdwg.mxu0
        %2500 = vmatprep.subr.bf16.mxu0 %v1541
        %2501 = vmatpush1.bf16.msra.mxu0 %v1540
        %2502 = vmatprep.subr.bf16.mxu0 %v1537
        %2503 = vmatpush1.bf16.msra.mxu0 %v1536
        %2504 = vmatprep.subr.bf16.mxu0 %v1533
        %2505 = vmatpush1.bf16.msra.mxu0 %v1532
        %2506 = vmatprep.subr.bf16.mxu0 %v1529
        %2507 = vmatpush1.bf16.msra.mxu0 %v1528
        %2508 = vmatprep.subr.bf16.mxu0 %v1525
        %2509 = vmatpush1.bf16.msra.mxu0 %v1524
        %2510 = vmatprep.subr.bf16.mxu0 %v1521
        %2511 = vmatpush1.bf16.msra.mxu0 %v1520
        %2512 = vmatprep.subr.bf16.mxu0 %v1517
        %2513 = vmatpush1.bf16.msra.mxu0 %v1516
        %2514 = vmatprep.subr.bf16.mxu0 %v1513
        %2515 = vmatpush1.bf16.msra.mxu0 %v1512
        %2516 = vmatprep.subr.bf16.mxu0 0
        %2517 = vmatpush2.bf16.msra.mxu0 0
        %2518 = vmatprep.subr.bf16.mxu0 0
        %2519 = vmatpush2.bf16.msra.mxu0 0
        %2520 = vmatprep.subr.bf16.mxu0 0
        %2521 = vmatpush2.bf16.msra.mxu0 0
        %2522 = vmatprep.subr.bf16.mxu0 0
        %2523 = vmatpush2.bf16.msra.mxu0 0
        %2524 = vmatprep.subr.bf16.mxu0 0
        %2525 = vmatpush2.bf16.msra.mxu0 0
        %2526 = vmatprep.subr.bf16.mxu0 0
        %2527 = vmatpush2.bf16.msra.mxu0 0
        %2528 = vmatprep.subr.bf16.mxu0 0
        %2529 = vmatpush2.bf16.msra.mxu0 0
        %2530 = vmatprep.subr.bf16.mxu0 0
        %2531 = vmatpush2.bf16.msra.mxu0 0
        %2532 = vmatprep.mubr.bf16.mxu0 0
        %2533 = vmatmul.mubr.bf16.gmra.mxu0 %v2458
        %v2534 = vpop.f32.mrf.mxu0
        %v2535 = vadd.f32 0.0, %v2534
        %v2536 = vpop.f32.mrf.mxu0
        %v2537 = vadd.f32 0.0, %v2536
        %v2538 = vpop.f32.mrf.mxu0
        %v2539 = vpop.f32.mrf.mxu0
        %2540 = vdwg.mxu0
        %v2541 = vadd.f32 %v2454, %v2494
        %v2542 = vadd.f32 %v2455, %v2496
        %v2543 = vadd.f32 %v2456, %v2535
        %v2544 = vadd.f32 %v2457, %v2537
        %v2545 = vxor.u32 %v2541, 2147483648
        %v2546 = vmul.f32 %v2545, 1.442695
        %v2547 = vpow.pop %v2546
        %v2548 = vadd.f32 %v2547, 1.0
        %v2549 = vrcp.pop %v2548
        %v2550 = vmul.f32 1.0, %v2549
        %v2551 = vxor.u32 %v2542, 2147483648
        %v2552 = vmul.f32 %v2551, 1.442695
        %v2553 = vpow.pop %v2552
        %v2554 = vadd.f32 %v2553, 1.0
        %v2555 = vrcp.pop %v2554
        %v2556 = vmul.f32 1.0, %v2555
        %v2557 = vtanh.pop %v2543
        %v2558 = vxor.u32 %v2544, 2147483648
        %v2559 = vmul.f32 %v2558, 1.442695
        %v2560 = vpow.pop %v2559
        %v2561 = vadd.f32 %v2560, 1.0
        %v2562 = vrcp.pop %v2561
        %v2563 = vmul.f32 1.0, %v2562
        %v2564 = vmul.f32 %v2556, %v2324
        %v2565 = vmul.f32 %v2550, %v2557
        %v2566 = vadd.f32 %v2564, %v2565
        %v2567 = vtanh.pop %v2566
        %v2568 = vmul.f32 %v2563, %v2567
        %v2569 = vadd.f32 %v2327, %v2568
        %s2570 = smul.u32 9, 4
        %s2571 = smul.addr %s2570, 4
        %s2572 = scalar_lea.vmem [#allocation2], %s2571
        %v2573 = vld [vmem:[%s2572] sm:$0xff]
        %v2574 = vld [vmem:[%s2572 + $0x8] sm:$0xff]
        %v2575 = vunpack.c.l.bf16 %v2573
        %v2576 = vunpack.c.h.bf16 %v2573
        %v2577 = vunpack.c.l.bf16 %v2574
        %v2578 = vunpack.c.h.bf16 %v2574
        %v2579 = vpack.c.bf16 %v2447, %v2447
        %2580 = vmatprep.subr.bf16.mxu0 %v1539
        %2581 = vmatpush1.bf16.msra.mxu0 %v1538
        %2582 = vmatprep.subr.bf16.mxu0 %v1535
        %2583 = vmatpush1.bf16.msra.mxu0 %v1534
        %2584 = vmatprep.subr.bf16.mxu0 %v1531
        %2585 = vmatpush1.bf16.msra.mxu0 %v1530
        %2586 = vmatprep.subr.bf16.mxu0 %v1527
        %2587 = vmatpush1.bf16.msra.mxu0 %v1526
        %2588 = vmatprep.subr.bf16.mxu0 %v1523
        %2589 = vmatpush1.bf16.msra.mxu0 %v1522
        %2590 = vmatprep.subr.bf16.mxu0 %v1519
        %2591 = vmatpush1.bf16.msra.mxu0 %v1518
        %2592 = vmatprep.subr.bf16.mxu0 %v1515
        %2593 = vmatpush1.bf16.msra.mxu0 %v1514
        %2594 = vmatprep.subr.bf16.mxu0 %v1511
        %2595 = vmatpush1.bf16.msra.mxu0 %v1510
        %2596 = vmatprep.subr.bf16.mxu0 0
        %2597 = vmatpush2.bf16.msra.mxu0 0
        %2598 = vmatprep.subr.bf16.mxu0 0
        %2599 = vmatpush2.bf16.msra.mxu0 0
        %2600 = vmatprep.subr.bf16.mxu0 0
        %2601 = vmatpush2.bf16.msra.mxu0 0
        %2602 = vmatprep.subr.bf16.mxu0 0
        %2603 = vmatpush2.bf16.msra.mxu0 0
        %2604 = vmatprep.subr.bf16.mxu0 0
        %2605 = vmatpush2.bf16.msra.mxu0 0
        %2606 = vmatprep.subr.bf16.mxu0 0
        %2607 = vmatpush2.bf16.msra.mxu0 0
        %2608 = vmatprep.subr.bf16.mxu0 0
        %2609 = vmatpush2.bf16.msra.mxu0 0
        %2610 = vmatprep.subr.bf16.mxu0 0
        %2611 = vmatpush2.bf16.msra.mxu0 0
        %2612 = vmatprep.mubr.bf16.mxu0 0
        %2613 = vmatmul.mubr.bf16.gmra.mxu0 %v2579
        %v2614 = vpop.f32.mrf.mxu0
        %v2615 = vadd.f32 0.0, %v2614
        %v2616 = vpop.f32.mrf.mxu0
        %v2617 = vadd.f32 0.0, %v2616
        %v2618 = vpop.f32.mrf.mxu0
        %v2619 = vpop.f32.mrf.mxu0
        %2620 = vdwg.mxu0
        %2621 = vmatprep.subr.bf16.mxu0 %v1541
        %2622 = vmatpush1.bf16.msra.mxu0 %v1540
        %2623 = vmatprep.subr.bf16.mxu0 %v1537
        %2624 = vmatpush1.bf16.msra.mxu0 %v1536
        %2625 = vmatprep.subr.bf16.mxu0 %v1533
        %2626 = vmatpush1.bf16.msra.mxu0 %v1532
        %2627 = vmatprep.subr.bf16.mxu0 %v1529
        %2628 = vmatpush1.bf16.msra.mxu0 %v1528
        %2629 = vmatprep.subr.bf16.mxu0 %v1525
        %2630 = vmatpush1.bf16.msra.mxu0 %v1524
        %2631 = vmatprep.subr.bf16.mxu0 %v1521
        %2632 = vmatpush1.bf16.msra.mxu0 %v1520
        %2633 = vmatprep.subr.bf16.mxu0 %v1517
        %2634 = vmatpush1.bf16.msra.mxu0 %v1516
        %2635 = vmatprep.subr.bf16.mxu0 %v1513
        %2636 = vmatpush1.bf16.msra.mxu0 %v1512
        %2637 = vmatprep.subr.bf16.mxu0 0
        %2638 = vmatpush2.bf16.msra.mxu0 0
        %2639 = vmatprep.subr.bf16.mxu0 0
        %2640 = vmatpush2.bf16.msra.mxu0 0
        %2641 = vmatprep.subr.bf16.mxu0 0
        %2642 = vmatpush2.bf16.msra.mxu0 0
        %2643 = vmatprep.subr.bf16.mxu0 0
        %2644 = vmatpush2.bf16.msra.mxu0 0
        %2645 = vmatprep.subr.bf16.mxu0 0
        %2646 = vmatpush2.bf16.msra.mxu0 0
        %2647 = vmatprep.subr.bf16.mxu0 0
        %2648 = vmatpush2.bf16.msra.mxu0 0
        %2649 = vmatprep.subr.bf16.mxu0 0
        %2650 = vmatpush2.bf16.msra.mxu0 0
        %2651 = vmatprep.subr.bf16.mxu0 0
        %2652 = vmatpush2.bf16.msra.mxu0 0
        %2653 = vmatprep.mubr.bf16.mxu0 0
        %2654 = vmatmul.mubr.bf16.gmra.mxu0 %v2579
        %v2655 = vpop.f32.mrf.mxu0
        %v2656 = vadd.f32 0.0, %v2655
        %v2657 = vpop.f32.mrf.mxu0
        %v2658 = vadd.f32 0.0, %v2657
        %v2659 = vpop.f32.mrf.mxu0
        %v2660 = vpop.f32.mrf.mxu0
        %2661 = vdwg.mxu0
        %v2662 = vadd.f32 %v2575, %v2615
        %v2663 = vadd.f32 %v2576, %v2617
        %v2664 = vadd.f32 %v2577, %v2656
        %v2665 = vadd.f32 %v2578, %v2658
        %v2666 = vxor.u32 %v2662, 2147483648
        %v2667 = vmul.f32 %v2666, 1.442695
        %v2668 = vpow.pop %v2667
        %v2669 = vadd.f32 %v2668, 1.0
        %v2670 = vrcp.pop %v2669
        %v2671 = vmul.f32 1.0, %v2670
        %v2672 = vxor.u32 %v2663, 2147483648
        %v2673 = vmul.f32 %v2672, 1.442695
        %v2674 = vpow.pop %v2673
        %v2675 = vadd.f32 %v2674, 1.0
        %v2676 = vrcp.pop %v2675
        %v2677 = vmul.f32 1.0, %v2676
        %v2678 = vtanh.pop %v2664
        %v2679 = vxor.u32 %v2665, 2147483648
        %v2680 = vmul.f32 %v2679, 1.442695
        %v2681 = vpow.pop %v2680
        %v2682 = vadd.f32 %v2681, 1.0
        %v2683 = vrcp.pop %v2682
        %v2684 = vmul.f32 1.0, %v2683
        %v2685 = vmul.f32 %v2677, %v2445
        %v2686 = vmul.f32 %v2671, %v2678
        %v2687 = vadd.f32 %v2685, %v2686
        %v2688 = vtanh.pop %v2687
        %v2689 = vmul.f32 %v2684, %v2688
        %v2690 = vadd.f32 %v2448, %v2689
        %s2691 = smul.u32 10, 4
        %s2692 = smul.addr %s2691, 4
        %s2693 = scalar_lea.vmem [#allocation2], %s2692
        %v2694 = vld [vmem:[%s2693] sm:$0xff]
        %v2695 = vld [vmem:[%s2693 + $0x8] sm:$0xff]
        %v2696 = vunpack.c.l.bf16 %v2694
        %v2697 = vunpack.c.h.bf16 %v2694
        %v2698 = vunpack.c.l.bf16 %v2695
        %v2699 = vunpack.c.h.bf16 %v2695
        %v2700 = vpack.c.bf16 %v2568, %v2568
        %2701 = vmatprep.subr.bf16.mxu0 %v1539
        %2702 = vmatpush1.bf16.msra.mxu0 %v1538
        %2703 = vmatprep.subr.bf16.mxu0 %v1535
        %2704 = vmatpush1.bf16.msra.mxu0 %v1534
        %2705 = vmatprep.subr.bf16.mxu0 %v1531
        %2706 = vmatpush1.bf16.msra.mxu0 %v1530
        %2707 = vmatprep.subr.bf16.mxu0 %v1527
        %2708 = vmatpush1.bf16.msra.mxu0 %v1526
        %2709 = vmatprep.subr.bf16.mxu0 %v1523
        %2710 = vmatpush1.bf16.msra.mxu0 %v1522
        %2711 = vmatprep.subr.bf16.mxu0 %v1519
        %2712 = vmatpush1.bf16.msra.mxu0 %v1518
        %2713 = vmatprep.subr.bf16.mxu0 %v1515
        %2714 = vmatpush1.bf16.msra.mxu0 %v1514
        %2715 = vmatprep.subr.bf16.mxu0 %v1511
        %2716 = vmatpush1.bf16.msra.mxu0 %v1510
        %2717 = vmatprep.subr.bf16.mxu0 0
        %2718 = vmatpush2.bf16.msra.mxu0 0
        %2719 = vmatprep.subr.bf16.mxu0 0
        %2720 = vmatpush2.bf16.msra.mxu0 0
        %2721 = vmatprep.subr.bf16.mxu0 0
        %2722 = vmatpush2.bf16.msra.mxu0 0
        %2723 = vmatprep.subr.bf16.mxu0 0
        %2724 = vmatpush2.bf16.msra.mxu0 0
        %2725 = vmatprep.subr.bf16.mxu0 0
        %2726 = vmatpush2.bf16.msra.mxu0 0
        %2727 = vmatprep.subr.bf16.mxu0 0
        %2728 = vmatpush2.bf16.msra.mxu0 0
        %2729 = vmatprep.subr.bf16.mxu0 0
        %2730 = vmatpush2.bf16.msra.mxu0 0
        %2731 = vmatprep.subr.bf16.mxu0 0
        %2732 = vmatpush2.bf16.msra.mxu0 0
        %2733 = vmatprep.mubr.bf16.mxu0 0
        %2734 = vmatmul.mubr.bf16.gmra.mxu0 %v2700
        %v2735 = vpop.f32.mrf.mxu0
        %v2736 = vadd.f32 0.0, %v2735
        %v2737 = vpop.f32.mrf.mxu0
        %v2738 = vadd.f32 0.0, %v2737
        %v2739 = vpop.f32.mrf.mxu0
        %v2740 = vpop.f32.mrf.mxu0
        %2741 = vdwg.mxu0
        %2742 = vmatprep.subr.bf16.mxu0 %v1541
        %2743 = vmatpush1.bf16.msra.mxu0 %v1540
        %2744 = vmatprep.subr.bf16.mxu0 %v1537
        %2745 = vmatpush1.bf16.msra.mxu0 %v1536
        %2746 = vmatprep.subr.bf16.mxu0 %v1533
        %2747 = vmatpush1.bf16.msra.mxu0 %v1532
        %2748 = vmatprep.subr.bf16.mxu0 %v1529
        %2749 = vmatpush1.bf16.msra.mxu0 %v1528
        %2750 = vmatprep.subr.bf16.mxu0 %v1525
        %2751 = vmatpush1.bf16.msra.mxu0 %v1524
        %2752 = vmatprep.subr.bf16.mxu0 %v1521
        %2753 = vmatpush1.bf16.msra.mxu0 %v1520
        %2754 = vmatprep.subr.bf16.mxu0 %v1517
        %2755 = vmatpush1.bf16.msra.mxu0 %v1516
        %2756 = vmatprep.subr.bf16.mxu0 %v1513
        %2757 = vmatpush1.bf16.msra.mxu0 %v1512
        %2758 = vmatprep.subr.bf16.mxu0 0
        %2759 = vmatpush2.bf16.msra.mxu0 0
        %2760 = vmatprep.subr.bf16.mxu0 0
        %2761 = vmatpush2.bf16.msra.mxu0 0
        %2762 = vmatprep.subr.bf16.mxu0 0
        %2763 = vmatpush2.bf16.msra.mxu0 0
        %2764 = vmatprep.subr.bf16.mxu0 0
        %2765 = vmatpush2.bf16.msra.mxu0 0
        %2766 = vmatprep.subr.bf16.mxu0 0
        %2767 = vmatpush2.bf16.msra.mxu0 0
        %2768 = vmatprep.subr.bf16.mxu0 0
        %2769 = vmatpush2.bf16.msra.mxu0 0
        %2770 = vmatprep.subr.bf16.mxu0 0
        %2771 = vmatpush2.bf16.msra.mxu0 0
        %2772 = vmatprep.subr.bf16.mxu0 0
        %2773 = vmatpush2.bf16.msra.mxu0 0
        %2774 = vmatprep.mubr.bf16.mxu0 0
        %2775 = vmatmul.mubr.bf16.gmra.mxu0 %v2700
        %v2776 = vpop.f32.mrf.mxu0
        %v2777 = vadd.f32 0.0, %v2776
        %v2778 = vpop.f32.mrf.mxu0
        %v2779 = vadd.f32 0.0, %v2778
        %v2780 = vpop.f32.mrf.mxu0
        %v2781 = vpop.f32.mrf.mxu0
        %2782 = vdwg.mxu0
        %v2783 = vadd.f32 %v2696, %v2736
        %v2784 = vadd.f32 %v2697, %v2738
        %v2785 = vadd.f32 %v2698, %v2777
        %v2786 = vadd.f32 %v2699, %v2779
        %v2787 = vxor.u32 %v2783, 2147483648
        %v2788 = vmul.f32 %v2787, 1.442695
        %v2789 = vpow.pop %v2788
        %v2790 = vadd.f32 %v2789, 1.0
        %v2791 = vrcp.pop %v2790
        %v2792 = vmul.f32 1.0, %v2791
        %v2793 = vxor.u32 %v2784, 2147483648
        %v2794 = vmul.f32 %v2793, 1.442695
        %v2795 = vpow.pop %v2794
        %v2796 = vadd.f32 %v2795, 1.0
        %v2797 = vrcp.pop %v2796
        %v2798 = vmul.f32 1.0, %v2797
        %v2799 = vtanh.pop %v2785
        %v2800 = vxor.u32 %v2786, 2147483648
        %v2801 = vmul.f32 %v2800, 1.442695
        %v2802 = vpow.pop %v2801
        %v2803 = vadd.f32 %v2802, 1.0
        %v2804 = vrcp.pop %v2803
        %v2805 = vmul.f32 1.0, %v2804
        %v2806 = vmul.f32 %v2798, %v2566
        %v2807 = vmul.f32 %v2792, %v2799
        %v2808 = vadd.f32 %v2806, %v2807
        %v2809 = vtanh.pop %v2808
        %v2810 = vmul.f32 %v2805, %v2809
        %v2811 = vadd.f32 %v2569, %v2810
        %s2812 = smul.u32 11, 4
        %s2813 = smul.addr %s2812, 4
        %s2814 = scalar_lea.vmem [#allocation2], %s2813
        %v2815 = vld [vmem:[%s2814] sm:$0xff]
        %v2816 = vld [vmem:[%s2814 + $0x8] sm:$0xff]
        %v2817 = vunpack.c.l.bf16 %v2815
        %v2818 = vunpack.c.h.bf16 %v2815
        %v2819 = vunpack.c.l.bf16 %v2816
        %v2820 = vunpack.c.h.bf16 %v2816
        %v2821 = vpack.c.bf16 %v2689, %v2689
        %2822 = vmatprep.subr.bf16.mxu0 %v1539
        %2823 = vmatpush1.bf16.msra.mxu0 %v1538
        %2824 = vmatprep.subr.bf16.mxu0 %v1535
        %2825 = vmatpush1.bf16.msra.mxu0 %v1534
        %2826 = vmatprep.subr.bf16.mxu0 %v1531
        %2827 = vmatpush1.bf16.msra.mxu0 %v1530
        %2828 = vmatprep.subr.bf16.mxu0 %v1527
        %2829 = vmatpush1.bf16.msra.mxu0 %v1526
        %2830 = vmatprep.subr.bf16.mxu0 %v1523
        %2831 = vmatpush1.bf16.msra.mxu0 %v1522
        %2832 = vmatprep.subr.bf16.mxu0 %v1519
        %2833 = vmatpush1.bf16.msra.mxu0 %v1518
        %2834 = vmatprep.subr.bf16.mxu0 %v1515
        %2835 = vmatpush1.bf16.msra.mxu0 %v1514
        %2836 = vmatprep.subr.bf16.mxu0 %v1511
        %2837 = vmatpush1.bf16.msra.mxu0 %v1510
        %2838 = vmatprep.subr.bf16.mxu0 0
        %2839 = vmatpush2.bf16.msra.mxu0 0
        %2840 = vmatprep.subr.bf16.mxu0 0
        %2841 = vmatpush2.bf16.msra.mxu0 0
        %2842 = vmatprep.subr.bf16.mxu0 0
        %2843 = vmatpush2.bf16.msra.mxu0 0
        %2844 = vmatprep.subr.bf16.mxu0 0
        %2845 = vmatpush2.bf16.msra.mxu0 0
        %2846 = vmatprep.subr.bf16.mxu0 0
        %2847 = vmatpush2.bf16.msra.mxu0 0
        %2848 = vmatprep.subr.bf16.mxu0 0
        %2849 = vmatpush2.bf16.msra.mxu0 0
        %2850 = vmatprep.subr.bf16.mxu0 0
        %2851 = vmatpush2.bf16.msra.mxu0 0
        %2852 = vmatprep.subr.bf16.mxu0 0
        %2853 = vmatpush2.bf16.msra.mxu0 0
        %2854 = vmatprep.mubr.bf16.mxu0 0
        %2855 = vmatmul.mubr.bf16.gmra.mxu0 %v2821
        %v2856 = vpop.f32.mrf.mxu0
        %v2857 = vadd.f32 0.0, %v2856
        %v2858 = vpop.f32.mrf.mxu0
        %v2859 = vadd.f32 0.0, %v2858
        %v2860 = vpop.f32.mrf.mxu0
        %v2861 = vpop.f32.mrf.mxu0
        %2862 = vdwg.mxu0
        %2863 = vmatprep.subr.bf16.mxu0 %v1541
        %2864 = vmatpush1.bf16.msra.mxu0 %v1540
        %2865 = vmatprep.subr.bf16.mxu0 %v1537
        %2866 = vmatpush1.bf16.msra.mxu0 %v1536
        %2867 = vmatprep.subr.bf16.mxu0 %v1533
        %2868 = vmatpush1.bf16.msra.mxu0 %v1532
        %2869 = vmatprep.subr.bf16.mxu0 %v1529
        %2870 = vmatpush1.bf16.msra.mxu0 %v1528
        %2871 = vmatprep.subr.bf16.mxu0 %v1525
        %2872 = vmatpush1.bf16.msra.mxu0 %v1524
        %2873 = vmatprep.subr.bf16.mxu0 %v1521
        %2874 = vmatpush1.bf16.msra.mxu0 %v1520
        %2875 = vmatprep.subr.bf16.mxu0 %v1517
        %2876 = vmatpush1.bf16.msra.mxu0 %v1516
        %2877 = vmatprep.subr.bf16.mxu0 %v1513
        %2878 = vmatpush1.bf16.msra.mxu0 %v1512
        %2879 = vmatprep.subr.bf16.mxu0 0
        %2880 = vmatpush2.bf16.msra.mxu0 0
        %2881 = vmatprep.subr.bf16.mxu0 0
        %2882 = vmatpush2.bf16.msra.mxu0 0
        %2883 = vmatprep.subr.bf16.mxu0 0
        %2884 = vmatpush2.bf16.msra.mxu0 0
        %2885 = vmatprep.subr.bf16.mxu0 0
        %2886 = vmatpush2.bf16.msra.mxu0 0
        %2887 = vmatprep.subr.bf16.mxu0 0
        %2888 = vmatpush2.bf16.msra.mxu0 0
        %2889 = vmatprep.subr.bf16.mxu0 0
        %2890 = vmatpush2.bf16.msra.mxu0 0
        %2891 = vmatprep.subr.bf16.mxu0 0
        %2892 = vmatpush2.bf16.msra.mxu0 0
        %2893 = vmatprep.subr.bf16.mxu0 0
        %2894 = vmatpush2.bf16.msra.mxu0 0
        %2895 = vmatprep.mubr.bf16.mxu0 0
        %2896 = vmatmul.mubr.bf16.gmra.mxu0 %v2821
        %v2897 = vpop.f32.mrf.mxu0
        %v2898 = vadd.f32 0.0, %v2897
        %v2899 = vpop.f32.mrf.mxu0
        %v2900 = vadd.f32 0.0, %v2899
        %v2901 = vpop.f32.mrf.mxu0
        %v2902 = vpop.f32.mrf.mxu0
        %2903 = vdwg.mxu0
        %v2904 = vadd.f32 %v2817, %v2857
        %v2905 = vadd.f32 %v2818, %v2859
        %v2906 = vadd.f32 %v2819, %v2898
        %v2907 = vadd.f32 %v2820, %v2900
        %v2908 = vxor.u32 %v2904, 2147483648
        %v2909 = vmul.f32 %v2908, 1.442695
        %v2910 = vpow.pop %v2909
        %v2911 = vadd.f32 %v2910, 1.0
        %v2912 = vrcp.pop %v2911
        %v2913 = vmul.f32 1.0, %v2912
        %v2914 = vxor.u32 %v2905, 2147483648
        %v2915 = vmul.f32 %v2914, 1.442695
        %v2916 = vpow.pop %v2915
        %v2917 = vadd.f32 %v2916, 1.0
        %v2918 = vrcp.pop %v2917
        %v2919 = vmul.f32 1.0, %v2918
        %v2920 = vtanh.pop %v2906
        %v2921 = vxor.u32 %v2907, 2147483648
        %v2922 = vmul.f32 %v2921, 1.442695
        %v2923 = vpow.pop %v2922
        %v2924 = vadd.f32 %v2923, 1.0
        %v2925 = vrcp.pop %v2924
        %v2926 = vmul.f32 1.0, %v2925
        %v2927 = vmul.f32 %v2919, %v2687
        %v2928 = vmul.f32 %v2913, %v2920
        %v2929 = vadd.f32 %v2927, %v2928
        %v2930 = vtanh.pop %v2929
        %v2931 = vmul.f32 %v2926, %v2930
        %v2932 = vadd.f32 %v2690, %v2931
        %s2933 = smul.u32 12, 4
        %s2934 = smul.addr %s2933, 4
        %s2935 = scalar_lea.vmem [#allocation2], %s2934
        %v2936 = vld [vmem:[%s2935] sm:$0xff]
        %v2937 = vld [vmem:[%s2935 + $0x8] sm:$0xff]
        %v2938 = vunpack.c.l.bf16 %v2936
        %v2939 = vunpack.c.h.bf16 %v2936
        %v2940 = vunpack.c.l.bf16 %v2937
        %v2941 = vunpack.c.h.bf16 %v2937
        %v2942 = vpack.c.bf16 %v2810, %v2810
        %2943 = vmatprep.subr.bf16.mxu0 %v1539
        %2944 = vmatpush1.bf16.msra.mxu0 %v1538
        %2945 = vmatprep.subr.bf16.mxu0 %v1535
        %2946 = vmatpush1.bf16.msra.mxu0 %v1534
        %2947 = vmatprep.subr.bf16.mxu0 %v1531
        %2948 = vmatpush1.bf16.msra.mxu0 %v1530
        %2949 = vmatprep.subr.bf16.mxu0 %v1527
        %2950 = vmatpush1.bf16.msra.mxu0 %v1526
        %2951 = vmatprep.subr.bf16.mxu0 %v1523
        %2952 = vmatpush1.bf16.msra.mxu0 %v1522
        %2953 = vmatprep.subr.bf16.mxu0 %v1519
        %2954 = vmatpush1.bf16.msra.mxu0 %v1518
        %2955 = vmatprep.subr.bf16.mxu0 %v1515
        %2956 = vmatpush1.bf16.msra.mxu0 %v1514
        %2957 = vmatprep.subr.bf16.mxu0 %v1511
        %2958 = vmatpush1.bf16.msra.mxu0 %v1510
        %2959 = vmatprep.subr.bf16.mxu0 0
        %2960 = vmatpush2.bf16.msra.mxu0 0
        %2961 = vmatprep.subr.bf16.mxu0 0
        %2962 = vmatpush2.bf16.msra.mxu0 0
        %2963 = vmatprep.subr.bf16.mxu0 0
        %2964 = vmatpush2.bf16.msra.mxu0 0
        %2965 = vmatprep.subr.bf16.mxu0 0
        %2966 = vmatpush2.bf16.msra.mxu0 0
        %2967 = vmatprep.subr.bf16.mxu0 0
        %2968 = vmatpush2.bf16.msra.mxu0 0
        %2969 = vmatprep.subr.bf16.mxu0 0
        %2970 = vmatpush2.bf16.msra.mxu0 0
        %2971 = vmatprep.subr.bf16.mxu0 0
        %2972 = vmatpush2.bf16.msra.mxu0 0
        %2973 = vmatprep.subr.bf16.mxu0 0
        %2974 = vmatpush2.bf16.msra.mxu0 0
        %2975 = vmatprep.mubr.bf16.mxu0 0
        %2976 = vmatmul.mubr.bf16.gmra.mxu0 %v2942
        %v2977 = vpop.f32.mrf.mxu0
        %v2978 = vadd.f32 0.0, %v2977
        %v2979 = vpop.f32.mrf.mxu0
        %v2980 = vadd.f32 0.0, %v2979
        %v2981 = vpop.f32.mrf.mxu0
        %v2982 = vpop.f32.mrf.mxu0
        %2983 = vdwg.mxu0
        %2984 = vmatprep.subr.bf16.mxu0 %v1541
        %2985 = vmatpush1.bf16.msra.mxu0 %v1540
        %2986 = vmatprep.subr.bf16.mxu0 %v1537
        %2987 = vmatpush1.bf16.msra.mxu0 %v1536
        %2988 = vmatprep.subr.bf16.mxu0 %v1533
        %2989 = vmatpush1.bf16.msra.mxu0 %v1532
        %2990 = vmatprep.subr.bf16.mxu0 %v1529
        %2991 = vmatpush1.bf16.msra.mxu0 %v1528
        %2992 = vmatprep.subr.bf16.mxu0 %v1525
        %2993 = vmatpush1.bf16.msra.mxu0 %v1524
        %2994 = vmatprep.subr.bf16.mxu0 %v1521
        %2995 = vmatpush1.bf16.msra.mxu0 %v1520
        %2996 = vmatprep.subr.bf16.mxu0 %v1517
        %2997 = vmatpush1.bf16.msra.mxu0 %v1516
        %2998 = vmatprep.subr.bf16.mxu0 %v1513
        %2999 = vmatpush1.bf16.msra.mxu0 %v1512
        %3000 = vmatprep.subr.bf16.mxu0 0
        %3001 = vmatpush2.bf16.msra.mxu0 0
        %3002 = vmatprep.subr.bf16.mxu0 0
        %3003 = vmatpush2.bf16.msra.mxu0 0
        %3004 = vmatprep.subr.bf16.mxu0 0
        %3005 = vmatpush2.bf16.msra.mxu0 0
        %3006 = vmatprep.subr.bf16.mxu0 0
        %3007 = vmatpush2.bf16.msra.mxu0 0
        %3008 = vmatprep.subr.bf16.mxu0 0
        %3009 = vmatpush2.bf16.msra.mxu0 0
        %3010 = vmatprep.subr.bf16.mxu0 0
        %3011 = vmatpush2.bf16.msra.mxu0 0
        %3012 = vmatprep.subr.bf16.mxu0 0
        %3013 = vmatpush2.bf16.msra.mxu0 0
        %3014 = vmatprep.subr.bf16.mxu0 0
        %3015 = vmatpush2.bf16.msra.mxu0 0
        %3016 = vmatprep.mubr.bf16.mxu0 0
        %3017 = vmatmul.mubr.bf16.gmra.mxu0 %v2942
        %v3018 = vpop.f32.mrf.mxu0
        %v3019 = vadd.f32 0.0, %v3018
        %v3020 = vpop.f32.mrf.mxu0
        %v3021 = vadd.f32 0.0, %v3020
        %v3022 = vpop.f32.mrf.mxu0
        %v3023 = vpop.f32.mrf.mxu0
        %3024 = vdwg.mxu0
        %v3025 = vadd.f32 %v2938, %v2978
        %v3026 = vadd.f32 %v2939, %v2980
        %v3027 = vadd.f32 %v2940, %v3019
        %v3028 = vadd.f32 %v2941, %v3021
        %v3029 = vxor.u32 %v3025, 2147483648
        %v3030 = vmul.f32 %v3029, 1.442695
        %v3031 = vpow.pop %v3030
        %v3032 = vadd.f32 %v3031, 1.0
        %v3033 = vrcp.pop %v3032
        %v3034 = vmul.f32 1.0, %v3033
        %v3035 = vxor.u32 %v3026, 2147483648
        %v3036 = vmul.f32 %v3035, 1.442695
        %v3037 = vpow.pop %v3036
        %v3038 = vadd.f32 %v3037, 1.0
        %v3039 = vrcp.pop %v3038
        %v3040 = vmul.f32 1.0, %v3039
        %v3041 = vtanh.pop %v3027
        %v3042 = vxor.u32 %v3028, 2147483648
        %v3043 = vmul.f32 %v3042, 1.442695
        %v3044 = vpow.pop %v3043
        %v3045 = vadd.f32 %v3044, 1.0
        %v3046 = vrcp.pop %v3045
        %v3047 = vmul.f32 1.0, %v3046
        %v3048 = vmul.f32 %v3040, %v2808
        %v3049 = vmul.f32 %v3034, %v3041
        %v3050 = vadd.f32 %v3048, %v3049
        %v3051 = vtanh.pop %v3050
        %v3052 = vmul.f32 %v3047, %v3051
        %v3053 = vadd.f32 %v2811, %v3052
        %s3054 = smul.u32 13, 4
        %s3055 = smul.addr %s3054, 4
        %s3056 = scalar_lea.vmem [#allocation2], %s3055
        %v3057 = vld [vmem:[%s3056] sm:$0xff]
        %v3058 = vld [vmem:[%s3056 + $0x8] sm:$0xff]
        %v3059 = vunpack.c.l.bf16 %v3057
        %v3060 = vunpack.c.h.bf16 %v3057
        %v3061 = vunpack.c.l.bf16 %v3058
        %v3062 = vunpack.c.h.bf16 %v3058
        %v3063 = vpack.c.bf16 %v2931, %v2931
        %3064 = vmatprep.subr.bf16.mxu0 %v1539
        %3065 = vmatpush1.bf16.msra.mxu0 %v1538
        %3066 = vmatprep.subr.bf16.mxu0 %v1535
        %3067 = vmatpush1.bf16.msra.mxu0 %v1534
        %3068 = vmatprep.subr.bf16.mxu0 %v1531
        %3069 = vmatpush1.bf16.msra.mxu0 %v1530
        %3070 = vmatprep.subr.bf16.mxu0 %v1527
        %3071 = vmatpush1.bf16.msra.mxu0 %v1526
        %3072 = vmatprep.subr.bf16.mxu0 %v1523
        %3073 = vmatpush1.bf16.msra.mxu0 %v1522
        %3074 = vmatprep.subr.bf16.mxu0 %v1519
        %3075 = vmatpush1.bf16.msra.mxu0 %v1518
        %3076 = vmatprep.subr.bf16.mxu0 %v1515
        %3077 = vmatpush1.bf16.msra.mxu0 %v1514
        %3078 = vmatprep.subr.bf16.mxu0 %v1511
        %3079 = vmatpush1.bf16.msra.mxu0 %v1510
        %3080 = vmatprep.subr.bf16.mxu0 0
        %3081 = vmatpush2.bf16.msra.mxu0 0
        %3082 = vmatprep.subr.bf16.mxu0 0
        %3083 = vmatpush2.bf16.msra.mxu0 0
        %3084 = vmatprep.subr.bf16.mxu0 0
        %3085 = vmatpush2.bf16.msra.mxu0 0
        %3086 = vmatprep.subr.bf16.mxu0 0
        %3087 = vmatpush2.bf16.msra.mxu0 0
        %3088 = vmatprep.subr.bf16.mxu0 0
        %3089 = vmatpush2.bf16.msra.mxu0 0
        %3090 = vmatprep.subr.bf16.mxu0 0
        %3091 = vmatpush2.bf16.msra.mxu0 0
        %3092 = vmatprep.subr.bf16.mxu0 0
        %3093 = vmatpush2.bf16.msra.mxu0 0
        %3094 = vmatprep.subr.bf16.mxu0 0
        %3095 = vmatpush2.bf16.msra.mxu0 0
        %3096 = vmatprep.mubr.bf16.mxu0 0
        %3097 = vmatmul.mubr.bf16.gmra.mxu0 %v3063
        %v3098 = vpop.f32.mrf.mxu0
        %v3099 = vadd.f32 0.0, %v3098
        %v3100 = vpop.f32.mrf.mxu0
        %v3101 = vadd.f32 0.0, %v3100
        %v3102 = vpop.f32.mrf.mxu0
        %v3103 = vpop.f32.mrf.mxu0
        %3104 = vdwg.mxu0
        %3105 = vmatprep.subr.bf16.mxu0 %v1541
        %3106 = vmatpush1.bf16.msra.mxu0 %v1540
        %3107 = vmatprep.subr.bf16.mxu0 %v1537
        %3108 = vmatpush1.bf16.msra.mxu0 %v1536
        %3109 = vmatprep.subr.bf16.mxu0 %v1533
        %3110 = vmatpush1.bf16.msra.mxu0 %v1532
        %3111 = vmatprep.subr.bf16.mxu0 %v1529
        %3112 = vmatpush1.bf16.msra.mxu0 %v1528
        %3113 = vmatprep.subr.bf16.mxu0 %v1525
        %3114 = vmatpush1.bf16.msra.mxu0 %v1524
        %3115 = vmatprep.subr.bf16.mxu0 %v1521
        %3116 = vmatpush1.bf16.msra.mxu0 %v1520
        %3117 = vmatprep.subr.bf16.mxu0 %v1517
        %3118 = vmatpush1.bf16.msra.mxu0 %v1516
        %3119 = vmatprep.subr.bf16.mxu0 %v1513
        %3120 = vmatpush1.bf16.msra.mxu0 %v1512
        %3121 = vmatprep.subr.bf16.mxu0 0
        %3122 = vmatpush2.bf16.msra.mxu0 0
        %3123 = vmatprep.subr.bf16.mxu0 0
        %3124 = vmatpush2.bf16.msra.mxu0 0
        %3125 = vmatprep.subr.bf16.mxu0 0
        %3126 = vmatpush2.bf16.msra.mxu0 0
        %3127 = vmatprep.subr.bf16.mxu0 0
        %3128 = vmatpush2.bf16.msra.mxu0 0
        %3129 = vmatprep.subr.bf16.mxu0 0
        %3130 = vmatpush2.bf16.msra.mxu0 0
        %3131 = vmatprep.subr.bf16.mxu0 0
        %3132 = vmatpush2.bf16.msra.mxu0 0
        %3133 = vmatprep.subr.bf16.mxu0 0
        %3134 = vmatpush2.bf16.msra.mxu0 0
        %3135 = vmatprep.subr.bf16.mxu0 0
        %3136 = vmatpush2.bf16.msra.mxu0 0
        %3137 = vmatprep.mubr.bf16.mxu0 0
        %3138 = vmatmul.mubr.bf16.gmra.mxu0 %v3063
        %v3139 = vpop.f32.mrf.mxu0
        %v3140 = vadd.f32 0.0, %v3139
        %v3141 = vpop.f32.mrf.mxu0
        %v3142 = vadd.f32 0.0, %v3141
        %v3143 = vpop.f32.mrf.mxu0
        %v3144 = vpop.f32.mrf.mxu0
        %3145 = vdwg.mxu0
        %v3146 = vadd.f32 %v3059, %v3099
        %v3147 = vadd.f32 %v3060, %v3101
        %v3148 = vadd.f32 %v3061, %v3140
        %v3149 = vadd.f32 %v3062, %v3142
        %v3150 = vxor.u32 %v3146, 2147483648
        %v3151 = vmul.f32 %v3150, 1.442695
        %v3152 = vpow.pop %v3151
        %v3153 = vadd.f32 %v3152, 1.0
        %v3154 = vrcp.pop %v3153
        %v3155 = vmul.f32 1.0, %v3154
        %v3156 = vxor.u32 %v3147, 2147483648
        %v3157 = vmul.f32 %v3156, 1.442695
        %v3158 = vpow.pop %v3157
        %v3159 = vadd.f32 %v3158, 1.0
        %v3160 = vrcp.pop %v3159
        %v3161 = vmul.f32 1.0, %v3160
        %v3162 = vtanh.pop %v3148
        %v3163 = vxor.u32 %v3149, 2147483648
        %v3164 = vmul.f32 %v3163, 1.442695
        %v3165 = vpow.pop %v3164
        %v3166 = vadd.f32 %v3165, 1.0
        %v3167 = vrcp.pop %v3166
        %v3168 = vmul.f32 1.0, %v3167
        %v3169 = vmul.f32 %v3161, %v2929
        %v3170 = vmul.f32 %v3155, %v3162
        %v3171 = vadd.f32 %v3169, %v3170
        %v3172 = vtanh.pop %v3171
        %v3173 = vmul.f32 %v3168, %v3172
        %v3174 = vadd.f32 %v2932, %v3173
        %s3175 = smul.u32 14, 4
        %s3176 = smul.addr %s3175, 4
        %s3177 = scalar_lea.vmem [#allocation2], %s3176
        %v3178 = vld [vmem:[%s3177] sm:$0xff]
        %v3179 = vld [vmem:[%s3177 + $0x8] sm:$0xff]
        %v3180 = vunpack.c.l.bf16 %v3178
        %v3181 = vunpack.c.h.bf16 %v3178
        %v3182 = vunpack.c.l.bf16 %v3179
        %v3183 = vunpack.c.h.bf16 %v3179
        %v3184 = vpack.c.bf16 %v3052, %v3052
        %3185 = vmatprep.subr.bf16.mxu0 %v1539
        %3186 = vmatpush1.bf16.msra.mxu0 %v1538
        %3187 = vmatprep.subr.bf16.mxu0 %v1535
        %3188 = vmatpush1.bf16.msra.mxu0 %v1534
        %3189 = vmatprep.subr.bf16.mxu0 %v1531
        %3190 = vmatpush1.bf16.msra.mxu0 %v1530
        %3191 = vmatprep.subr.bf16.mxu0 %v1527
        %3192 = vmatpush1.bf16.msra.mxu0 %v1526
        %3193 = vmatprep.subr.bf16.mxu0 %v1523
        %3194 = vmatpush1.bf16.msra.mxu0 %v1522
        %3195 = vmatprep.subr.bf16.mxu0 %v1519
        %3196 = vmatpush1.bf16.msra.mxu0 %v1518
        %3197 = vmatprep.subr.bf16.mxu0 %v1515
        %3198 = vmatpush1.bf16.msra.mxu0 %v1514
        %3199 = vmatprep.subr.bf16.mxu0 %v1511
        %3200 = vmatpush1.bf16.msra.mxu0 %v1510
        %3201 = vmatprep.subr.bf16.mxu0 0
        %3202 = vmatpush2.bf16.msra.mxu0 0
        %3203 = vmatprep.subr.bf16.mxu0 0
        %3204 = vmatpush2.bf16.msra.mxu0 0
        %3205 = vmatprep.subr.bf16.mxu0 0
        %3206 = vmatpush2.bf16.msra.mxu0 0
        %3207 = vmatprep.subr.bf16.mxu0 0
        %3208 = vmatpush2.bf16.msra.mxu0 0
        %3209 = vmatprep.subr.bf16.mxu0 0
        %3210 = vmatpush2.bf16.msra.mxu0 0
        %3211 = vmatprep.subr.bf16.mxu0 0
        %3212 = vmatpush2.bf16.msra.mxu0 0
        %3213 = vmatprep.subr.bf16.mxu0 0
        %3214 = vmatpush2.bf16.msra.mxu0 0
        %3215 = vmatprep.subr.bf16.mxu0 0
        %3216 = vmatpush2.bf16.msra.mxu0 0
        %3217 = vmatprep.mubr.bf16.mxu0 0
        %3218 = vmatmul.mubr.bf16.gmra.mxu0 %v3184
        %v3219 = vpop.f32.mrf.mxu0
        %v3220 = vadd.f32 0.0, %v3219
        %v3221 = vpop.f32.mrf.mxu0
        %v3222 = vadd.f32 0.0, %v3221
        %v3223 = vpop.f32.mrf.mxu0
        %v3224 = vpop.f32.mrf.mxu0
        %3225 = vdwg.mxu0
        %3226 = vmatprep.subr.bf16.mxu0 %v1541
        %3227 = vmatpush1.bf16.msra.mxu0 %v1540
        %3228 = vmatprep.subr.bf16.mxu0 %v1537
        %3229 = vmatpush1.bf16.msra.mxu0 %v1536
        %3230 = vmatprep.subr.bf16.mxu0 %v1533
        %3231 = vmatpush1.bf16.msra.mxu0 %v1532
        %3232 = vmatprep.subr.bf16.mxu0 %v1529
        %3233 = vmatpush1.bf16.msra.mxu0 %v1528
        %3234 = vmatprep.subr.bf16.mxu0 %v1525
        %3235 = vmatpush1.bf16.msra.mxu0 %v1524
        %3236 = vmatprep.subr.bf16.mxu0 %v1521
        %3237 = vmatpush1.bf16.msra.mxu0 %v1520
        %3238 = vmatprep.subr.bf16.mxu0 %v1517
        %3239 = vmatpush1.bf16.msra.mxu0 %v1516
        %3240 = vmatprep.subr.bf16.mxu0 %v1513
        %3241 = vmatpush1.bf16.msra.mxu0 %v1512
        %3242 = vmatprep.subr.bf16.mxu0 0
        %3243 = vmatpush2.bf16.msra.mxu0 0
        %3244 = vmatprep.subr.bf16.mxu0 0
        %3245 = vmatpush2.bf16.msra.mxu0 0
        %3246 = vmatprep.subr.bf16.mxu0 0
        %3247 = vmatpush2.bf16.msra.mxu0 0
        %3248 = vmatprep.subr.bf16.mxu0 0
        %3249 = vmatpush2.bf16.msra.mxu0 0
        %3250 = vmatprep.subr.bf16.mxu0 0
        %3251 = vmatpush2.bf16.msra.mxu0 0
        %3252 = vmatprep.subr.bf16.mxu0 0
        %3253 = vmatpush2.bf16.msra.mxu0 0
        %3254 = vmatprep.subr.bf16.mxu0 0
        %3255 = vmatpush2.bf16.msra.mxu0 0
        %3256 = vmatprep.subr.bf16.mxu0 0
        %3257 = vmatpush2.bf16.msra.mxu0 0
        %3258 = vmatprep.mubr.bf16.mxu0 0
        %3259 = vmatmul.mubr.bf16.gmra.mxu0 %v3184
        %v3260 = vpop.f32.mrf.mxu0
        %v3261 = vadd.f32 0.0, %v3260
        %v3262 = vpop.f32.mrf.mxu0
        %v3263 = vadd.f32 0.0, %v3262
        %v3264 = vpop.f32.mrf.mxu0
        %v3265 = vpop.f32.mrf.mxu0
        %3266 = vdwg.mxu0
        %v3267 = vadd.f32 %v3180, %v3220
        %v3268 = vadd.f32 %v3181, %v3222
        %v3269 = vadd.f32 %v3182, %v3261
        %v3270 = vadd.f32 %v3183, %v3263
        %v3271 = vxor.u32 %v3267, 2147483648
        %v3272 = vmul.f32 %v3271, 1.442695
        %v3273 = vpow.pop %v3272
        %v3274 = vadd.f32 %v3273, 1.0
        %v3275 = vrcp.pop %v3274
        %v3276 = vmul.f32 1.0, %v3275
        %v3277 = vxor.u32 %v3268, 2147483648
        %v3278 = vmul.f32 %v3277, 1.442695
        %v3279 = vpow.pop %v3278
        %v3280 = vadd.f32 %v3279, 1.0
        %v3281 = vrcp.pop %v3280
        %v3282 = vmul.f32 1.0, %v3281
        %v3283 = vtanh.pop %v3269
        %v3284 = vxor.u32 %v3270, 2147483648
        %v3285 = vmul.f32 %v3284, 1.442695
        %v3286 = vpow.pop %v3285
        %v3287 = vadd.f32 %v3286, 1.0
        %v3288 = vrcp.pop %v3287
        %v3289 = vmul.f32 1.0, %v3288
        %v3290 = vmul.f32 %v3282, %v3050
        %v3291 = vmul.f32 %v3276, %v3283
        %v3292 = vadd.f32 %v3290, %v3291
        %v3293 = vtanh.pop %v3292
        %v3294 = vmul.f32 %v3289, %v3293
        %v3295 = vadd.f32 %v3053, %v3294
        %s3296 = smul.u32 15, 4
        %s3297 = smul.addr %s3296, 4
        %s3298 = scalar_lea.vmem [#allocation2], %s3297
        %v3299 = vld [vmem:[%s3298] sm:$0xff]
        %v3300 = vld [vmem:[%s3298 + $0x8] sm:$0xff]
        %v3301 = vunpack.c.l.bf16 %v3299
        %v3302 = vunpack.c.h.bf16 %v3299
        %v3303 = vunpack.c.l.bf16 %v3300
        %v3304 = vunpack.c.h.bf16 %v3300
        %v3305 = vpack.c.bf16 %v3173, %v3173
        %3306 = vmatprep.subr.bf16.mxu0 %v1539
        %3307 = vmatpush1.bf16.msra.mxu0 %v1538
        %3308 = vmatprep.subr.bf16.mxu0 %v1535
        %3309 = vmatpush1.bf16.msra.mxu0 %v1534
        %3310 = vmatprep.subr.bf16.mxu0 %v1531
        %3311 = vmatpush1.bf16.msra.mxu0 %v1530
        %3312 = vmatprep.subr.bf16.mxu0 %v1527
        %3313 = vmatpush1.bf16.msra.mxu0 %v1526
        %3314 = vmatprep.subr.bf16.mxu0 %v1523
        %3315 = vmatpush1.bf16.msra.mxu0 %v1522
        %3316 = vmatprep.subr.bf16.mxu0 %v1519
        %3317 = vmatpush1.bf16.msra.mxu0 %v1518
        %3318 = vmatprep.subr.bf16.mxu0 %v1515
        %3319 = vmatpush1.bf16.msra.mxu0 %v1514
        %3320 = vmatprep.subr.bf16.mxu0 %v1511
        %3321 = vmatpush1.bf16.msra.mxu0 %v1510
        %3322 = vmatprep.subr.bf16.mxu0 0
        %3323 = vmatpush2.bf16.msra.mxu0 0
        %3324 = vmatprep.subr.bf16.mxu0 0
        %3325 = vmatpush2.bf16.msra.mxu0 0
        %3326 = vmatprep.subr.bf16.mxu0 0
        %3327 = vmatpush2.bf16.msra.mxu0 0
        %3328 = vmatprep.subr.bf16.mxu0 0
        %3329 = vmatpush2.bf16.msra.mxu0 0
        %3330 = vmatprep.subr.bf16.mxu0 0
        %3331 = vmatpush2.bf16.msra.mxu0 0
        %3332 = vmatprep.subr.bf16.mxu0 0
        %3333 = vmatpush2.bf16.msra.mxu0 0
        %3334 = vmatprep.subr.bf16.mxu0 0
        %3335 = vmatpush2.bf16.msra.mxu0 0
        %3336 = vmatprep.subr.bf16.mxu0 0
        %3337 = vmatpush2.bf16.msra.mxu0 0
        %3338 = vmatprep.mubr.bf16.mxu0 0
        %3339 = vmatmul.mubr.bf16.gmra.mxu0 %v3305
        %v3340 = vpop.f32.mrf.mxu0
        %v3341 = vadd.f32 0.0, %v3340
        %v3342 = vpop.f32.mrf.mxu0
        %v3343 = vadd.f32 0.0, %v3342
        %v3344 = vpop.f32.mrf.mxu0
        %v3345 = vpop.f32.mrf.mxu0
        %3346 = vdwg.mxu0
        %3347 = vmatprep.subr.bf16.mxu0 %v1541
        %3348 = vmatpush1.bf16.msra.mxu0 %v1540
        %3349 = vmatprep.subr.bf16.mxu0 %v1537
        %3350 = vmatpush1.bf16.msra.mxu0 %v1536
        %3351 = vmatprep.subr.bf16.mxu0 %v1533
        %3352 = vmatpush1.bf16.msra.mxu0 %v1532
        %3353 = vmatprep.subr.bf16.mxu0 %v1529
        %3354 = vmatpush1.bf16.msra.mxu0 %v1528
        %3355 = vmatprep.subr.bf16.mxu0 %v1525
        %3356 = vmatpush1.bf16.msra.mxu0 %v1524
        %3357 = vmatprep.subr.bf16.mxu0 %v1521
        %3358 = vmatpush1.bf16.msra.mxu0 %v1520
        %3359 = vmatprep.subr.bf16.mxu0 %v1517
        %3360 = vmatpush1.bf16.msra.mxu0 %v1516
        %3361 = vmatprep.subr.bf16.mxu0 %v1513
        %3362 = vmatpush1.bf16.msra.mxu0 %v1512
        %3363 = vmatprep.subr.bf16.mxu0 0
        %3364 = vmatpush2.bf16.msra.mxu0 0
        %3365 = vmatprep.subr.bf16.mxu0 0
        %3366 = vmatpush2.bf16.msra.mxu0 0
        %3367 = vmatprep.subr.bf16.mxu0 0
        %3368 = vmatpush2.bf16.msra.mxu0 0
        %3369 = vmatprep.subr.bf16.mxu0 0
        %3370 = vmatpush2.bf16.msra.mxu0 0
        %3371 = vmatprep.subr.bf16.mxu0 0
        %3372 = vmatpush2.bf16.msra.mxu0 0
        %3373 = vmatprep.subr.bf16.mxu0 0
        %3374 = vmatpush2.bf16.msra.mxu0 0
        %3375 = vmatprep.subr.bf16.mxu0 0
        %3376 = vmatpush2.bf16.msra.mxu0 0
        %3377 = vmatprep.subr.bf16.mxu0 0
        %3378 = vmatpush2.bf16.msra.mxu0 0
        %3379 = vmatprep.mubr.bf16.mxu0 0
        %3380 = vmatmul.mubr.bf16.gmra.mxu0 %v3305
        %v3381 = vpop.f32.mrf.mxu0
        %v3382 = vadd.f32 0.0, %v3381
        %v3383 = vpop.f32.mrf.mxu0
        %v3384 = vadd.f32 0.0, %v3383
        %v3385 = vpop.f32.mrf.mxu0
        %v3386 = vpop.f32.mrf.mxu0
        %3387 = vdwg.mxu0
        %v3388 = vadd.f32 %v3301, %v3341
        %v3389 = vadd.f32 %v3302, %v3343
        %v3390 = vadd.f32 %v3303, %v3382
        %v3391 = vadd.f32 %v3304, %v3384
        %v3392 = vxor.u32 %v3388, 2147483648
        %v3393 = vmul.f32 %v3392, 1.442695
        %v3394 = vpow.pop %v3393
        %v3395 = vadd.f32 %v3394, 1.0
        %v3396 = vrcp.pop %v3395
        %v3397 = vmul.f32 1.0, %v3396
        %v3398 = vxor.u32 %v3389, 2147483648
        %v3399 = vmul.f32 %v3398, 1.442695
        %v3400 = vpow.pop %v3399
        %v3401 = vadd.f32 %v3400, 1.0
        %v3402 = vrcp.pop %v3401
        %v3403 = vmul.f32 1.0, %v3402
        %v3404 = vtanh.pop %v3390
        %v3405 = vxor.u32 %v3391, 2147483648
        %v3406 = vmul.f32 %v3405, 1.442695
        %v3407 = vpow.pop %v3406
        %v3408 = vadd.f32 %v3407, 1.0
        %v3409 = vrcp.pop %v3408
        %v3410 = vmul.f32 1.0, %v3409
        %v3411 = vmul.f32 %v3403, %v3171
        %v3412 = vmul.f32 %v3397, %v3404
        %v3413 = vadd.f32 %v3411, %v3412
        %v3414 = vtanh.pop %v3413
        %v3415 = vmul.f32 %v3410, %v3414
        %v3416 = vadd.f32 %v3174, %v3415
        %v3417 = vld [vmem:[%s193] sm:$0xff]
        %v3418 = vmul.f32 %v3295, 0.125
        %v3419 = vadd.f32 %v3417, %v3418
        %3420 = vst [vmem:[%s193] sm:$0xff] %v3419
        %v3421 = vld [vmem:[%s193 + $0x8] sm:$0xff]
        %v3422 = vmul.f32 %v3416, 0.125
        %v3423 = vadd.f32 %v3421, %v3422
        %3424 = vst [vmem:[%s193 + $0x8] sm:$0xff] %v3423
        %s3425 = sand.u32 %s115, 1
        %s3426 = scalar_lea.sflag [#allocation4], %s3425
        %s3427 = sand.u32 %s115, 1
        %s3428 = smul.addr %s3427, 16
        %s3429 = scalar_lea.vmem [#allocation3], %s3428
        // Predicated region
        $region37: #{lstm_forward.1} parent=35 // pred_check
          %p3430 = pneg %p125
        $region38: #{lstm_forward.1} parent=35 // pred_check_branch
          %3432 = sbr.rel (%p3430) target = $region40
        $region39: #{lstm_forward.1} parent=35 // pred_region
          %s3433 = smul.u32 2, %s18
          %s3435 = ssub.s32 256, 256
          %3436 = vsyncadd %s3426, %s3435
          %s3437 = smul.addr %s3433, 128
          %s3438 = scalar_lea.hbm %s4, %s3437
          %s3439 = sshll.u32 %s3429, 4
          %s3440 = int_to_ptr.vmem [resolvable:$true] %s3439
          %3445 = dma.vmem_to_hbm [thread:$0]  %s3440, 256, %s3438, %s3426, 128, 128, 8
        $region40: #{lstm_forward.1} parent=35 // pred_fallthru
          _
      $region36: #{lstm_forward.1} parent=5 // pred_fallthru
        _
      %p3446 = scmp.le.s32.totalorder 2, %s13
      // Predicated region
      $region41: #{lstm_forward.1} parent=5 // pred_check
        %p3447 = pneg %p3446
      $region42: #{lstm_forward.1} parent=5 // pred_check_branch
        %3449 = sbr.rel (%p3447) target = $region44
      $region43: #{lstm_forward.1} parent=5 // pred_region
        %s3450 = ssub.s32 %s13, 2
        // Predicated region
        $region45: #{lstm_forward.1} parent=43 // pred_check
          %p3451 = pneg %p131
        $region46: #{lstm_forward.1} parent=43 // pred_check_branch
          %3453 = sbr.rel (%p3451) target = $region48
        $region47: #{lstm_forward.1} parent=43 // pred_region
          %s3454 = sand.u32 %s116, 1
          %s3455 = scalar_lea.sflag [#allocation4], %s3454
          %s3456 = sand.u32 %s116, 1
          %s3457 = smul.addr %s3456, 16
          %s3458 = scalar_lea.vmem [#allocation3], %s3457
          %3459 = dma.done %s3455, 256
        $region48: #{lstm_forward.1} parent=43 // pred_fallthru
          _
      $region44: #{lstm_forward.1} parent=5 // pred_fallthru
        _
    $region6: #{lstm_forward.1} parent=1 // loop_footer
      %s17 = sadd.s32 1, %s13
    $region7: #{lstm_forward.1} parent=1 // loop_footer_branch
      %12 = sbr.rel target = $region3
    $region8: #{lstm_forward.1} parent=1 // loop_exit
      _
    %3460 = vsyncpa [#allocation4], 1
    %s3461 = scalar_lea.sflag [#allocation4], 1
    %3462 = vsyncpa %s3461, 1

</llo_original>
